<compile_context>
chip_gen: v6e
topology: v6e:2x2x1
jax: 0.10.0
libtpu: 0.0.40
codegen_flags: <defaults>
</compile_context>

<pallas_src>
import functools

import jax
import jax.numpy as jnp
from jax.experimental import pallas as pl
from jax.experimental.pallas import tpu as pltpu


# ----------------------------- Pallas kernels ------------------------------

def _conv1_pool_kernel(p_ref, w_ref, b_ref, o_ref):
    """Fused conv1 + bias + ReLU + 2x2 max-pool.

    p_ref: (4, K1, M1)  im2col patches, one slab per pool parity; M1 = N*23*23
                        (lane-dense output columns).
    w_ref: (6, K1)      conv1 weight as matmul LHS.
    b_ref: (6, 1)       conv1 bias (broadcast over lanes).
    o_ref: (6, M1)      pooled conv1 activations, column m = n*529 + h*23 + w.
    """
    w = w_ref[...]
    acc = None
    for q in range(4):                                   # max over 2x2 pool window
        z = jnp.dot(w, p_ref[q], preferred_element_type=jnp.float32)
        acc = z if acc is None else jnp.maximum(acc, z)
    o_ref[...] = jnp.maximum(acc + b_ref[...], 0.0)      # bias + ReLU (monotone, so
                                                         # commutes with the max)


def _conv2_fc_kernel(p_ref, w2_ref, b2_ref, w3_ref, b3_ref, w4_ref, b4_ref,
                     w5_ref, b5_ref, o_ref, *, n_batch):
    """Fused conv2 + bias + ReLU + pool + flatten + fc1 + fc2 + fc3.

    p_ref: (4, N*25, 150)   conv2 im2col patches per pool parity,
                            row m = (h*5+w)*N + n, col k = ci*25 + ki*5 + kj.
    w2_ref: (150, 12)       conv2 weight (transposed matmul RHS).
    b2_ref: (1, 12)
    w3_ref: (25, 12, 216)   fc1 weight, pre-permuted: w3[hw, c, j] = fc1_w[c*25+hw, j].
    b3_ref: (1, 216); w4_ref: (216, 108); b4_ref: (1, 108)
    w5_ref: (108, A); b5_ref: (1, A); o_ref: (N, A)
    """
    w2 = w2_ref[...]
    acc = None
    for q in range(4):
        z = jnp.dot(p_ref[q], w2, preferred_element_type=jnp.float32)   # (N*25, 12)
        acc = z if acc is None else jnp.maximum(acc, z)
    pooled = jnp.maximum(acc + b2_ref[...], 0.0)          # rows ordered (h*5+w)*N + n

    # fc1: joint contraction over (channel, spatial); 25 tiny matmuls so no
    # in-kernel reshape/transpose of tiled dims is needed.
    h1 = None
    for hw in range(25):
        blk = pooled[hw * n_batch:(hw + 1) * n_batch, :]                 # (N, 12)
        t = jnp.dot(blk, w3_ref[hw], preferred_element_type=jnp.float32)  # (N, 216)
        h1 = t if h1 is None else h1 + t
    h1 = jnp.maximum(h1 + b3_ref[...], 0.0)
    h2 = jnp.maximum(jnp.dot(h1, w4_ref[...], preferred_element_type=jnp.float32)
                     + b4_ref[...], 0.0)
    out = jnp.dot(h2, w5_ref[...], preferred_element_type=jnp.float32) + b5_ref[...]
    o_ref[...] = out.astype(o_ref.dtype)


def _full_spec(shape):
    n = len(shape)
    return pl.BlockSpec(shape, lambda i, _n=n: (0,) * _n)


def _single_call(kernel, args, out_shape):
    return pl.pallas_call(
        kernel,
        out_shape=jax.ShapeDtypeStruct(out_shape, jnp.float32),
        grid=(1,),
        in_specs=[_full_spec(a.shape) for a in args],
        out_specs=_full_spec(out_shape),
        compiler_params=pltpu.CompilerParams(dimension_semantics=("arbitrary",)),
    )(*args)


# ------------------------------ JAX glue -----------------------------------

def _conv1_patches(x):
    """x: (N, Cin, 96, 96) -> (4, Cin*36, N*529) parity-split im2col patches."""
    N, Cin = x.shape[:2]
    Ho = Wo = 46                               # conv1 output spatial (k=6, stride 2)
    cols = [x[:, :, ki:ki + 2 * (Ho - 1) + 1:2, kj:kj + 2 * (Wo - 1) + 1:2]
            for ki in range(6) for kj in range(6)]
    P = jnp.stack(cols, axis=2)                # (N, Cin, 36, 46, 46)
    slabs = []
    for a in range(2):
        for b in range(2):
            q = P[:, :, :, a::2, b::2]                                 # (N, Cin, 36, 23, 23)
            q = q.reshape(N, Cin * 36, 23 * 23)
            q = q.transpose(1, 0, 2).reshape(Cin * 36, N * 23 * 23)    # m = n*529 + h*23 + w
            slabs.append(q)
    return jnp.stack(slabs, axis=0)


def _conv2_patches(pooled1):
    """pooled1: (6, N, 23, 23) -> (4, N*25, 150) parity-split im2col patches."""
    C, N = pooled1.shape[:2]
    cols = [pooled1[:, :, ki:ki + 19:2, kj:kj + 19:2]
            for ki in range(5) for kj in range(5)]
    P = jnp.stack(cols, axis=2)                # (6, N, 25, 10, 10)
    slabs = []
    for a in range(2):
        for b in range(2):
            q = P[..., a::2, b::2]                                     # (6, N, 25, 5, 5)
            q = q.transpose(3, 4, 1, 0, 2).reshape(N * 25, C * 25)     # m = (h*5+w)*N + n
            slabs.append(q)
    return jnp.stack(slabs, axis=0)


def cnn_forward(x, p):
    N, Cin = x.shape[0], x.shape[1]
    A = p["fc3_b"].shape[0]

    # ---- call 1: conv1 + bias + ReLU + 2x2 pool ----
    p1 = _conv1_patches(x)                                 # (4, Cin*36, N*529)
    w1 = p["conv1_w"].reshape(6, Cin * 36)
    b1 = p["conv1_b"].reshape(6, 1)
    pooled1 = _single_call(_conv1_pool_kernel, (p1, w1, b1), (6, N * 529))
    pooled1 = pooled1.reshape(6, N, 23, 23)

    # ---- call 2: conv2 + bias + ReLU + pool + fc1 + fc2 + fc3 ----
    p2 = _conv2_patches(pooled1)                           # (4, N*25, 150)
    w2 = p["conv2_w"].reshape(12, 150).T                   # (150, 12)
    b2 = p["conv2_b"].reshape(1, 12)
    # Rearrange fc1 weight once so PyTorch's (C,H,W) flatten order is consumed
    # directly from the pooled conv2 layout inside the kernel.
    w3 = p["fc1_w"].reshape(12, 25, 216).transpose(1, 0, 2)  # (25, 12, 216)
    b3 = p["fc1_b"].reshape(1, 216)
    w4 = p["fc2_w"]
    b4 = p["fc2_b"].reshape(1, 108)
    w5 = p["fc3_w"]
    b5 = p["fc3_b"].reshape(1, A)
    kernel = functools.partial(_conv2_fc_kernel, n_batch=N)
    return _single_call(kernel, (p2, w2, b2, w3, b3, w4, b4, w5, b5), (N, A))


# --------------------------- parameter creation ----------------------------

def init_params(key, action_dim, history_length=0):
    cin = history_length + 1
    keys = jax.random.split(key, 10)

    def u(k, shape, fan_in):
        bound = 1.0 / jnp.sqrt(fan_in)
        return jax.random.uniform(k, shape, jnp.float32, -bound, bound)

    return {
        "conv1_w": u(keys[0], (6, cin, 6, 6), cin * 36),
        "conv1_b": u(keys[1], (6,), cin * 36),
        "conv2_w": u(keys[2], (12, 6, 5, 5), 6 * 25),
        "conv2_b": u(keys[3], (12,), 6 * 25),
        "fc1_w":   u(keys[4], (300, 216), 300),   # stored (in, out)
        "fc1_b":   u(keys[5], (216,), 300),
        "fc2_w":   u(keys[6], (216, 108), 216),
        "fc2_b":   u(keys[7], (108,), 216),
        "fc3_w":   u(keys[8], (108, action_dim), 108),
        "fc3_b":   u(keys[9], (action_dim,), 108),
    }


# --------------------------- pure-JAX reference -----------------------------

def ref_forward(x, p):
    def conv(x, w, b, stride):
        y = jax.lax.conv_general_dilated(
            x, w, (stride, stride), "VALID",
            dimension_numbers=("NCHW", "OIHW", "NCHW"))
        return y + b[None, :, None, None]

    def pool(x):
        return jax.lax.reduce_window(x, -jnp.inf, jax.lax.max,
                                     (1, 1, 2, 2), (1, 1, 2, 2), "VALID")

    x = pool(jax.nn.relu(conv(x, p["conv1_w"], p["conv1_b"], 2)))
    x = pool(jax.nn.relu(conv(x, p["conv2_w"], p["conv2_b"], 2)))
    x = x.reshape(x.shape[0], -1)
    x = jax.nn.relu(x @ p["fc1_w"] + p["fc1_b"])
    x = jax.nn.relu(x @ p["fc2_w"] + p["fc2_b"])
    return x @ p["fc3_w"] + p["fc3_b"]


if __name__ == "__main__":
    # history_length=0 -> 1 input channel; 96x96 spatial is required by fc1's
    # 12*5*5 input dimension (CarRacing frames), so that is the smallest valid size.
    batch, history_length, action_dim = 2, 0, 5
    key = jax.random.PRNGKey(0)
    k_x, k_p = jax.random.split(key)

    x = jax.random.normal(k_x, (batch, history_length + 1, 96, 96), jnp.float32)
    params = init_params(k_p, action_dim, history_length)

    out = jax.block_until_ready(jax.jit(cnn_forward)(x, params))
    assert out.shape == (batch, action_dim), out.shape

    ref = jax.block_until_ready(ref_forward(x, params))
    assert jnp.allclose(out, ref, atol=1e-3, rtol=1e-3), \
        float(jnp.max(jnp.abs(out - ref)))

    print("KERNEL_OK")
</pallas_src>

<mosaic_0001>
module attributes {stable_mosaic.version = 11 : i64} {
  func.func @_conv1_pool_kernel(%arg0: i32, %arg1: memref<4x36x1058xf32, #tpu.memory_space<vmem>>, %arg2: memref<6x36xf32, #tpu.memory_space<vmem>>, %arg3: memref<6x1xf32, #tpu.memory_space<vmem>>, %arg4: memref<6x1058xf32, #tpu.memory_space<vmem>>) attributes {dimension_semantics = [#tpu.dimension_semantics<arbitrary>], iteration_bounds = array<i64: 1>, scalar_prefetch = 0 : i64, scratch_operands = 0 : i64, tpu.core_type = #tpu.core_type<tc>, window_params = [{pipeline_mode = #tpu.pipeline_mode<synchronous>, transform_indices = @transform_0, window_bounds = array<i64: 4, 36, 1058>}, {pipeline_mode = #tpu.pipeline_mode<synchronous>, transform_indices = @transform_1, window_bounds = array<i64: 6, 36>}, {pipeline_mode = #tpu.pipeline_mode<synchronous>, transform_indices = @transform_2, window_bounds = array<i64: 6, 1>}, {pipeline_mode = #tpu.pipeline_mode<synchronous>, transform_indices = @transform_3, window_bounds = array<i64: 6, 1058>}]} {
    %c0 = arith.constant 0 : index
    %c0_0 = arith.constant 0 : index
    %0 = vector.load %arg2[%c0, %c0_0] : memref<6x36xf32, #tpu.memory_space<vmem>>, vector<6x36xf32>
    %c0_1 = arith.constant 0 : index
    %c0_2 = arith.constant 0 : index
    %c0_3 = arith.constant 0 : index
    %1 = vector.load %arg1[%c0_1, %c0_2, %c0_3] : memref<4x36x1058xf32, #tpu.memory_space<vmem>>, vector<1x36x1058xf32>
    %2 = vector.shape_cast %1 : vector<1x36x1058xf32> to vector<36x1058xf32>
    %cst = arith.constant dense<0.000000e+00> : vector<6x1058xf32>
    %3 = tpu.matmul %0, %2, %cst {dimension_numbers = #tpu.dot_dimension_numbers<[1], [0], [0], [1], [0, 0, 1, 1], [], []>} : vector<6x36xf32>, vector<36x1058xf32>, vector<6x1058xf32> -> vector<6x1058xf32>
    %c1 = arith.constant 1 : index
    %c0_4 = arith.constant 0 : index
    %c0_5 = arith.constant 0 : index
    %4 = vector.load %arg1[%c1, %c0_4, %c0_5] : memref<4x36x1058xf32, #tpu.memory_space<vmem>>, vector<1x36x1058xf32>
    %5 = vector.shape_cast %4 : vector<1x36x1058xf32> to vector<36x1058xf32>
    %cst_6 = arith.constant dense<0.000000e+00> : vector<6x1058xf32>
    %6 = tpu.matmul %0, %5, %cst_6 {dimension_numbers = #tpu.dot_dimension_numbers<[1], [0], [0], [1], [0, 0, 1, 1], [], []>} : vector<6x36xf32>, vector<36x1058xf32>, vector<6x1058xf32> -> vector<6x1058xf32>
    %7 = arith.maximumf %3, %6 : vector<6x1058xf32>
    %c2 = arith.constant 2 : index
    %c0_7 = arith.constant 0 : index
    %c0_8 = arith.constant 0 : index
    %8 = vector.load %arg1[%c2, %c0_7, %c0_8] : memref<4x36x1058xf32, #tpu.memory_space<vmem>>, vector<1x36x1058xf32>
    %9 = vector.shape_cast %8 : vector<1x36x1058xf32> to vector<36x1058xf32>
    %cst_9 = arith.constant dense<0.000000e+00> : vector<6x1058xf32>
    %10 = tpu.matmul %0, %9, %cst_9 {dimension_numbers = #tpu.dot_dimension_numbers<[1], [0], [0], [1], [0, 0, 1, 1], [], []>} : vector<6x36xf32>, vector<36x1058xf32>, vector<6x1058xf32> -> vector<6x1058xf32>
    %11 = arith.maximumf %7, %10 : vector<6x1058xf32>
    %c3 = arith.constant 3 : index
    %c0_10 = arith.constant 0 : index
    %c0_11 = arith.constant 0 : index
    %12 = vector.load %arg1[%c3, %c0_10, %c0_11] : memref<4x36x1058xf32, #tpu.memory_space<vmem>>, vector<1x36x1058xf32>
    %13 = vector.shape_cast %12 : vector<1x36x1058xf32> to vector<36x1058xf32>
    %cst_12 = arith.constant dense<0.000000e+00> : vector<6x1058xf32>
    %14 = tpu.matmul %0, %13, %cst_12 {dimension_numbers = #tpu.dot_dimension_numbers<[1], [0], [0], [1], [0, 0, 1, 1], [], []>} : vector<6x36xf32>, vector<36x1058xf32>, vector<6x1058xf32> -> vector<6x1058xf32>
    %15 = arith.maximumf %11, %14 : vector<6x1058xf32>
    %c0_13 = arith.constant 0 : index
    %c0_14 = arith.constant 0 : index
    %16 = vector.load %arg3[%c0_13, %c0_14] : memref<6x1xf32, #tpu.memory_space<vmem>>, vector<6x1xf32>
    %17 = vector.broadcast %16 : vector<6x1xf32> to vector<6x1058xf32>
    %18 = arith.addf %15, %17 : vector<6x1058xf32>
    %cst_15 = arith.constant 0.000000e+00 : f32
    %19 = vector.broadcast %cst_15 : f32 to vector<6x1058xf32>
    %20 = arith.maximumf %18, %19 : vector<6x1058xf32>
    %c0_16 = arith.constant 0 : index
    %c0_17 = arith.constant 0 : index
    %21 = vector.load %arg4[%c0_16, %c0_17] : memref<6x1058xf32, #tpu.memory_space<vmem>>, vector<6x1058xf32>
    tpu.vector_store %arg4[%c0_16, %c0_17], %20 {strides = array<i32>} : memref<6x1058xf32, #tpu.memory_space<vmem>>, vector<6x1058xf32>,
    return
  }
  func.func @transform_0(%arg0: i32) -> (i32, i32, i32) {
    %c0_i32 = arith.constant 0 : i32
    %c0_i32_0 = arith.constant 0 : i32
    %c0_i32_1 = arith.constant 0 : i32
    %c0_i32_2 = arith.constant 0 : i32
    return %c0_i32, %c0_i32_0, %c0_i32_1 : i32, i32, i32
  }
  func.func @transform_1(%arg0: i32) -> (i32, i32) {
    %c0_i32 = arith.constant 0 : i32
    %c0_i32_0 = arith.constant 0 : i32
    %c0_i32_1 = arith.constant 0 : i32
    return %c0_i32, %c0_i32_0 : i32, i32
  }
  func.func @transform_2(%arg0: i32) -> (i32, i32) {
    %c0_i32 = arith.constant 0 : i32
    %c0_i32_0 = arith.constant 0 : i32
    %c0_i32_1 = arith.constant 0 : i32
    return %c0_i32, %c0_i32_0 : i32, i32
  }
  func.func @transform_3(%arg0: i32) -> (i32, i32) {
    %c0_i32 = arith.constant 0 : i32
    %c0_i32_0 = arith.constant 0 : i32
    %c0_i32_1 = arith.constant 0 : i32
    return %c0_i32, %c0_i32_0 : i32, i32
  }
}

module attributes {stable_mosaic.version = 11 : i64} {
  func.func @_conv2_fc_kernel(%arg0: i32, %arg1: memref<4x50x150xf32, #tpu.memory_space<vmem>>, %arg2: memref<150x12xf32, #tpu.memory_space<vmem>>, %arg3: memref<1x12xf32, #tpu.memory_space<vmem>>, %arg4: memref<25x12x216xf32, #tpu.memory_space<vmem>>, %arg5: memref<1x216xf32, #tpu.memory_space<vmem>>, %arg6: memref<216x108xf32, #tpu.memory_space<vmem>>, %arg7: memref<1x108xf32, #tpu.memory_space<vmem>>, %arg8: memref<108x5xf32, #tpu.memory_space<vmem>>, %arg9: memref<1x5xf32, #tpu.memory_space<vmem>>, %arg10: memref<2x5xf32, #tpu.memory_space<vmem>>) attributes {dimension_semantics = [#tpu.dimension_semantics<arbitrary>], iteration_bounds = array<i64: 1>, scalar_prefetch = 0 : i64, scratch_operands = 0 : i64, tpu.core_type = #tpu.core_type<tc>, window_params = [{pipeline_mode = #tpu.pipeline_mode<synchronous>, transform_indices = @transform_0, window_bounds = array<i64: 4, 50, 150>}, {pipeline_mode = #tpu.pipeline_mode<synchronous>, transform_indices = @transform_1, window_bounds = array<i64: 150, 12>}, {pipeline_mode = #tpu.pipeline_mode<synchronous>, transform_indices = @transform_2, window_bounds = array<i64: 1, 12>}, {pipeline_mode = #tpu.pipeline_mode<synchronous>, transform_indices = @transform_3, window_bounds = array<i64: 25, 12, 216>}, {pipeline_mode = #tpu.pipeline_mode<synchronous>, transform_indices = @transform_4, window_bounds = array<i64: 1, 216>}, {pipeline_mode = #tpu.pipeline_mode<synchronous>, transform_indices = @transform_5, window_bounds = array<i64: 216, 108>}, {pipeline_mode = #tpu.pipeline_mode<synchronous>, transform_indices = @transform_6, window_bounds = array<i64: 1, 108>}, {pipeline_mode = #tpu.pipeline_mode<synchronous>, transform_indices = @transform_7, window_bounds = array<i64: 108, 5>}, {pipeline_mode = #tpu.pipeline_mode<synchronous>, transform_indices = @transform_8, window_bounds = array<i64: 1, 5>}, {pipeline_mode = #tpu.pipeline_mode<synchronous>, transform_indices = @transform_9, window_bounds = array<i64: 2, 5>}]} {
    %c0 = arith.constant 0 : index
    %c0_0 = arith.constant 0 : index
    %0 = vector.load %arg2[%c0, %c0_0] : memref<150x12xf32, #tpu.memory_space<vmem>>, vector<150x12xf32>
    %c0_1 = arith.constant 0 : index
    %c0_2 = arith.constant 0 : index
    %c0_3 = arith.constant 0 : index
    %1 = vector.load %arg1[%c0_1, %c0_2, %c0_3] : memref<4x50x150xf32, #tpu.memory_space<vmem>>, vector<1x50x150xf32>
    %2 = vector.shape_cast %1 : vector<1x50x150xf32> to vector<50x150xf32>
    %cst = arith.constant dense<0.000000e+00> : vector<50x12xf32>
    %3 = tpu.matmul %2, %0, %cst {dimension_numbers = #tpu.dot_dimension_numbers<[1], [0], [0], [1], [0, 0, 1, 1], [], []>} : vector<50x150xf32>, vector<150x12xf32>, vector<50x12xf32> -> vector<50x12xf32>
    %c1 = arith.constant 1 : index
    %c0_4 = arith.constant 0 : index
    %c0_5 = arith.constant 0 : index
    %4 = vector.load %arg1[%c1, %c0_4, %c0_5] : memref<4x50x150xf32, #tpu.memory_space<vmem>>, vector<1x50x150xf32>
    %5 = vector.shape_cast %4 : vector<1x50x150xf32> to vector<50x150xf32>
    %cst_6 = arith.constant dense<0.000000e+00> : vector<50x12xf32>
    %6 = tpu.matmul %5, %0, %cst_6 {dimension_numbers = #tpu.dot_dimension_numbers<[1], [0], [0], [1], [0, 0, 1, 1], [], []>} : vector<50x150xf32>, vector<150x12xf32>, vector<50x12xf32> -> vector<50x12xf32>
    %7 = arith.maximumf %3, %6 : vector<50x12xf32>
    %c2 = arith.constant 2 : index
    %c0_7 = arith.constant 0 : index
    %c0_8 = arith.constant 0 : index
    %8 = vector.load %arg1[%c2, %c0_7, %c0_8] : memref<4x50x150xf32, #tpu.memory_space<vmem>>, vector<1x50x150xf32>
    %9 = vector.shape_cast %8 : vector<1x50x150xf32> to vector<50x150xf32>
    %cst_9 = arith.constant dense<0.000000e+00> : vector<50x12xf32>
    %10 = tpu.matmul %9, %0, %cst_9 {dimension_numbers = #tpu.dot_dimension_numbers<[1], [0], [0], [1], [0, 0, 1, 1], [], []>} : vector<50x150xf32>, vector<150x12xf32>, vector<50x12xf32> -> vector<50x12xf32>
    %11 = arith.maximumf %7, %10 : vector<50x12xf32>
    %c3 = arith.constant 3 : index
    %c0_10 = arith.constant 0 : index
    %c0_11 = arith.constant 0 : index
    %12 = vector.load %arg1[%c3, %c0_10, %c0_11] : memref<4x50x150xf32, #tpu.memory_space<vmem>>, vector<1x50x150xf32>
    %13 = vector.shape_cast %12 : vector<1x50x150xf32> to vector<50x150xf32>
    %cst_12 = arith.constant dense<0.000000e+00> : vector<50x12xf32>
    %14 = tpu.matmul %13, %0, %cst_12 {dimension_numbers = #tpu.dot_dimension_numbers<[1], [0], [0], [1], [0, 0, 1, 1], [], []>} : vector<50x150xf32>, vector<150x12xf32>, vector<50x12xf32> -> vector<50x12xf32>
    %15 = arith.maximumf %11, %14 : vector<50x12xf32>
    %c0_13 = arith.constant 0 : index
    %c0_14 = arith.constant 0 : index
    %16 = vector.load %arg3[%c0_13, %c0_14] : memref<1x12xf32, #tpu.memory_space<vmem>>, vector<1x12xf32>
    %17 = vector.broadcast %16 : vector<1x12xf32> to vector<50x12xf32>
    %18 = arith.addf %15, %17 : vector<50x12xf32>
    %cst_15 = arith.constant 0.000000e+00 : f32
    %19 = vector.broadcast %cst_15 : f32 to vector<50x12xf32>
    %20 = arith.maximumf %18, %19 : vector<50x12xf32>
    %21 = vector.extract_strided_slice %20 {offsets = [0, 0], sizes = [2, 12], strides = [1, 1]} : vector<50x12xf32> to vector<2x12xf32>
    %c0_16 = arith.constant 0 : index
    %c0_17 = arith.constant 0 : index
    %c0_18 = arith.constant 0 : index
    %22 = vector.load %arg4[%c0_16, %c0_17, %c0_18] : memref<25x12x216xf32, #tpu.memory_space<vmem>>, vector<1x12x216xf32>
    %23 = vector.shape_cast %22 : vector<1x12x216xf32> to vector<12x216xf32>
    %cst_19 = arith.constant dense<0.000000e+00> : vector<2x216xf32>
    %24 = tpu.matmul %21, %23, %cst_19 {dimension_numbers = #tpu.dot_dimension_numbers<[1], [0], [0], [1], [0, 0, 1, 1], [], []>} : vector<2x12xf32>, vector<12x216xf32>, vector<2x216xf32> -> vector<2x216xf32>
    %25 = vector.extract_strided_slice %20 {offsets = [2, 0], sizes = [2, 12], strides = [1, 1]} : vector<50x12xf32> to vector<2x12xf32>
    %c1_20 = arith.constant 1 : index
    %c0_21 = arith.constant 0 : index
    %c0_22 = arith.constant 0 : index
    %26 = vector.load %arg4[%c1_20, %c0_21, %c0_22] : memref<25x12x216xf32, #tpu.memory_space<vmem>>, vector<1x12x216xf32>
    %27 = vector.shape_cast %26 : vector<1x12x216xf32> to vector<12x216xf32>
    %cst_23 = arith.constant dense<0.000000e+00> : vector<2x216xf32>
    %28 = tpu.matmul %25, %27, %cst_23 {dimension_numbers = #tpu.dot_dimension_numbers<[1], [0], [0], [1], [0, 0, 1, 1], [], []>} : vector<2x12xf32>, vector<12x216xf32>, vector<2x216xf32> -> vector<2x216xf32>
    %29 = arith.addf %24, %28 : vector<2x216xf32>
    %30 = vector.extract_strided_slice %20 {offsets = [4, 0], sizes = [2, 12], strides = [1, 1]} : vector<50x12xf32> to vector<2x12xf32>
    %c2_24 = arith.constant 2 : index
    %c0_25 = arith.constant 0 : index
    %c0_26 = arith.constant 0 : index
    %31 = vector.load %arg4[%c2_24, %c0_25, %c0_26] : memref<25x12x216xf32, #tpu.memory_space<vmem>>, vector<1x12x216xf32>
    %32 = vector.shape_cast %31 : vector<1x12x216xf32> to vector<12x216xf32>
    %cst_27 = arith.constant dense<0.000000e+00> : vector<2x216xf32>
    %33 = tpu.matmul %30, %32, %cst_27 {dimension_numbers = #tpu.dot_dimension_numbers<[1], [0], [0], [1], [0, 0, 1, 1], [], []>} : vector<2x12xf32>, vector<12x216xf32>, vector<2x216xf32> -> vector<2x216xf32>
    %34 = arith.addf %29, %33 : vector<2x216xf32>
    %35 = vector.extract_strided_slice %20 {offsets = [6, 0], sizes = [2, 12], strides = [1, 1]} : vector<50x12xf32> to vector<2x12xf32>
    %c3_28 = arith.constant 3 : index
    %c0_29 = arith.constant 0 : index
    %c0_30 = arith.constant 0 : index
    %36 = vector.load %arg4[%c3_28, %c0_29, %c0_30] : memref<25x12x216xf32, #tpu.memory_space<vmem>>, vector<1x12x216xf32>
    %37 = vector.shape_cast %36 : vector<1x12x216xf32> to vector<12x216xf32>
    %cst_31 = arith.constant dense<0.000000e+00> : vector<2x216xf32>
    %38 = tpu.matmul %35, %37, %cst_31 {dimension_numbers = #tpu.dot_dimension_numbers<[1], [0], [0], [1], [0, 0, 1, 1], [], []>} : vector<2x12xf32>, vector<12x216xf32>, vector<2x216xf32> -> vector<2x216xf32>
    %39 = arith.addf %34, %38 : vector<2x216xf32>
    %40 = vector.extract_strided_slice %20 {offsets = [8, 0], sizes = [2, 12], strides = [1, 1]} : vector<50x12xf32> to vector<2x12xf32>
    %c4 = arith.constant 4 : index
    %c0_32 = arith.constant 0 : index
    %c0_33 = arith.constant 0 : index
    %41 = vector.load %arg4[%c4, %c0_32, %c0_33] : memref<25x12x216xf32, #tpu.memory_space<vmem>>, vector<1x12x216xf32>
    %42 = vector.shape_cast %41 : vector<1x12x216xf32> to vector<12x216xf32>
    %cst_34 = arith.constant dense<0.000000e+00> : vector<2x216xf32>
    %43 = tpu.matmul %40, %42, %cst_34 {dimension_numbers = #tpu.dot_dimension_numbers<[1], [0], [0], [1], [0, 0, 1, 1], [], []>} : vector<2x12xf32>, vector<12x216xf32>, vector<2x216xf32> -> vector<2x216xf32>
    %44 = arith.addf %39, %43 : vector<2x216xf32>
    %45 = vector.extract_strided_slice %20 {offsets = [10, 0], sizes = [2, 12], strides = [1, 1]} : vector<50x12xf32> to vector<2x12xf32>
    %c5 = arith.constant 5 : index
    %c0_35 = arith.constant 0 : index
    %c0_36 = arith.constant 0 : index
    %46 = vector.load %arg4[%c5, %c0_35, %c0_36] : memref<25x12x216xf32, #tpu.memory_space<vmem>>, vector<1x12x216xf32>
    %47 = vector.shape_cast %46 : vector<1x12x216xf32> to vector<12x216xf32>
    %cst_37 = arith.constant dense<0.000000e+00> : vector<2x216xf32>
    %48 = tpu.matmul %45, %47, %cst_37 {dimension_numbers = #tpu.dot_dimension_numbers<[1], [0], [0], [1], [0, 0, 1, 1], [], []>} : vector<2x12xf32>, vector<12x216xf32>, vector<2x216xf32> -> vector<2x216xf32>
    %49 = arith.addf %44, %48 : vector<2x216xf32>
    %50 = vector.extract_strided_slice %20 {offsets = [12, 0], sizes = [2, 12], strides = [1, 1]} : vector<50x12xf32> to vector<2x12xf32>
    %c6 = arith.constant 6 : index
    %c0_38 = arith.constant 0 : index
    %c0_39 = arith.constant 0 : index
    %51 = vector.load %arg4[%c6, %c0_38, %c0_39] : memref<25x12x216xf32, #tpu.memory_space<vmem>>, vector<1x12x216xf32>
    %52 = vector.shape_cast %51 : vector<1x12x216xf32> to vector<12x216xf32>
    %cst_40 = arith.constant dense<0.000000e+00> : vector<2x216xf32>
    %53 = tpu.matmul %50, %52, %cst_40 {dimension_numbers = #tpu.dot_dimension_numbers<[1], [0], [0], [1], [0, 0, 1, 1], [], []>} : vector<2x12xf32>, vector<12x216xf32>, vector<2x216xf32> -> vector<2x216xf32>
    %54 = arith.addf %49, %53 : vector<2x216xf32>
    %55 = vector.extract_strided_slice %20 {offsets = [14, 0], sizes = [2, 12], strides = [1, 1]} : vector<50x12xf32> to vector<2x12xf32>
    %c7 = arith.constant 7 : index
    %c0_41 = arith.constant 0 : index
    %c0_42 = arith.constant 0 : index
    %56 = vector.load %arg4[%c7, %c0_41, %c0_42] : memref<25x12x216xf32, #tpu.memory_space<vmem>>, vector<1x12x216xf32>
    %57 = vector.shape_cast %56 : vector<1x12x216xf32> to vector<12x216xf32>
    %cst_43 = arith.constant dense<0.000000e+00> : vector<2x216xf32>
    %58 = tpu.matmul %55, %57, %cst_43 {dimension_numbers = #tpu.dot_dimension_numbers<[1], [0], [0], [1], [0, 0, 1, 1], [], []>} : vector<2x12xf32>, vector<12x216xf32>, vector<2x216xf32> -> vector<2x216xf32>
    %59 = arith.addf %54, %58 : vector<2x216xf32>
    %60 = vector.extract_strided_slice %20 {offsets = [16, 0], sizes = [2, 12], strides = [1, 1]} : vector<50x12xf32> to vector<2x12xf32>
    %c8 = arith.constant 8 : index
    %c0_44 = arith.constant 0 : index
    %c0_45 = arith.constant 0 : index
    %61 = vector.load %arg4[%c8, %c0_44, %c0_45] : memref<25x12x216xf32, #tpu.memory_space<vmem>>, vector<1x12x216xf32>
    %62 = vector.shape_cast %61 : vector<1x12x216xf32> to vector<12x216xf32>
    %cst_46 = arith.constant dense<0.000000e+00> : vector<2x216xf32>
    %63 = tpu.matmul %60, %62, %cst_46 {dimension_numbers = #tpu.dot_dimension_numbers<[1], [0], [0], [1], [0, 0, 1, 1], [], []>} : vector<2x12xf32>, vector<12x216xf32>, vector<2x216xf32> -> vector<2x216xf32>
    %64 = arith.addf %59, %63 : vector<2x216xf32>
    %65 = vector.extract_strided_slice %20 {offsets = [18, 0], sizes = [2, 12], strides = [1, 1]} : vector<50x12xf32> to vector<2x12xf32>
    %c9 = arith.constant 9 : index
    %c0_47 = arith.constant 0 : index
    %c0_48 = arith.constant 0 : index
    %66 = vector.load %arg4[%c9, %c0_47, %c0_48] : memref<25x12x216xf32, #tpu.memory_space<vmem>>, vector<1x12x216xf32>
    %67 = vector.shape_cast %66 : vector<1x12x216xf32> to vector<12x216xf32>
    %cst_49 = arith.constant dense<0.000000e+00> : vector<2x216xf32>
    %68 = tpu.matmul %65, %67, %cst_49 {dimension_numbers = #tpu.dot_dimension_numbers<[1], [0], [0], [1], [0, 0, 1, 1], [], []>} : vector<2x12xf32>, vector<12x216xf32>, vector<2x216xf32> -> vector<2x216xf32>
    %69 = arith.addf %64, %68 : vector<2x216xf32>
    %70 = vector.extract_strided_slice %20 {offsets = [20, 0], sizes = [2, 12], strides = [1, 1]} : vector<50x12xf32> to vector<2x12xf32>
    %c10 = arith.constant 10 : index
    %c0_50 = arith.constant 0 : index
    %c0_51 = arith.constant 0 : index
    %71 = vector.load %arg4[%c10, %c0_50, %c0_51] : memref<25x12x216xf32, #tpu.memory_space<vmem>>, vector<1x12x216xf32>
    %72 = vector.shape_cast %71 : vector<1x12x216xf32> to vector<12x216xf32>
    %cst_52 = arith.constant dense<0.000000e+00> : vector<2x216xf32>
    %73 = tpu.matmul %70, %72, %cst_52 {dimension_numbers = #tpu.dot_dimension_numbers<[1], [0], [0], [1], [0, 0, 1, 1], [], []>} : vector<2x12xf32>, vector<12x216xf32>, vector<2x216xf32> -> vector<2x216xf32>
    %74 = arith.addf %69, %73 : vector<2x216xf32>
    %75 = vector.extract_strided_slice %20 {offsets = [22, 0], sizes = [2, 12], strides = [1, 1]} : vector<50x12xf32> to vector<2x12xf32>
    %c11 = arith.constant 11 : index
    %c0_53 = arith.constant 0 : index
    %c0_54 = arith.constant 0 : index
    %76 = vector.load %arg4[%c11, %c0_53, %c0_54] : memref<25x12x216xf32, #tpu.memory_space<vmem>>, vector<1x12x216xf32>
    %77 = vector.shape_cast %76 : vector<1x12x216xf32> to vector<12x216xf32>
    %cst_55 = arith.constant dense<0.000000e+00> : vector<2x216xf32>
    %78 = tpu.matmul %75, %77, %cst_55 {dimension_numbers = #tpu.dot_dimension_numbers<[1], [0], [0], [1], [0, 0, 1, 1], [], []>} : vector<2x12xf32>, vector<12x216xf32>, vector<2x216xf32> -> vector<2x216xf32>
    %79 = arith.addf %74, %78 : vector<2x216xf32>
    %80 = vector.extract_strided_slice %20 {offsets = [24, 0], sizes = [2, 12], strides = [1, 1]} : vector<50x12xf32> to vector<2x12xf32>
    %c12 = arith.constant 12 : index
    %c0_56 = arith.constant 0 : index
    %c0_57 = arith.constant 0 : index
    %81 = vector.load %arg4[%c12, %c0_56, %c0_57] : memref<25x12x216xf32, #tpu.memory_space<vmem>>, vector<1x12x216xf32>
    %82 = vector.shape_cast %81 : vector<1x12x216xf32> to vector<12x216xf32>
    %cst_58 = arith.constant dense<0.000000e+00> : vector<2x216xf32>
    %83 = tpu.matmul %80, %82, %cst_58 {dimension_numbers = #tpu.dot_dimension_numbers<[1], [0], [0], [1], [0, 0, 1, 1], [], []>} : vector<2x12xf32>, vector<12x216xf32>, vector<2x216xf32> -> vector<2x216xf32>
    %84 = arith.addf %79, %83 : vector<2x216xf32>
    %85 = vector.extract_strided_slice %20 {offsets = [26, 0], sizes = [2, 12], strides = [1, 1]} : vector<50x12xf32> to vector<2x12xf32>
    %c13 = arith.constant 13 : index
    %c0_59 = arith.constant 0 : index
    %c0_60 = arith.constant 0 : index
    %86 = vector.load %arg4[%c13, %c0_59, %c0_60] : memref<25x12x216xf32, #tpu.memory_space<vmem>>, vector<1x12x216xf32>
    %87 = vector.shape_cast %86 : vector<1x12x216xf32> to vector<12x216xf32>
    %cst_61 = arith.constant dense<0.000000e+00> : vector<2x216xf32>
    %88 = tpu.matmul %85, %87, %cst_61 {dimension_numbers = #tpu.dot_dimension_numbers<[1], [0], [0], [1], [0, 0, 1, 1], [], []>} : vector<2x12xf32>, vector<12x216xf32>, vector<2x216xf32> -> vector<2x216xf32>
    %89 = arith.addf %84, %88 : vector<2x216xf32>
    %90 = vector.extract_strided_slice %20 {offsets = [28, 0], sizes = [2, 12], strides = [1, 1]} : vector<50x12xf32> to vector<2x12xf32>
    %c14 = arith.constant 14 : index
    %c0_62 = arith.constant 0 : index
    %c0_63 = arith.constant 0 : index
    %91 = vector.load %arg4[%c14, %c0_62, %c0_63] : memref<25x12x216xf32, #tpu.memory_space<vmem>>, vector<1x12x216xf32>
    %92 = vector.shape_cast %91 : vector<1x12x216xf32> to vector<12x216xf32>
    %cst_64 = arith.constant dense<0.000000e+00> : vector<2x216xf32>
    %93 = tpu.matmul %90, %92, %cst_64 {dimension_numbers = #tpu.dot_dimension_numbers<[1], [0], [0], [1], [0, 0, 1, 1], [], []>} : vector<2x12xf32>, vector<12x216xf32>, vector<2x216xf32> -> vector<2x216xf32>
    %94 = arith.addf %89, %93 : vector<2x216xf32>
    %95 = vector.extract_strided_slice %20 {offsets = [30, 0], sizes = [2, 12], strides = [1, 1]} : vector<50x12xf32> to vector<2x12xf32>
    %c15 = arith.constant 15 : index
    %c0_65 = arith.constant 0 : index
    %c0_66 = arith.constant 0 : index
    %96 = vector.load %arg4[%c15, %c0_65, %c0_66] : memref<25x12x216xf32, #tpu.memory_space<vmem>>, vector<1x12x216xf32>
    %97 = vector.shape_cast %96 : vector<1x12x216xf32> to vector<12x216xf32>
    %cst_67 = arith.constant dense<0.000000e+00> : vector<2x216xf32>
    %98 = tpu.matmul %95, %97, %cst_67 {dimension_numbers = #tpu.dot_dimension_numbers<[1], [0], [0], [1], [0, 0, 1, 1], [], []>} : vector<2x12xf32>, vector<12x216xf32>, vector<2x216xf32> -> vector<2x216xf32>
    %99 = arith.addf %94, %98 : vector<2x216xf32>
    %100 = vector.extract_strided_slice %20 {offsets = [32, 0], sizes = [2, 12], strides = [1, 1]} : vector<50x12xf32> to vector<2x12xf32>
    %c16 = arith.constant 16 : index
    %c0_68 = arith.constant 0 : index
    %c0_69 = arith.constant 0 : index
    %101 = vector.load %arg4[%c16, %c0_68, %c0_69] : memref<25x12x216xf32, #tpu.memory_space<vmem>>, vector<1x12x216xf32>
    %102 = vector.shape_cast %101 : vector<1x12x216xf32> to vector<12x216xf32>
    %cst_70 = arith.constant dense<0.000000e+00> : vector<2x216xf32>
    %103 = tpu.matmul %100, %102, %cst_70 {dimension_numbers = #tpu.dot_dimension_numbers<[1], [0], [0], [1], [0, 0, 1, 1], [], []>} : vector<2x12xf32>, vector<12x216xf32>, vector<2x216xf32> -> vector<2x216xf32>
    %104 = arith.addf %99, %103 : vector<2x216xf32>
    %105 = vector.extract_strided_slice %20 {offsets = [34, 0], sizes = [2, 12], strides = [1, 1]} : vector<50x12xf32> to vector<2x12xf32>
    %c17 = arith.constant 17 : index
    %c0_71 = arith.constant 0 : index
    %c0_72 = arith.constant 0 : index
    %106 = vector.load %arg4[%c17, %c0_71, %c0_72] : memref<25x12x216xf32, #tpu.memory_space<vmem>>, vector<1x12x216xf32>
    %107 = vector.shape_cast %106 : vector<1x12x216xf32> to vector<12x216xf32>
    %cst_73 = arith.constant dense<0.000000e+00> : vector<2x216xf32>
    %108 = tpu.matmul %105, %107, %cst_73 {dimension_numbers = #tpu.dot_dimension_numbers<[1], [0], [0], [1], [0, 0, 1, 1], [], []>} : vector<2x12xf32>, vector<12x216xf32>, vector<2x216xf32> -> vector<2x216xf32>
    %109 = arith.addf %104, %108 : vector<2x216xf32>
    %110 = vector.extract_strided_slice %20 {offsets = [36, 0], sizes = [2, 12], strides = [1, 1]} : vector<50x12xf32> to vector<2x12xf32>
    %c18 = arith.constant 18 : index
    %c0_74 = arith.constant 0 : index
    %c0_75 = arith.constant 0 : index
    %111 = vector.load %arg4[%c18, %c0_74, %c0_75] : memref<25x12x216xf32, #tpu.memory_space<vmem>>, vector<1x12x216xf32>
    %112 = vector.shape_cast %111 : vector<1x12x216xf32> to vector<12x216xf32>
    %cst_76 = arith.constant dense<0.000000e+00> : vector<2x216xf32>
    %113 = tpu.matmul %110, %112, %cst_76 {dimension_numbers = #tpu.dot_dimension_numbers<[1], [0], [0], [1], [0, 0, 1, 1], [], []>} : vector<2x12xf32>, vector<12x216xf32>, vector<2x216xf32> -> vector<2x216xf32>
    %114 = arith.addf %109, %113 : vector<2x216xf32>
    %115 = vector.extract_strided_slice %20 {offsets = [38, 0], sizes = [2, 12], strides = [1, 1]} : vector<50x12xf32> to vector<2x12xf32>
    %c19 = arith.constant 19 : index
    %c0_77 = arith.constant 0 : index
    %c0_78 = arith.constant 0 : index
    %116 = vector.load %arg4[%c19, %c0_77, %c0_78] : memref<25x12x216xf32, #tpu.memory_space<vmem>>, vector<1x12x216xf32>
    %117 = vector.shape_cast %116 : vector<1x12x216xf32> to vector<12x216xf32>
    %cst_79 = arith.constant dense<0.000000e+00> : vector<2x216xf32>
    %118 = tpu.matmul %115, %117, %cst_79 {dimension_numbers = #tpu.dot_dimension_numbers<[1], [0], [0], [1], [0, 0, 1, 1], [], []>} : vector<2x12xf32>, vector<12x216xf32>, vector<2x216xf32> -> vector<2x216xf32>
    %119 = arith.addf %114, %118 : vector<2x216xf32>
    %120 = vector.extract_strided_slice %20 {offsets = [40, 0], sizes = [2, 12], strides = [1, 1]} : vector<50x12xf32> to vector<2x12xf32>
    %c20 = arith.constant 20 : index
    %c0_80 = arith.constant 0 : index
    %c0_81 = arith.constant 0 : index
    %121 = vector.load %arg4[%c20, %c0_80, %c0_81] : memref<25x12x216xf32, #tpu.memory_space<vmem>>, vector<1x12x216xf32>
    %122 = vector.shape_cast %121 : vector<1x12x216xf32> to vector<12x216xf32>
    %cst_82 = arith.constant dense<0.000000e+00> : vector<2x216xf32>
    %123 = tpu.matmul %120, %122, %cst_82 {dimension_numbers = #tpu.dot_dimension_numbers<[1], [0], [0], [1], [0, 0, 1, 1], [], []>} : vector<2x12xf32>, vector<12x216xf32>, vector<2x216xf32> -> vector<2x216xf32>
    %124 = arith.addf %119, %123 : vector<2x216xf32>
    %125 = vector.extract_strided_slice %20 {offsets = [42, 0], sizes = [2, 12], strides = [1, 1]} : vector<50x12xf32> to vector<2x12xf32>
    %c21 = arith.constant 21 : index
    %c0_83 = arith.constant 0 : index
    %c0_84 = arith.constant 0 : index
    %126 = vector.load %arg4[%c21, %c0_83, %c0_84] : memref<25x12x216xf32, #tpu.memory_space<vmem>>, vector<1x12x216xf32>
    %127 = vector.shape_cast %126 : vector<1x12x216xf32> to vector<12x216xf32>
    %cst_85 = arith.constant dense<0.000000e+00> : vector<2x216xf32>
    %128 = tpu.matmul %125, %127, %cst_85 {dimension_numbers = #tpu.dot_dimension_numbers<[1], [0], [0], [1], [0, 0, 1, 1], [], []>} : vector<2x12xf32>, vector<12x216xf32>, vector<2x216xf32> -> vector<2x216xf32>
    %129 = arith.addf %124, %128 : vector<2x216xf32>
    %130 = vector.extract_strided_slice %20 {offsets = [44, 0], sizes = [2, 12], strides = [1, 1]} : vector<50x12xf32> to vector<2x12xf32>
    %c22 = arith.constant 22 : index
    %c0_86 = arith.constant 0 : index
    %c0_87 = arith.constant 0 : index
    %131 = vector.load %arg4[%c22, %c0_86, %c0_87] : memref<25x12x216xf32, #tpu.memory_space<vmem>>, vector<1x12x216xf32>
    %132 = vector.shape_cast %131 : vector<1x12x216xf32> to vector<12x216xf32>
    %cst_88 = arith.constant dense<0.000000e+00> : vector<2x216xf32>
    %133 = tpu.matmul %130, %132, %cst_88 {dimension_numbers = #tpu.dot_dimension_numbers<[1], [0], [0], [1], [0, 0, 1, 1], [], []>} : vector<2x12xf32>, vector<12x216xf32>, vector<2x216xf32> -> vector<2x216xf32>
    %134 = arith.addf %129, %133 : vector<2x216xf32>
    %135 = vector.extract_strided_slice %20 {offsets = [46, 0], sizes = [2, 12], strides = [1, 1]} : vector<50x12xf32> to vector<2x12xf32>
    %c23 = arith.constant 23 : index
    %c0_89 = arith.constant 0 : index
    %c0_90 = arith.constant 0 : index
    %136 = vector.load %arg4[%c23, %c0_89, %c0_90] : memref<25x12x216xf32, #tpu.memory_space<vmem>>, vector<1x12x216xf32>
    %137 = vector.shape_cast %136 : vector<1x12x216xf32> to vector<12x216xf32>
    %cst_91 = arith.constant dense<0.000000e+00> : vector<2x216xf32>
    %138 = tpu.matmul %135, %137, %cst_91 {dimension_numbers = #tpu.dot_dimension_numbers<[1], [0], [0], [1], [0, 0, 1, 1], [], []>} : vector<2x12xf32>, vector<12x216xf32>, vector<2x216xf32> -> vector<2x216xf32>
    %139 = arith.addf %134, %138 : vector<2x216xf32>
    %140 = vector.extract_strided_slice %20 {offsets = [48, 0], sizes = [2, 12], strides = [1, 1]} : vector<50x12xf32> to vector<2x12xf32>
    %c24 = arith.constant 24 : index
    %c0_92 = arith.constant 0 : index
    %c0_93 = arith.constant 0 : index
    %141 = vector.load %arg4[%c24, %c0_92, %c0_93] : memref<25x12x216xf32, #tpu.memory_space<vmem>>, vector<1x12x216xf32>
    %142 = vector.shape_cast %141 : vector<1x12x216xf32> to vector<12x216xf32>
    %cst_94 = arith.constant dense<0.000000e+00> : vector<2x216xf32>
    %143 = tpu.matmul %140, %142, %cst_94 {dimension_numbers = #tpu.dot_dimension_numbers<[1], [0], [0], [1], [0, 0, 1, 1], [], []>} : vector<2x12xf32>, vector<12x216xf32>, vector<2x216xf32> -> vector<2x216xf32>
    %144 = arith.addf %139, %143 : vector<2x216xf32>
    %c0_95 = arith.constant 0 : index
    %c0_96 = arith.constant 0 : index
    %145 = vector.load %arg5[%c0_95, %c0_96] : memref<1x216xf32, #tpu.memory_space<vmem>>, vector<1x216xf32>
    %146 = vector.broadcast %145 : vector<1x216xf32> to vector<2x216xf32>
    %147 = arith.addf %144, %146 : vector<2x216xf32>
    %cst_97 = arith.constant 0.000000e+00 : f32
    %148 = vector.broadcast %cst_97 : f32 to vector<2x216xf32>
    %149 = arith.maximumf %147, %148 : vector<2x216xf32>
    %c0_98 = arith.constant 0 : index
    %c0_99 = arith.constant 0 : index
    %150 = vector.load %arg6[%c0_98, %c0_99] : memref<216x108xf32, #tpu.memory_space<vmem>>, vector<216x108xf32>
    %cst_100 = arith.constant dense<0.000000e+00> : vector<2x108xf32>
    %151 = tpu.matmul %149, %150, %cst_100 {dimension_numbers = #tpu.dot_dimension_numbers<[1], [0], [0], [1], [0, 0, 1, 1], [], []>} : vector<2x216xf32>, vector<216x108xf32>, vector<2x108xf32> -> vector<2x108xf32>
    %c0_101 = arith.constant 0 : index
    %c0_102 = arith.constant 0 : index
    %152 = vector.load %arg7[%c0_101, %c0_102] : memref<1x108xf32, #tpu.memory_space<vmem>>, vector<1x108xf32>
    %153 = vector.broadcast %152 : vector<1x108xf32> to vector<2x108xf32>
    %154 = arith.addf %151, %153 : vector<2x108xf32>
    %cst_103 = arith.constant 0.000000e+00 : f32
    %155 = vector.broadcast %cst_103 : f32 to vector<2x108xf32>
    %156 = arith.maximumf %154, %155 : vector<2x108xf32>
    %c0_104 = arith.constant 0 : index
    %c0_105 = arith.constant 0 : index
    %157 = vector.load %arg8[%c0_104, %c0_105] : memref<108x5xf32, #tpu.memory_space<vmem>>, vector<108x5xf32>
    %cst_106 = arith.constant dense<0.000000e+00> : vector<2x5xf32>
    %158 = tpu.matmul %156, %157, %cst_106 {dimension_numbers = #tpu.dot_dimension_numbers<[1], [0], [0], [1], [0, 0, 1, 1], [], []>} : vector<2x108xf32>, vector<108x5xf32>, vector<2x5xf32> -> vector<2x5xf32>
    %c0_107 = arith.constant 0 : index
    %c0_108 = arith.constant 0 : index
    %159 = vector.load %arg9[%c0_107, %c0_108] : memref<1x5xf32, #tpu.memory_space<vmem>>, vector<1x5xf32>
    %160 = vector.broadcast %159 : vector<1x5xf32> to vector<2x5xf32>
    %161 = arith.addf %158, %160 : vector<2x5xf32>
    %c0_109 = arith.constant 0 : index
    %c0_110 = arith.constant 0 : index
    %162 = vector.load %arg10[%c0_109, %c0_110] : memref<2x5xf32, #tpu.memory_space<vmem>>, vector<2x5xf32>
    tpu.vector_store %arg10[%c0_109, %c0_110], %161 {strides = array<i32>} : memref<2x5xf32, #tpu.memory_space<vmem>>, vector<2x5xf32>,
    return
  }
  func.func @transform_0(%arg0: i32) -> (i32, i32, i32) {
    %c0_i32 = arith.constant 0 : i32
    %c0_i32_0 = arith.constant 0 : i32
    %c0_i32_1 = arith.constant 0 : i32
    %c0_i32_2 = arith.constant 0 : i32
    return %c0_i32, %c0_i32_0, %c0_i32_1 : i32, i32, i32
  }
  func.func @transform_1(%arg0: i32) -> (i32, i32) {
    %c0_i32 = arith.constant 0 : i32
    %c0_i32_0 = arith.constant 0 : i32
    %c0_i32_1 = arith.constant 0 : i32
    return %c0_i32, %c0_i32_0 : i32, i32
  }
  func.func @transform_2(%arg0: i32) -> (i32, i32) {
    %c0_i32 = arith.constant 0 : i32
    %c0_i32_0 = arith.constant 0 : i32
    %c0_i32_1 = arith.constant 0 : i32
    return %c0_i32, %c0_i32_0 : i32, i32
  }
  func.func @transform_3(%arg0: i32) -> (i32, i32, i32) {
    %c0_i32 = arith.constant 0 : i32
    %c0_i32_0 = arith.constant 0 : i32
    %c0_i32_1 = arith.constant 0 : i32
    %c0_i32_2 = arith.constant 0 : i32
    return %c0_i32, %c0_i32_0, %c0_i32_1 : i32, i32, i32
  }
  func.func @transform_4(%arg0: i32) -> (i32, i32) {
    %c0_i32 = arith.constant 0 : i32
    %c0_i32_0 = arith.constant 0 : i32
    %c0_i32_1 = arith.constant 0 : i32
    return %c0_i32, %c0_i32_0 : i32, i32
  }
  func.func @transform_5(%arg0: i32) -> (i32, i32) {
    %c0_i32 = arith.constant 0 : i32
    %c0_i32_0 = arith.constant 0 : i32
    %c0_i32_1 = arith.constant 0 : i32
    return %c0_i32, %c0_i32_0 : i32, i32
  }
  func.func @transform_6(%arg0: i32) -> (i32, i32) {
    %c0_i32 = arith.constant 0 : i32
    %c0_i32_0 = arith.constant 0 : i32
    %c0_i32_1 = arith.constant 0 : i32
    return %c0_i32, %c0_i32_0 : i32, i32
  }
  func.func @transform_7(%arg0: i32) -> (i32, i32) {
    %c0_i32 = arith.constant 0 : i32
    %c0_i32_0 = arith.constant 0 : i32
    %c0_i32_1 = arith.constant 0 : i32
    return %c0_i32, %c0_i32_0 : i32, i32
  }
  func.func @transform_8(%arg0: i32) -> (i32, i32) {
    %c0_i32 = arith.constant 0 : i32
    %c0_i32_0 = arith.constant 0 : i32
    %c0_i32_1 = arith.constant 0 : i32
    return %c0_i32, %c0_i32_0 : i32, i32
  }
  func.func @transform_9(%arg0: i32) -> (i32, i32) {
    %c0_i32 = arith.constant 0 : i32
    %c0_i32_0 = arith.constant 0 : i32
    %c0_i32_1 = arith.constant 0 : i32
    return %c0_i32, %c0_i32_0 : i32, i32
  }
}

</mosaic_0001>

<llo_original>
// kernel: cnn_forward.2
$region0: #{cnn_forward.2}
  #allocation0 [shape = 'u32[]', space=smem, size = 0x4, offset = 0x4, fixed_abs, tag = 'smem constant byte address 0x4 - core index']
  #allocation1 [shape = 'u32[144,128]{1,0:T(1,128)}', space=vmem, size = 0x12000, scoped, tag = 'internal scratch']
  %s0 = inlined_call_operand.vmem [shape: f32[4,36,1058], index: 0, kind: input, shape index: {}]
  %s1 = inlined_call_operand.vmem [shape: f32[6,36], index: 1, kind: input, shape index: {}]
  %s2 = inlined_call_operand.vmem [shape: f32[6,1], index: 2, kind: input, shape index: {}]
  %s3 = inlined_call_operand.vmem [shape: f32[6,1058], index: 3, kind: output, shape index: {}]
  %s4 = sld [smem:[#allocation0]]
  $region22: #{cnn_forward.2} parent=0
    _
  %s6 = ssub.s32 1, %s4
  %s7 = scalar_select 0, %s6, %s4
  // Predicated region
  $region2: #{cnn_forward.2} parent=0 // pred_check
    _
  $region3: #{cnn_forward.2} parent=0 // pred_check_branch
    %9 = sbr.rel (0) target = $region5
  $region4: #{cnn_forward.2} parent=0 // pred_region
    _
  $region5: #{cnn_forward.2} parent=0 // pred_fallthru
    _
  // Predicated region
  $region6: #{cnn_forward.2} parent=0 // pred_check
    _
  $region7: #{cnn_forward.2} parent=0 // pred_check_branch
    %11 = sbr.rel (0) target = $region9
  $region8: #{cnn_forward.2} parent=0 // pred_region
    _
  $region9: #{cnn_forward.2} parent=0 // pred_fallthru
    _
  // Predicated region
  $region10: #{cnn_forward.2} parent=0 // pred_check
    _
  $region11: #{cnn_forward.2} parent=0 // pred_check_branch
    %13 = sbr.rel (0) target = $region13
  $region12: #{cnn_forward.2} parent=0 // pred_region
    _
  $region13: #{cnn_forward.2} parent=0 // pred_fallthru
    _
  %v14 = vld [vmem:[%s1] sm:$0x3f]
  %v15 = vld [vmem:[%s0] sm:$0xff]
  %v16 = vld [vmem:[%s0 + $0x8] sm:$0xff]
  %v17 = vld [vmem:[%s0 + $0x10] sm:$0xff]
  %v18 = vld [vmem:[%s0 + $0x18] sm:$0xff]
  %v19 = vld [vmem:[%s0 + $0x20] sm:$0xff]
  %v20 = vld [vmem:[%s0 + $0x28] sm:$0xff]
  %v21 = vld [vmem:[%s0 + $0x30] sm:$0xff]
  %v22 = vld [vmem:[%s0 + $0x38] sm:$0xff]
  %v23 = vld [vmem:[%s0 + $0x40] sm:$0xff]
  %v24 = vld [vmem:[%s0 + $0x48] sm:$0xff]
  %v25 = vld [vmem:[%s0 + $0x50] sm:$0xff]
  %v26 = vld [vmem:[%s0 + $0x58] sm:$0xff]
  %v27 = vld [vmem:[%s0 + $0x60] sm:$0xff]
  %v28 = vld [vmem:[%s0 + $0x68] sm:$0xff]
  %v29 = vld [vmem:[%s0 + $0x70] sm:$0xff]
  %v30 = vld [vmem:[%s0 + $0x78] sm:$0xff]
  %v31 = vld [vmem:[%s0 + $0x80] sm:$0xff]
  %v32 = vld [vmem:[%s0 + $0x88] sm:$0xff]
  %v33 = vld [vmem:[%s0 + $0x90] sm:$0xff]
  %v34 = vld [vmem:[%s0 + $0x98] sm:$0xff]
  %v35 = vld [vmem:[%s0 + $0xa0] sm:$0xff]
  %v36 = vld [vmem:[%s0 + $0xa8] sm:$0xff]
  %v37 = vld [vmem:[%s0 + $0xb0] sm:$0xff]
  %v38 = vld [vmem:[%s0 + $0xb8] sm:$0xff]
  %v39 = vld [vmem:[%s0 + $0xc0] sm:$0xff]
  %v40 = vld [vmem:[%s0 + $0xc8] sm:$0xff]
  %v41 = vld [vmem:[%s0 + $0xd0] sm:$0xff]
  %v42 = vld [vmem:[%s0 + $0xd8] sm:$0xff]
  %v43 = vld [vmem:[%s0 + $0xe0] sm:$0xff]
  %v44 = vld [vmem:[%s0 + $0xe8] sm:$0xff]
  %v45 = vld [vmem:[%s0 + $0xf0] sm:$0xff]
  %v46 = vld [vmem:[%s0 + $0xf8] sm:$0xff]
  %v47 = vld [vmem:[%s0 + $0x100] sm:$0xff]
  %v48 = vld [vmem:[%s0 + $0x108] sm:$0xff]
  %v49 = vld [vmem:[%s0 + $0x110] sm:$0xff]
  %v50 = vld [vmem:[%s0 + $0x118] sm:$0xff]
  %v51 = vld [vmem:[%s0 + $0x120] sm:$0xf]
  %v52 = vld [vmem:[%s0 + $0x128] sm:$0xf]
  %v53 = vld [vmem:[%s0 + $0x130] sm:$0xf]
  %v54 = vld [vmem:[%s0 + $0x138] sm:$0xf]
  %v55 = vld [vmem:[%s0 + $0x140] sm:$0xf]
  %v56 = vld [vmem:[%s0 + $0x148] sm:$0xf]
  %v57 = vld [vmem:[%s0 + $0x150] sm:$0xf]
  %v58 = vld [vmem:[%s0 + $0x158] sm:$0xf]
  %v59 = vld [vmem:[%s0 + $0x160] sm:$0xf]
  %vm60 = vcmask 293888
  %v62 = vsel %vm60, %v14, 0
  %vm64 = vcmask 1043456
  %v66 = vsel %vm64, %v51, 0
  %v69 = vsel %vm64, %v52, 0
  %v72 = vsel %vm64, %v53, 0
  %v75 = vsel %vm64, %v54, 0
  %v78 = vsel %vm64, %v55, 0
  %v81 = vsel %vm64, %v56, 0
  %v84 = vsel %vm64, %v57, 0
  %v87 = vsel %vm64, %v58, 0
  %v90 = vsel %vm64, %v59, 0
  %92 = vmatprep.subr.mxu0 0.0
  %93 = vmatpush1.msra.mxu0 0.0
  %94 = vmatprep.subr.mxu0 0.0
  %95 = vmatpush1.msra.mxu0 0.0
  %96 = vmatprep.subr.mxu0 0.0
  %97 = vmatpush1.msra.mxu0 0.0
  %98 = vmatprep.subr.mxu0 0.0
  %99 = vmatpush1.msra.mxu0 0.0
  %100 = vmatprep.subr.mxu0 0.0
  %101 = vmatpush1.msra.mxu0 0.0
  %102 = vmatprep.subr.mxu0 0.0
  %103 = vmatpush1.msra.mxu0 0.0
  %104 = vmatprep.subr.mxu0 0.0
  %105 = vmatpush1.msra.mxu0 0.0
  %106 = vmatprep.subr.mxu0 0.0
  %107 = vmatpush1.msra.mxu0 0.0
  %108 = vmatprep.subr.mxu0 0.0
  %109 = vmatpush1.msra.mxu0 0.0
  %110 = vmatprep.subr.mxu0 0.0
  %111 = vmatpush1.msra.mxu0 0.0
  %112 = vmatprep.subr.mxu0 0.0
  %113 = vmatpush1.msra.mxu0 0.0
  %114 = vmatprep.subr.mxu0 %v69
  %115 = vmatpush1.msra.mxu0 %v66
  %116 = vmatprep.subr.mxu0 %v43
  %117 = vmatpush1.msra.mxu0 %v42
  %118 = vmatprep.subr.mxu0 %v34
  %119 = vmatpush1.msra.mxu0 %v33
  %120 = vmatprep.subr.mxu0 %v25
  %121 = vmatpush1.msra.mxu0 %v24
  %122 = vmatprep.subr.mxu0 %v16
  %123 = vmatpush1.msra.mxu0 %v15
  %124 = vmatprep.subr.mxu0 0.0
  %125 = vmatpush2.msra.mxu0 0.0
  %126 = vmatprep.subr.mxu0 0.0
  %127 = vmatpush2.msra.mxu0 0.0
  %128 = vmatprep.subr.mxu0 0.0
  %129 = vmatpush2.msra.mxu0 0.0
  %130 = vmatprep.subr.mxu0 0.0
  %131 = vmatpush2.msra.mxu0 0.0
  %132 = vmatprep.subr.mxu0 0.0
  %133 = vmatpush2.msra.mxu0 0.0
  %134 = vmatprep.subr.mxu0 0.0
  %135 = vmatpush2.msra.mxu0 0.0
  %136 = vmatprep.subr.mxu0 0.0
  %137 = vmatpush2.msra.mxu0 0.0
  %138 = vmatprep.subr.mxu0 0.0
  %139 = vmatpush2.msra.mxu0 0.0
  %140 = vmatprep.subr.mxu0 0.0
  %141 = vmatpush2.msra.mxu0 0.0
  %142 = vmatprep.subr.mxu0 0.0
  %143 = vmatpush2.msra.mxu0 0.0
  %144 = vmatprep.subr.mxu0 0.0
  %145 = vmatpush2.msra.mxu0 0.0
  %146 = vmatprep.subr.mxu0 0.0
  %147 = vmatpush2.msra.mxu0 0.0
  %148 = vmatprep.subr.mxu0 0.0
  %149 = vmatpush2.msra.mxu0 0.0
  %150 = vmatprep.subr.mxu0 0.0
  %151 = vmatpush2.msra.mxu0 0.0
  %152 = vmatprep.subr.mxu0 0.0
  %153 = vmatpush2.msra.mxu0 0.0
  %154 = vmatprep.subr.mxu0 0.0
  %155 = vmatpush2.msra.mxu0 0.0
  %156 = vmatprep.mubr.f32.mxu0 0.0
  %157 = vmatmul.mubr.f32.gmra.mxu0 %v62
  %v158 = vpop.f32.mrf.mxu0
  %v159 = vadd.f32 0.0, %v158
  %v160 = vpop.f32.mrf.mxu0
  %v161 = vadd.f32 0.0, %v160
  %162 = vdwg.mxu0
  %163 = vmatprep.subr.mxu0 0.0
  %164 = vmatpush1.msra.mxu0 0.0
  %165 = vmatprep.subr.mxu0 0.0
  %166 = vmatpush1.msra.mxu0 0.0
  %167 = vmatprep.subr.mxu0 0.0
  %168 = vmatpush1.msra.mxu0 0.0
  %169 = vmatprep.subr.mxu0 0.0
  %170 = vmatpush1.msra.mxu0 0.0
  %171 = vmatprep.subr.mxu0 0.0
  %172 = vmatpush1.msra.mxu0 0.0
  %173 = vmatprep.subr.mxu0 0.0
  %174 = vmatpush1.msra.mxu0 0.0
  %175 = vmatprep.subr.mxu0 0.0
  %176 = vmatpush1.msra.mxu0 0.0
  %177 = vmatprep.subr.mxu0 0.0
  %178 = vmatpush1.msra.mxu0 0.0
  %179 = vmatprep.subr.mxu0 0.0
  %180 = vmatpush1.msra.mxu0 0.0
  %181 = vmatprep.subr.mxu0 0.0
  %182 = vmatpush1.msra.mxu0 0.0
  %183 = vmatprep.subr.mxu0 0.0
  %184 = vmatpush1.msra.mxu0 0.0
  %185 = vmatprep.subr.mxu0 %v75
  %186 = vmatpush1.msra.mxu0 %v72
  %187 = vmatprep.subr.mxu0 %v45
  %188 = vmatpush1.msra.mxu0 %v44
  %189 = vmatprep.subr.mxu0 %v36
  %190 = vmatpush1.msra.mxu0 %v35
  %191 = vmatprep.subr.mxu0 %v27
  %192 = vmatpush1.msra.mxu0 %v26
  %193 = vmatprep.subr.mxu0 %v18
  %194 = vmatpush1.msra.mxu0 %v17
  %195 = vmatprep.subr.mxu0 0.0
  %196 = vmatpush2.msra.mxu0 0.0
  %197 = vmatprep.subr.mxu0 0.0
  %198 = vmatpush2.msra.mxu0 0.0
  %199 = vmatprep.subr.mxu0 0.0
  %200 = vmatpush2.msra.mxu0 0.0
  %201 = vmatprep.subr.mxu0 0.0
  %202 = vmatpush2.msra.mxu0 0.0
  %203 = vmatprep.subr.mxu0 0.0
  %204 = vmatpush2.msra.mxu0 0.0
  %205 = vmatprep.subr.mxu0 0.0
  %206 = vmatpush2.msra.mxu0 0.0
  %207 = vmatprep.subr.mxu0 0.0
  %208 = vmatpush2.msra.mxu0 0.0
  %209 = vmatprep.subr.mxu0 0.0
  %210 = vmatpush2.msra.mxu0 0.0
  %211 = vmatprep.subr.mxu0 0.0
  %212 = vmatpush2.msra.mxu0 0.0
  %213 = vmatprep.subr.mxu0 0.0
  %214 = vmatpush2.msra.mxu0 0.0
  %215 = vmatprep.subr.mxu0 0.0
  %216 = vmatpush2.msra.mxu0 0.0
  %217 = vmatprep.subr.mxu0 0.0
  %218 = vmatpush2.msra.mxu0 0.0
  %219 = vmatprep.subr.mxu0 0.0
  %220 = vmatpush2.msra.mxu0 0.0
  %221 = vmatprep.subr.mxu0 0.0
  %222 = vmatpush2.msra.mxu0 0.0
  %223 = vmatprep.subr.mxu0 0.0
  %224 = vmatpush2.msra.mxu0 0.0
  %225 = vmatprep.subr.mxu0 0.0
  %226 = vmatpush2.msra.mxu0 0.0
  %227 = vmatprep.mubr.f32.mxu0 0.0
  %228 = vmatmul.mubr.f32.gmra.mxu0 %v62
  %v229 = vpop.f32.mrf.mxu0
  %v230 = vadd.f32 0.0, %v229
  %v231 = vpop.f32.mrf.mxu0
  %v232 = vadd.f32 0.0, %v231
  %233 = vdwg.mxu0
  %234 = vmatprep.subr.mxu0 0.0
  %235 = vmatpush1.msra.mxu0 0.0
  %236 = vmatprep.subr.mxu0 0.0
  %237 = vmatpush1.msra.mxu0 0.0
  %238 = vmatprep.subr.mxu0 0.0
  %239 = vmatpush1.msra.mxu0 0.0
  %240 = vmatprep.subr.mxu0 0.0
  %241 = vmatpush1.msra.mxu0 0.0
  %242 = vmatprep.subr.mxu0 0.0
  %243 = vmatpush1.msra.mxu0 0.0
  %244 = vmatprep.subr.mxu0 0.0
  %245 = vmatpush1.msra.mxu0 0.0
  %246 = vmatprep.subr.mxu0 0.0
  %247 = vmatpush1.msra.mxu0 0.0
  %248 = vmatprep.subr.mxu0 0.0
  %249 = vmatpush1.msra.mxu0 0.0
  %250 = vmatprep.subr.mxu0 0.0
  %251 = vmatpush1.msra.mxu0 0.0
  %252 = vmatprep.subr.mxu0 0.0
  %253 = vmatpush1.msra.mxu0 0.0
  %254 = vmatprep.subr.mxu0 0.0
  %255 = vmatpush1.msra.mxu0 0.0
  %256 = vmatprep.subr.mxu0 %v81
  %257 = vmatpush1.msra.mxu0 %v78
  %258 = vmatprep.subr.mxu0 %v47
  %259 = vmatpush1.msra.mxu0 %v46
  %260 = vmatprep.subr.mxu0 %v38
  %261 = vmatpush1.msra.mxu0 %v37
  %262 = vmatprep.subr.mxu0 %v29
  %263 = vmatpush1.msra.mxu0 %v28
  %264 = vmatprep.subr.mxu0 %v20
  %265 = vmatpush1.msra.mxu0 %v19
  %266 = vmatprep.subr.mxu0 0.0
  %267 = vmatpush2.msra.mxu0 0.0
  %268 = vmatprep.subr.mxu0 0.0
  %269 = vmatpush2.msra.mxu0 0.0
  %270 = vmatprep.subr.mxu0 0.0
  %271 = vmatpush2.msra.mxu0 0.0
  %272 = vmatprep.subr.mxu0 0.0
  %273 = vmatpush2.msra.mxu0 0.0
  %274 = vmatprep.subr.mxu0 0.0
  %275 = vmatpush2.msra.mxu0 0.0
  %276 = vmatprep.subr.mxu0 0.0
  %277 = vmatpush2.msra.mxu0 0.0
  %278 = vmatprep.subr.mxu0 0.0
  %279 = vmatpush2.msra.mxu0 0.0
  %280 = vmatprep.subr.mxu0 0.0
  %281 = vmatpush2.msra.mxu0 0.0
  %282 = vmatprep.subr.mxu0 0.0
  %283 = vmatpush2.msra.mxu0 0.0
  %284 = vmatprep.subr.mxu0 0.0
  %285 = vmatpush2.msra.mxu0 0.0
  %286 = vmatprep.subr.mxu0 0.0
  %287 = vmatpush2.msra.mxu0 0.0
  %288 = vmatprep.subr.mxu0 0.0
  %289 = vmatpush2.msra.mxu0 0.0
  %290 = vmatprep.subr.mxu0 0.0
  %291 = vmatpush2.msra.mxu0 0.0
  %292 = vmatprep.subr.mxu0 0.0
  %293 = vmatpush2.msra.mxu0 0.0
  %294 = vmatprep.subr.mxu0 0.0
  %295 = vmatpush2.msra.mxu0 0.0
  %296 = vmatprep.subr.mxu0 0.0
  %297 = vmatpush2.msra.mxu0 0.0
  %298 = vmatprep.mubr.f32.mxu0 0.0
  %299 = vmatmul.mubr.f32.gmra.mxu0 %v62
  %v300 = vpop.f32.mrf.mxu0
  %v301 = vadd.f32 0.0, %v300
  %v302 = vpop.f32.mrf.mxu0
  %v303 = vadd.f32 0.0, %v302
  %304 = vdwg.mxu0
  %305 = vmatprep.subr.mxu0 0.0
  %306 = vmatpush1.msra.mxu0 0.0
  %307 = vmatprep.subr.mxu0 0.0
  %308 = vmatpush1.msra.mxu0 0.0
  %309 = vmatprep.subr.mxu0 0.0
  %310 = vmatpush1.msra.mxu0 0.0
  %311 = vmatprep.subr.mxu0 0.0
  %312 = vmatpush1.msra.mxu0 0.0
  %313 = vmatprep.subr.mxu0 0.0
  %314 = vmatpush1.msra.mxu0 0.0
  %315 = vmatprep.subr.mxu0 0.0
  %316 = vmatpush1.msra.mxu0 0.0
  %317 = vmatprep.subr.mxu0 0.0
  %318 = vmatpush1.msra.mxu0 0.0
  %319 = vmatprep.subr.mxu0 0.0
  %320 = vmatpush1.msra.mxu0 0.0
  %321 = vmatprep.subr.mxu0 0.0
  %322 = vmatpush1.msra.mxu0 0.0
  %323 = vmatprep.subr.mxu0 0.0
  %324 = vmatpush1.msra.mxu0 0.0
  %325 = vmatprep.subr.mxu0 0.0
  %326 = vmatpush1.msra.mxu0 0.0
  %327 = vmatprep.subr.mxu0 %v87
  %328 = vmatpush1.msra.mxu0 %v84
  %329 = vmatprep.subr.mxu0 %v49
  %330 = vmatpush1.msra.mxu0 %v48
  %331 = vmatprep.subr.mxu0 %v40
  %332 = vmatpush1.msra.mxu0 %v39
  %333 = vmatprep.subr.mxu0 %v31
  %334 = vmatpush1.msra.mxu0 %v30
  %335 = vmatprep.subr.mxu0 %v22
  %336 = vmatpush1.msra.mxu0 %v21
  %337 = vmatprep.subr.mxu0 0.0
  %338 = vmatpush2.msra.mxu0 0.0
  %339 = vmatprep.subr.mxu0 0.0
  %340 = vmatpush2.msra.mxu0 0.0
  %341 = vmatprep.subr.mxu0 0.0
  %342 = vmatpush2.msra.mxu0 0.0
  %343 = vmatprep.subr.mxu0 0.0
  %344 = vmatpush2.msra.mxu0 0.0
  %345 = vmatprep.subr.mxu0 0.0
  %346 = vmatpush2.msra.mxu0 0.0
  %347 = vmatprep.subr.mxu0 0.0
  %348 = vmatpush2.msra.mxu0 0.0
  %349 = vmatprep.subr.mxu0 0.0
  %350 = vmatpush2.msra.mxu0 0.0
  %351 = vmatprep.subr.mxu0 0.0
  %352 = vmatpush2.msra.mxu0 0.0
  %353 = vmatprep.subr.mxu0 0.0
  %354 = vmatpush2.msra.mxu0 0.0
  %355 = vmatprep.subr.mxu0 0.0
  %356 = vmatpush2.msra.mxu0 0.0
  %357 = vmatprep.subr.mxu0 0.0
  %358 = vmatpush2.msra.mxu0 0.0
  %359 = vmatprep.subr.mxu0 0.0
  %360 = vmatpush2.msra.mxu0 0.0
  %361 = vmatprep.subr.mxu0 0.0
  %362 = vmatpush2.msra.mxu0 0.0
  %363 = vmatprep.subr.mxu0 0.0
  %364 = vmatpush2.msra.mxu0 0.0
  %365 = vmatprep.subr.mxu0 0.0
  %366 = vmatpush2.msra.mxu0 0.0
  %367 = vmatprep.subr.mxu0 0.0
  %368 = vmatpush2.msra.mxu0 0.0
  %369 = vmatprep.mubr.f32.mxu0 0.0
  %370 = vmatmul.mubr.f32.gmra.mxu0 %v62
  %v371 = vpop.f32.mrf.mxu0
  %v372 = vadd.f32 0.0, %v371
  %v373 = vpop.f32.mrf.mxu0
  %v374 = vadd.f32 0.0, %v373
  %375 = vdwg.mxu0
  %376 = vmatprep.subr.mxu0 0.0
  %377 = vmatpush1.msra.mxu0 0.0
  %378 = vmatprep.subr.mxu0 0.0
  %379 = vmatpush1.msra.mxu0 0.0
  %380 = vmatprep.subr.mxu0 0.0
  %381 = vmatpush1.msra.mxu0 0.0
  %382 = vmatprep.subr.mxu0 0.0
  %383 = vmatpush1.msra.mxu0 0.0
  %384 = vmatprep.subr.mxu0 0.0
  %385 = vmatpush1.msra.mxu0 0.0
  %386 = vmatprep.subr.mxu0 0.0
  %387 = vmatpush1.msra.mxu0 0.0
  %388 = vmatprep.subr.mxu0 0.0
  %389 = vmatpush1.msra.mxu0 0.0
  %390 = vmatprep.subr.mxu0 0.0
  %391 = vmatpush1.msra.mxu0 0.0
  %392 = vmatprep.subr.mxu0 0.0
  %393 = vmatpush1.msra.mxu0 0.0
  %394 = vmatprep.subr.mxu0 0.0
  %395 = vmatpush1.msra.mxu0 0.0
  %396 = vmatprep.subr.mxu0 0.0
  %397 = vmatpush1.msra.mxu0 0.0
  %398 = vmatprep.subr.mxu0 0.0
  %399 = vmatpush1.msra.mxu0 %v90
  %400 = vmatprep.subr.mxu0 0.0
  %401 = vmatpush1.msra.mxu0 %v50
  %402 = vmatprep.subr.mxu0 0.0
  %403 = vmatpush1.msra.mxu0 %v41
  %404 = vmatprep.subr.mxu0 0.0
  %405 = vmatpush1.msra.mxu0 %v32
  %406 = vmatprep.subr.mxu0 0.0
  %407 = vmatpush1.msra.mxu0 %v23
  %408 = vmatprep.subr.mxu0 0.0
  %409 = vmatpush2.msra.mxu0 0.0
  %410 = vmatprep.subr.mxu0 0.0
  %411 = vmatpush2.msra.mxu0 0.0
  %412 = vmatprep.subr.mxu0 0.0
  %413 = vmatpush2.msra.mxu0 0.0
  %414 = vmatprep.subr.mxu0 0.0
  %415 = vmatpush2.msra.mxu0 0.0
  %416 = vmatprep.subr.mxu0 0.0
  %417 = vmatpush2.msra.mxu0 0.0
  %418 = vmatprep.subr.mxu0 0.0
  %419 = vmatpush2.msra.mxu0 0.0
  %420 = vmatprep.subr.mxu0 0.0
  %421 = vmatpush2.msra.mxu0 0.0
  %422 = vmatprep.subr.mxu0 0.0
  %423 = vmatpush2.msra.mxu0 0.0
  %424 = vmatprep.subr.mxu0 0.0
  %425 = vmatpush2.msra.mxu0 0.0
  %426 = vmatprep.subr.mxu0 0.0
  %427 = vmatpush2.msra.mxu0 0.0
  %428 = vmatprep.subr.mxu0 0.0
  %429 = vmatpush2.msra.mxu0 0.0
  %430 = vmatprep.subr.mxu0 0.0
  %431 = vmatpush2.msra.mxu0 0.0
  %432 = vmatprep.subr.mxu0 0.0
  %433 = vmatpush2.msra.mxu0 0.0
  %434 = vmatprep.subr.mxu0 0.0
  %435 = vmatpush2.msra.mxu0 0.0
  %436 = vmatprep.subr.mxu0 0.0
  %437 = vmatpush2.msra.mxu0 0.0
  %438 = vmatprep.subr.mxu0 0.0
  %439 = vmatpush2.msra.mxu0 0.0
  %440 = vmatprep.mubr.f32.mxu0 0.0
  %441 = vmatmul.mubr.f32.gmra.mxu0 %v62
  %v442 = vpop.f32.mrf.mxu0
  %v443 = vadd.f32 0.0, %v442
  %v444 = vpop.f32.mrf.mxu0
  %445 = vdwg.mxu0
  %s446 = scalar_lea.vmem %s0, 360
  %v447 = vld [vmem:[%s446] sm:$0xff]
  %v448 = vld [vmem:[%s446 + $0x8] sm:$0xff]
  %v449 = vld [vmem:[%s446 + $0x10] sm:$0xff]
  %v450 = vld [vmem:[%s446 + $0x18] sm:$0xff]
  %v451 = vld [vmem:[%s446 + $0x20] sm:$0xff]
  %v452 = vld [vmem:[%s446 + $0x28] sm:$0xff]
  %v453 = vld [vmem:[%s446 + $0x30] sm:$0xff]
  %v454 = vld [vmem:[%s446 + $0x38] sm:$0xff]
  %v455 = vld [vmem:[%s446 + $0x40] sm:$0xff]
  %v456 = vld [vmem:[%s446 + $0x48] sm:$0xff]
  %v457 = vld [vmem:[%s446 + $0x50] sm:$0xff]
  %v458 = vld [vmem:[%s446 + $0x58] sm:$0xff]
  %v459 = vld [vmem:[%s446 + $0x60] sm:$0xff]
  %v460 = vld [vmem:[%s446 + $0x68] sm:$0xff]
  %v461 = vld [vmem:[%s446 + $0x70] sm:$0xff]
  %v462 = vld [vmem:[%s446 + $0x78] sm:$0xff]
  %v463 = vld [vmem:[%s446 + $0x80] sm:$0xff]
  %v464 = vld [vmem:[%s446 + $0x88] sm:$0xff]
  %v465 = vld [vmem:[%s446 + $0x90] sm:$0xff]
  %v466 = vld [vmem:[%s446 + $0x98] sm:$0xff]
  %v467 = vld [vmem:[%s446 + $0xa0] sm:$0xff]
  %v468 = vld [vmem:[%s446 + $0xa8] sm:$0xff]
  %v469 = vld [vmem:[%s446 + $0xb0] sm:$0xff]
  %v470 = vld [vmem:[%s446 + $0xb8] sm:$0xff]
  %v471 = vld [vmem:[%s446 + $0xc0] sm:$0xff]
  %v472 = vld [vmem:[%s446 + $0xc8] sm:$0xff]
  %v473 = vld [vmem:[%s446 + $0xd0] sm:$0xff]
  %v474 = vld [vmem:[%s446 + $0xd8] sm:$0xff]
  %v475 = vld [vmem:[%s446 + $0xe0] sm:$0xff]
  %v476 = vld [vmem:[%s446 + $0xe8] sm:$0xff]
  %v477 = vld [vmem:[%s446 + $0xf0] sm:$0xff]
  %v478 = vld [vmem:[%s446 + $0xf8] sm:$0xff]
  %v479 = vld [vmem:[%s446 + $0x100] sm:$0xff]
  %v480 = vld [vmem:[%s446 + $0x108] sm:$0xff]
  %v481 = vld [vmem:[%s446 + $0x110] sm:$0xff]
  %v482 = vld [vmem:[%s446 + $0x118] sm:$0xff]
  %v483 = vld [vmem:[%s446 + $0x120] sm:$0xf]
  %v484 = vld [vmem:[%s446 + $0x128] sm:$0xf]
  %v485 = vld [vmem:[%s446 + $0x130] sm:$0xf]
  %v486 = vld [vmem:[%s446 + $0x138] sm:$0xf]
  %v487 = vld [vmem:[%s446 + $0x140] sm:$0xf]
  %v488 = vld [vmem:[%s446 + $0x148] sm:$0xf]
  %v489 = vld [vmem:[%s446 + $0x150] sm:$0xf]
  %v490 = vld [vmem:[%s446 + $0x158] sm:$0xf]
  %v491 = vld [vmem:[%s446 + $0x160] sm:$0xf]
  %v493 = vsel %vm64, %v483, 0
  %v496 = vsel %vm64, %v484, 0
  %v499 = vsel %vm64, %v485, 0
  %v502 = vsel %vm64, %v486, 0
  %v505 = vsel %vm64, %v487, 0
  %v508 = vsel %vm64, %v488, 0
  %v511 = vsel %vm64, %v489, 0
  %v514 = vsel %vm64, %v490, 0
  %v517 = vsel %vm64, %v491, 0
  %519 = vmatprep.subr.mxu0 0.0
  %520 = vmatpush1.msra.mxu0 0.0
  %521 = vmatprep.subr.mxu0 0.0
  %522 = vmatpush1.msra.mxu0 0.0
  %523 = vmatprep.subr.mxu0 0.0
  %524 = vmatpush1.msra.mxu0 0.0
  %525 = vmatprep.subr.mxu0 0.0
  %526 = vmatpush1.msra.mxu0 0.0
  %527 = vmatprep.subr.mxu0 0.0
  %528 = vmatpush1.msra.mxu0 0.0
  %529 = vmatprep.subr.mxu0 0.0
  %530 = vmatpush1.msra.mxu0 0.0
  %531 = vmatprep.subr.mxu0 0.0
  %532 = vmatpush1.msra.mxu0 0.0
  %533 = vmatprep.subr.mxu0 0.0
  %534 = vmatpush1.msra.mxu0 0.0
  %535 = vmatprep.subr.mxu0 0.0
  %536 = vmatpush1.msra.mxu0 0.0
  %537 = vmatprep.subr.mxu0 0.0
  %538 = vmatpush1.msra.mxu0 0.0
  %539 = vmatprep.subr.mxu0 0.0
  %540 = vmatpush1.msra.mxu0 0.0
  %541 = vmatprep.subr.mxu0 %v496
  %542 = vmatpush1.msra.mxu0 %v493
  %543 = vmatprep.subr.mxu0 %v475
  %544 = vmatpush1.msra.mxu0 %v474
  %545 = vmatprep.subr.mxu0 %v466
  %546 = vmatpush1.msra.mxu0 %v465
  %547 = vmatprep.subr.mxu0 %v457
  %548 = vmatpush1.msra.mxu0 %v456
  %549 = vmatprep.subr.mxu0 %v448
  %550 = vmatpush1.msra.mxu0 %v447
  %551 = vmatprep.subr.mxu0 0.0
  %552 = vmatpush2.msra.mxu0 0.0
  %553 = vmatprep.subr.mxu0 0.0
  %554 = vmatpush2.msra.mxu0 0.0
  %555 = vmatprep.subr.mxu0 0.0
  %556 = vmatpush2.msra.mxu0 0.0
  %557 = vmatprep.subr.mxu0 0.0
  %558 = vmatpush2.msra.mxu0 0.0
  %559 = vmatprep.subr.mxu0 0.0
  %560 = vmatpush2.msra.mxu0 0.0
  %561 = vmatprep.subr.mxu0 0.0
  %562 = vmatpush2.msra.mxu0 0.0
  %563 = vmatprep.subr.mxu0 0.0
  %564 = vmatpush2.msra.mxu0 0.0
  %565 = vmatprep.subr.mxu0 0.0
  %566 = vmatpush2.msra.mxu0 0.0
  %567 = vmatprep.subr.mxu0 0.0
  %568 = vmatpush2.msra.mxu0 0.0
  %569 = vmatprep.subr.mxu0 0.0
  %570 = vmatpush2.msra.mxu0 0.0
  %571 = vmatprep.subr.mxu0 0.0
  %572 = vmatpush2.msra.mxu0 0.0
  %573 = vmatprep.subr.mxu0 0.0
  %574 = vmatpush2.msra.mxu0 0.0
  %575 = vmatprep.subr.mxu0 0.0
  %576 = vmatpush2.msra.mxu0 0.0
  %577 = vmatprep.subr.mxu0 0.0
  %578 = vmatpush2.msra.mxu0 0.0
  %579 = vmatprep.subr.mxu0 0.0
  %580 = vmatpush2.msra.mxu0 0.0
  %581 = vmatprep.subr.mxu0 0.0
  %582 = vmatpush2.msra.mxu0 0.0
  %583 = vmatprep.mubr.f32.mxu0 0.0
  %584 = vmatmul.mubr.f32.gmra.mxu0 %v62
  %v585 = vpop.f32.mrf.mxu0
  %v586 = vadd.f32 0.0, %v585
  %v587 = vpop.f32.mrf.mxu0
  %v588 = vadd.f32 0.0, %v587
  %589 = vdwg.mxu0
  %590 = vmatprep.subr.mxu0 0.0
  %591 = vmatpush1.msra.mxu0 0.0
  %592 = vmatprep.subr.mxu0 0.0
  %593 = vmatpush1.msra.mxu0 0.0
  %594 = vmatprep.subr.mxu0 0.0
  %595 = vmatpush1.msra.mxu0 0.0
  %596 = vmatprep.subr.mxu0 0.0
  %597 = vmatpush1.msra.mxu0 0.0
  %598 = vmatprep.subr.mxu0 0.0
  %599 = vmatpush1.msra.mxu0 0.0
  %600 = vmatprep.subr.mxu0 0.0
  %601 = vmatpush1.msra.mxu0 0.0
  %602 = vmatprep.subr.mxu0 0.0
  %603 = vmatpush1.msra.mxu0 0.0
  %604 = vmatprep.subr.mxu0 0.0
  %605 = vmatpush1.msra.mxu0 0.0
  %606 = vmatprep.subr.mxu0 0.0
  %607 = vmatpush1.msra.mxu0 0.0
  %608 = vmatprep.subr.mxu0 0.0
  %609 = vmatpush1.msra.mxu0 0.0
  %610 = vmatprep.subr.mxu0 0.0
  %611 = vmatpush1.msra.mxu0 0.0
  %612 = vmatprep.subr.mxu0 %v502
  %613 = vmatpush1.msra.mxu0 %v499
  %614 = vmatprep.subr.mxu0 %v477
  %615 = vmatpush1.msra.mxu0 %v476
  %616 = vmatprep.subr.mxu0 %v468
  %617 = vmatpush1.msra.mxu0 %v467
  %618 = vmatprep.subr.mxu0 %v459
  %619 = vmatpush1.msra.mxu0 %v458
  %620 = vmatprep.subr.mxu0 %v450
  %621 = vmatpush1.msra.mxu0 %v449
  %622 = vmatprep.subr.mxu0 0.0
  %623 = vmatpush2.msra.mxu0 0.0
  %624 = vmatprep.subr.mxu0 0.0
  %625 = vmatpush2.msra.mxu0 0.0
  %626 = vmatprep.subr.mxu0 0.0
  %627 = vmatpush2.msra.mxu0 0.0
  %628 = vmatprep.subr.mxu0 0.0
  %629 = vmatpush2.msra.mxu0 0.0
  %630 = vmatprep.subr.mxu0 0.0
  %631 = vmatpush2.msra.mxu0 0.0
  %632 = vmatprep.subr.mxu0 0.0
  %633 = vmatpush2.msra.mxu0 0.0
  %634 = vmatprep.subr.mxu0 0.0
  %635 = vmatpush2.msra.mxu0 0.0
  %636 = vmatprep.subr.mxu0 0.0
  %637 = vmatpush2.msra.mxu0 0.0
  %638 = vmatprep.subr.mxu0 0.0
  %639 = vmatpush2.msra.mxu0 0.0
  %640 = vmatprep.subr.mxu0 0.0
  %641 = vmatpush2.msra.mxu0 0.0
  %642 = vmatprep.subr.mxu0 0.0
  %643 = vmatpush2.msra.mxu0 0.0
  %644 = vmatprep.subr.mxu0 0.0
  %645 = vmatpush2.msra.mxu0 0.0
  %646 = vmatprep.subr.mxu0 0.0
  %647 = vmatpush2.msra.mxu0 0.0
  %648 = vmatprep.subr.mxu0 0.0
  %649 = vmatpush2.msra.mxu0 0.0
  %650 = vmatprep.subr.mxu0 0.0
  %651 = vmatpush2.msra.mxu0 0.0
  %652 = vmatprep.subr.mxu0 0.0
  %653 = vmatpush2.msra.mxu0 0.0
  %654 = vmatprep.mubr.f32.mxu0 0.0
  %655 = vmatmul.mubr.f32.gmra.mxu0 %v62
  %v656 = vpop.f32.mrf.mxu0
  %v657 = vadd.f32 0.0, %v656
  %v658 = vpop.f32.mrf.mxu0
  %v659 = vadd.f32 0.0, %v658
  %660 = vdwg.mxu0
  %661 = vmatprep.subr.mxu0 0.0
  %662 = vmatpush1.msra.mxu0 0.0
  %663 = vmatprep.subr.mxu0 0.0
  %664 = vmatpush1.msra.mxu0 0.0
  %665 = vmatprep.subr.mxu0 0.0
  %666 = vmatpush1.msra.mxu0 0.0
  %667 = vmatprep.subr.mxu0 0.0
  %668 = vmatpush1.msra.mxu0 0.0
  %669 = vmatprep.subr.mxu0 0.0
  %670 = vmatpush1.msra.mxu0 0.0
  %671 = vmatprep.subr.mxu0 0.0
  %672 = vmatpush1.msra.mxu0 0.0
  %673 = vmatprep.subr.mxu0 0.0
  %674 = vmatpush1.msra.mxu0 0.0
  %675 = vmatprep.subr.mxu0 0.0
  %676 = vmatpush1.msra.mxu0 0.0
  %677 = vmatprep.subr.mxu0 0.0
  %678 = vmatpush1.msra.mxu0 0.0
  %679 = vmatprep.subr.mxu0 0.0
  %680 = vmatpush1.msra.mxu0 0.0
  %681 = vmatprep.subr.mxu0 0.0
  %682 = vmatpush1.msra.mxu0 0.0
  %683 = vmatprep.subr.mxu0 %v508
  %684 = vmatpush1.msra.mxu0 %v505
  %685 = vmatprep.subr.mxu0 %v479
  %686 = vmatpush1.msra.mxu0 %v478
  %687 = vmatprep.subr.mxu0 %v470
  %688 = vmatpush1.msra.mxu0 %v469
  %689 = vmatprep.subr.mxu0 %v461
  %690 = vmatpush1.msra.mxu0 %v460
  %691 = vmatprep.subr.mxu0 %v452
  %692 = vmatpush1.msra.mxu0 %v451
  %693 = vmatprep.subr.mxu0 0.0
  %694 = vmatpush2.msra.mxu0 0.0
  %695 = vmatprep.subr.mxu0 0.0
  %696 = vmatpush2.msra.mxu0 0.0
  %697 = vmatprep.subr.mxu0 0.0
  %698 = vmatpush2.msra.mxu0 0.0
  %699 = vmatprep.subr.mxu0 0.0
  %700 = vmatpush2.msra.mxu0 0.0
  %701 = vmatprep.subr.mxu0 0.0
  %702 = vmatpush2.msra.mxu0 0.0
  %703 = vmatprep.subr.mxu0 0.0
  %704 = vmatpush2.msra.mxu0 0.0
  %705 = vmatprep.subr.mxu0 0.0
  %706 = vmatpush2.msra.mxu0 0.0
  %707 = vmatprep.subr.mxu0 0.0
  %708 = vmatpush2.msra.mxu0 0.0
  %709 = vmatprep.subr.mxu0 0.0
  %710 = vmatpush2.msra.mxu0 0.0
  %711 = vmatprep.subr.mxu0 0.0
  %712 = vmatpush2.msra.mxu0 0.0
  %713 = vmatprep.subr.mxu0 0.0
  %714 = vmatpush2.msra.mxu0 0.0
  %715 = vmatprep.subr.mxu0 0.0
  %716 = vmatpush2.msra.mxu0 0.0
  %717 = vmatprep.subr.mxu0 0.0
  %718 = vmatpush2.msra.mxu0 0.0
  %719 = vmatprep.subr.mxu0 0.0
  %720 = vmatpush2.msra.mxu0 0.0
  %721 = vmatprep.subr.mxu0 0.0
  %722 = vmatpush2.msra.mxu0 0.0
  %723 = vmatprep.subr.mxu0 0.0
  %724 = vmatpush2.msra.mxu0 0.0
  %725 = vmatprep.mubr.f32.mxu0 0.0
  %726 = vmatmul.mubr.f32.gmra.mxu0 %v62
  %v727 = vpop.f32.mrf.mxu0
  %v728 = vadd.f32 0.0, %v727
  %v729 = vpop.f32.mrf.mxu0
  %v730 = vadd.f32 0.0, %v729
  %731 = vdwg.mxu0
  %732 = vmatprep.subr.mxu0 0.0
  %733 = vmatpush1.msra.mxu0 0.0
  %734 = vmatprep.subr.mxu0 0.0
  %735 = vmatpush1.msra.mxu0 0.0
  %736 = vmatprep.subr.mxu0 0.0
  %737 = vmatpush1.msra.mxu0 0.0
  %738 = vmatprep.subr.mxu0 0.0
  %739 = vmatpush1.msra.mxu0 0.0
  %740 = vmatprep.subr.mxu0 0.0
  %741 = vmatpush1.msra.mxu0 0.0
  %742 = vmatprep.subr.mxu0 0.0
  %743 = vmatpush1.msra.mxu0 0.0
  %744 = vmatprep.subr.mxu0 0.0
  %745 = vmatpush1.msra.mxu0 0.0
  %746 = vmatprep.subr.mxu0 0.0
  %747 = vmatpush1.msra.mxu0 0.0
  %748 = vmatprep.subr.mxu0 0.0
  %749 = vmatpush1.msra.mxu0 0.0
  %750 = vmatprep.subr.mxu0 0.0
  %751 = vmatpush1.msra.mxu0 0.0
  %752 = vmatprep.subr.mxu0 0.0
  %753 = vmatpush1.msra.mxu0 0.0
  %754 = vmatprep.subr.mxu0 %v514
  %755 = vmatpush1.msra.mxu0 %v511
  %756 = vmatprep.subr.mxu0 %v481
  %757 = vmatpush1.msra.mxu0 %v480
  %758 = vmatprep.subr.mxu0 %v472
  %759 = vmatpush1.msra.mxu0 %v471
  %760 = vmatprep.subr.mxu0 %v463
  %761 = vmatpush1.msra.mxu0 %v462
  %762 = vmatprep.subr.mxu0 %v454
  %763 = vmatpush1.msra.mxu0 %v453
  %764 = vmatprep.subr.mxu0 0.0
  %765 = vmatpush2.msra.mxu0 0.0
  %766 = vmatprep.subr.mxu0 0.0
  %767 = vmatpush2.msra.mxu0 0.0
  %768 = vmatprep.subr.mxu0 0.0
  %769 = vmatpush2.msra.mxu0 0.0
  %770 = vmatprep.subr.mxu0 0.0
  %771 = vmatpush2.msra.mxu0 0.0
  %772 = vmatprep.subr.mxu0 0.0
  %773 = vmatpush2.msra.mxu0 0.0
  %774 = vmatprep.subr.mxu0 0.0
  %775 = vmatpush2.msra.mxu0 0.0
  %776 = vmatprep.subr.mxu0 0.0
  %777 = vmatpush2.msra.mxu0 0.0
  %778 = vmatprep.subr.mxu0 0.0
  %779 = vmatpush2.msra.mxu0 0.0
  %780 = vmatprep.subr.mxu0 0.0
  %781 = vmatpush2.msra.mxu0 0.0
  %782 = vmatprep.subr.mxu0 0.0
  %783 = vmatpush2.msra.mxu0 0.0
  %784 = vmatprep.subr.mxu0 0.0
  %785 = vmatpush2.msra.mxu0 0.0
  %786 = vmatprep.subr.mxu0 0.0
  %787 = vmatpush2.msra.mxu0 0.0
  %788 = vmatprep.subr.mxu0 0.0
  %789 = vmatpush2.msra.mxu0 0.0
  %790 = vmatprep.subr.mxu0 0.0
  %791 = vmatpush2.msra.mxu0 0.0
  %792 = vmatprep.subr.mxu0 0.0
  %793 = vmatpush2.msra.mxu0 0.0
  %794 = vmatprep.subr.mxu0 0.0
  %795 = vmatpush2.msra.mxu0 0.0
  %796 = vmatprep.mubr.f32.mxu0 0.0
  %797 = vmatmul.mubr.f32.gmra.mxu0 %v62
  %v798 = vpop.f32.mrf.mxu0
  %v799 = vadd.f32 0.0, %v798
  %v800 = vpop.f32.mrf.mxu0
  %v801 = vadd.f32 0.0, %v800
  %802 = vdwg.mxu0
  %803 = vmatprep.subr.mxu0 0.0
  %804 = vmatpush1.msra.mxu0 0.0
  %805 = vmatprep.subr.mxu0 0.0
  %806 = vmatpush1.msra.mxu0 0.0
  %807 = vmatprep.subr.mxu0 0.0
  %808 = vmatpush1.msra.mxu0 0.0
  %809 = vmatprep.subr.mxu0 0.0
  %810 = vmatpush1.msra.mxu0 0.0
  %811 = vmatprep.subr.mxu0 0.0
  %812 = vmatpush1.msra.mxu0 0.0
  %813 = vmatprep.subr.mxu0 0.0
  %814 = vmatpush1.msra.mxu0 0.0
  %815 = vmatprep.subr.mxu0 0.0
  %816 = vmatpush1.msra.mxu0 0.0
  %817 = vmatprep.subr.mxu0 0.0
  %818 = vmatpush1.msra.mxu0 0.0
  %819 = vmatprep.subr.mxu0 0.0
  %820 = vmatpush1.msra.mxu0 0.0
  %821 = vmatprep.subr.mxu0 0.0
  %822 = vmatpush1.msra.mxu0 0.0
  %823 = vmatprep.subr.mxu0 0.0
  %824 = vmatpush1.msra.mxu0 0.0
  %825 = vmatprep.subr.mxu0 0.0
  %826 = vmatpush1.msra.mxu0 %v517
  %827 = vmatprep.subr.mxu0 0.0
  %828 = vmatpush1.msra.mxu0 %v482
  %829 = vmatprep.subr.mxu0 0.0
  %830 = vmatpush1.msra.mxu0 %v473
  %831 = vmatprep.subr.mxu0 0.0
  %832 = vmatpush1.msra.mxu0 %v464
  %833 = vmatprep.subr.mxu0 0.0
  %834 = vmatpush1.msra.mxu0 %v455
  %835 = vmatprep.subr.mxu0 0.0
  %836 = vmatpush2.msra.mxu0 0.0
  %837 = vmatprep.subr.mxu0 0.0
  %838 = vmatpush2.msra.mxu0 0.0
  %839 = vmatprep.subr.mxu0 0.0
  %840 = vmatpush2.msra.mxu0 0.0
  %841 = vmatprep.subr.mxu0 0.0
  %842 = vmatpush2.msra.mxu0 0.0
  %843 = vmatprep.subr.mxu0 0.0
  %844 = vmatpush2.msra.mxu0 0.0
  %845 = vmatprep.subr.mxu0 0.0
  %846 = vmatpush2.msra.mxu0 0.0
  %847 = vmatprep.subr.mxu0 0.0
  %848 = vmatpush2.msra.mxu0 0.0
  %849 = vmatprep.subr.mxu0 0.0
  %850 = vmatpush2.msra.mxu0 0.0
  %851 = vmatprep.subr.mxu0 0.0
  %852 = vmatpush2.msra.mxu0 0.0
  %853 = vmatprep.subr.mxu0 0.0
  %854 = vmatpush2.msra.mxu0 0.0
  %855 = vmatprep.subr.mxu0 0.0
  %856 = vmatpush2.msra.mxu0 0.0
  %857 = vmatprep.subr.mxu0 0.0
  %858 = vmatpush2.msra.mxu0 0.0
  %859 = vmatprep.subr.mxu0 0.0
  %860 = vmatpush2.msra.mxu0 0.0
  %861 = vmatprep.subr.mxu0 0.0
  %862 = vmatpush2.msra.mxu0 0.0
  %863 = vmatprep.subr.mxu0 0.0
  %864 = vmatpush2.msra.mxu0 0.0
  %865 = vmatprep.subr.mxu0 0.0
  %866 = vmatpush2.msra.mxu0 0.0
  %867 = vmatprep.mubr.f32.mxu0 0.0
  %868 = vmatmul.mubr.f32.gmra.mxu0 %v62
  %v869 = vpop.f32.mrf.mxu0
  %v870 = vadd.f32 0.0, %v869
  %v871 = vpop.f32.mrf.mxu0
  %872 = vdwg.mxu0
  %v873 = vmax.f32 %v159, %v586
  %v874 = vmax.f32 %v161, %v588
  %v875 = vmax.f32 %v230, %v657
  %v876 = vmax.f32 %v232, %v659
  %v877 = vmax.f32 %v301, %v728
  %v878 = vmax.f32 %v303, %v730
  %v879 = vmax.f32 %v372, %v799
  %v880 = vmax.f32 %v374, %v801
  %v881 = vmax.f32 %v443, %v870
  %s882 = scalar_lea.vmem %s0, 720
  %v883 = vld [vmem:[%s882] sm:$0xff]
  %v884 = vld [vmem:[%s882 + $0x8] sm:$0xff]
  %v885 = vld [vmem:[%s882 + $0x10] sm:$0xff]
  %v886 = vld [vmem:[%s882 + $0x18] sm:$0xff]
  %v887 = vld [vmem:[%s882 + $0x20] sm:$0xff]
  %v888 = vld [vmem:[%s882 + $0x28] sm:$0xff]
  %v889 = vld [vmem:[%s882 + $0x30] sm:$0xff]
  %v890 = vld [vmem:[%s882 + $0x38] sm:$0xff]
  %v891 = vld [vmem:[%s882 + $0x40] sm:$0xff]
  %v892 = vld [vmem:[%s882 + $0x48] sm:$0xff]
  %v893 = vld [vmem:[%s882 + $0x50] sm:$0xff]
  %v894 = vld [vmem:[%s882 + $0x58] sm:$0xff]
  %v895 = vld [vmem:[%s882 + $0x60] sm:$0xff]
  %v896 = vld [vmem:[%s882 + $0x68] sm:$0xff]
  %v897 = vld [vmem:[%s882 + $0x70] sm:$0xff]
  %v898 = vld [vmem:[%s882 + $0x78] sm:$0xff]
  %v899 = vld [vmem:[%s882 + $0x80] sm:$0xff]
  %v900 = vld [vmem:[%s882 + $0x88] sm:$0xff]
  %v901 = vld [vmem:[%s882 + $0x90] sm:$0xff]
  %v902 = vld [vmem:[%s882 + $0x98] sm:$0xff]
  %v903 = vld [vmem:[%s882 + $0xa0] sm:$0xff]
  %v904 = vld [vmem:[%s882 + $0xa8] sm:$0xff]
  %v905 = vld [vmem:[%s882 + $0xb0] sm:$0xff]
  %v906 = vld [vmem:[%s882 + $0xb8] sm:$0xff]
  %v907 = vld [vmem:[%s882 + $0xc0] sm:$0xff]
  %v908 = vld [vmem:[%s882 + $0xc8] sm:$0xff]
  %v909 = vld [vmem:[%s882 + $0xd0] sm:$0xff]
  %v910 = vld [vmem:[%s882 + $0xd8] sm:$0xff]
  %v911 = vld [vmem:[%s882 + $0xe0] sm:$0xff]
  %v912 = vld [vmem:[%s882 + $0xe8] sm:$0xff]
  %v913 = vld [vmem:[%s882 + $0xf0] sm:$0xff]
  %v914 = vld [vmem:[%s882 + $0xf8] sm:$0xff]
  %v915 = vld [vmem:[%s882 + $0x100] sm:$0xff]
  %v916 = vld [vmem:[%s882 + $0x108] sm:$0xff]
  %v917 = vld [vmem:[%s882 + $0x110] sm:$0xff]
  %v918 = vld [vmem:[%s882 + $0x118] sm:$0xff]
  %v919 = vld [vmem:[%s882 + $0x120] sm:$0xf]
  %v920 = vld [vmem:[%s882 + $0x128] sm:$0xf]
  %v921 = vld [vmem:[%s882 + $0x130] sm:$0xf]
  %v922 = vld [vmem:[%s882 + $0x138] sm:$0xf]
  %v923 = vld [vmem:[%s882 + $0x140] sm:$0xf]
  %v924 = vld [vmem:[%s882 + $0x148] sm:$0xf]
  %v925 = vld [vmem:[%s882 + $0x150] sm:$0xf]
  %v926 = vld [vmem:[%s882 + $0x158] sm:$0xf]
  %v927 = vld [vmem:[%s882 + $0x160] sm:$0xf]
  %v929 = vsel %vm64, %v919, 0
  %v932 = vsel %vm64, %v920, 0
  %v935 = vsel %vm64, %v921, 0
  %v938 = vsel %vm64, %v922, 0
  %v941 = vsel %vm64, %v923, 0
  %v944 = vsel %vm64, %v924, 0
  %v947 = vsel %vm64, %v925, 0
  %v950 = vsel %vm64, %v926, 0
  %v953 = vsel %vm64, %v927, 0
  %955 = vmatprep.subr.mxu0 0.0
  %956 = vmatpush1.msra.mxu0 0.0
  %957 = vmatprep.subr.mxu0 0.0
  %958 = vmatpush1.msra.mxu0 0.0
  %959 = vmatprep.subr.mxu0 0.0
  %960 = vmatpush1.msra.mxu0 0.0
  %961 = vmatprep.subr.mxu0 0.0
  %962 = vmatpush1.msra.mxu0 0.0
  %963 = vmatprep.subr.mxu0 0.0
  %964 = vmatpush1.msra.mxu0 0.0
  %965 = vmatprep.subr.mxu0 0.0
  %966 = vmatpush1.msra.mxu0 0.0
  %967 = vmatprep.subr.mxu0 0.0
  %968 = vmatpush1.msra.mxu0 0.0
  %969 = vmatprep.subr.mxu0 0.0
  %970 = vmatpush1.msra.mxu0 0.0
  %971 = vmatprep.subr.mxu0 0.0
  %972 = vmatpush1.msra.mxu0 0.0
  %973 = vmatprep.subr.mxu0 0.0
  %974 = vmatpush1.msra.mxu0 0.0
  %975 = vmatprep.subr.mxu0 0.0
  %976 = vmatpush1.msra.mxu0 0.0
  %977 = vmatprep.subr.mxu0 %v932
  %978 = vmatpush1.msra.mxu0 %v929
  %979 = vmatprep.subr.mxu0 %v911
  %980 = vmatpush1.msra.mxu0 %v910
  %981 = vmatprep.subr.mxu0 %v902
  %982 = vmatpush1.msra.mxu0 %v901
  %983 = vmatprep.subr.mxu0 %v893
  %984 = vmatpush1.msra.mxu0 %v892
  %985 = vmatprep.subr.mxu0 %v884
  %986 = vmatpush1.msra.mxu0 %v883
  %987 = vmatprep.subr.mxu0 0.0
  %988 = vmatpush2.msra.mxu0 0.0
  %989 = vmatprep.subr.mxu0 0.0
  %990 = vmatpush2.msra.mxu0 0.0
  %991 = vmatprep.subr.mxu0 0.0
  %992 = vmatpush2.msra.mxu0 0.0
  %993 = vmatprep.subr.mxu0 0.0
  %994 = vmatpush2.msra.mxu0 0.0
  %995 = vmatprep.subr.mxu0 0.0
  %996 = vmatpush2.msra.mxu0 0.0
  %997 = vmatprep.subr.mxu0 0.0
  %998 = vmatpush2.msra.mxu0 0.0
  %999 = vmatprep.subr.mxu0 0.0
  %1000 = vmatpush2.msra.mxu0 0.0
  %1001 = vmatprep.subr.mxu0 0.0
  %1002 = vmatpush2.msra.mxu0 0.0
  %1003 = vmatprep.subr.mxu0 0.0
  %1004 = vmatpush2.msra.mxu0 0.0
  %1005 = vmatprep.subr.mxu0 0.0
  %1006 = vmatpush2.msra.mxu0 0.0
  %1007 = vmatprep.subr.mxu0 0.0
  %1008 = vmatpush2.msra.mxu0 0.0
  %1009 = vmatprep.subr.mxu0 0.0
  %1010 = vmatpush2.msra.mxu0 0.0
  %1011 = vmatprep.subr.mxu0 0.0
  %1012 = vmatpush2.msra.mxu0 0.0
  %1013 = vmatprep.subr.mxu0 0.0
  %1014 = vmatpush2.msra.mxu0 0.0
  %1015 = vmatprep.subr.mxu0 0.0
  %1016 = vmatpush2.msra.mxu0 0.0
  %1017 = vmatprep.subr.mxu0 0.0
  %1018 = vmatpush2.msra.mxu0 0.0
  %1019 = vmatprep.mubr.f32.mxu0 0.0
  %1020 = vmatmul.mubr.f32.gmra.mxu0 %v62
  %v1021 = vpop.f32.mrf.mxu0
  %v1022 = vadd.f32 0.0, %v1021
  %v1023 = vpop.f32.mrf.mxu0
  %v1024 = vadd.f32 0.0, %v1023
  %1025 = vdwg.mxu0
  %1026 = vmatprep.subr.mxu0 0.0
  %1027 = vmatpush1.msra.mxu0 0.0
  %1028 = vmatprep.subr.mxu0 0.0
  %1029 = vmatpush1.msra.mxu0 0.0
  %1030 = vmatprep.subr.mxu0 0.0
  %1031 = vmatpush1.msra.mxu0 0.0
  %1032 = vmatprep.subr.mxu0 0.0
  %1033 = vmatpush1.msra.mxu0 0.0
  %1034 = vmatprep.subr.mxu0 0.0
  %1035 = vmatpush1.msra.mxu0 0.0
  %1036 = vmatprep.subr.mxu0 0.0
  %1037 = vmatpush1.msra.mxu0 0.0
  %1038 = vmatprep.subr.mxu0 0.0
  %1039 = vmatpush1.msra.mxu0 0.0
  %1040 = vmatprep.subr.mxu0 0.0
  %1041 = vmatpush1.msra.mxu0 0.0
  %1042 = vmatprep.subr.mxu0 0.0
  %1043 = vmatpush1.msra.mxu0 0.0
  %1044 = vmatprep.subr.mxu0 0.0
  %1045 = vmatpush1.msra.mxu0 0.0
  %1046 = vmatprep.subr.mxu0 0.0
  %1047 = vmatpush1.msra.mxu0 0.0
  %1048 = vmatprep.subr.mxu0 %v938
  %1049 = vmatpush1.msra.mxu0 %v935
  %1050 = vmatprep.subr.mxu0 %v913
  %1051 = vmatpush1.msra.mxu0 %v912
  %1052 = vmatprep.subr.mxu0 %v904
  %1053 = vmatpush1.msra.mxu0 %v903
  %1054 = vmatprep.subr.mxu0 %v895
  %1055 = vmatpush1.msra.mxu0 %v894
  %1056 = vmatprep.subr.mxu0 %v886
  %1057 = vmatpush1.msra.mxu0 %v885
  %1058 = vmatprep.subr.mxu0 0.0
  %1059 = vmatpush2.msra.mxu0 0.0
  %1060 = vmatprep.subr.mxu0 0.0
  %1061 = vmatpush2.msra.mxu0 0.0
  %1062 = vmatprep.subr.mxu0 0.0
  %1063 = vmatpush2.msra.mxu0 0.0
  %1064 = vmatprep.subr.mxu0 0.0
  %1065 = vmatpush2.msra.mxu0 0.0
  %1066 = vmatprep.subr.mxu0 0.0
  %1067 = vmatpush2.msra.mxu0 0.0
  %1068 = vmatprep.subr.mxu0 0.0
  %1069 = vmatpush2.msra.mxu0 0.0
  %1070 = vmatprep.subr.mxu0 0.0
  %1071 = vmatpush2.msra.mxu0 0.0
  %1072 = vmatprep.subr.mxu0 0.0
  %1073 = vmatpush2.msra.mxu0 0.0
  %1074 = vmatprep.subr.mxu0 0.0
  %1075 = vmatpush2.msra.mxu0 0.0
  %1076 = vmatprep.subr.mxu0 0.0
  %1077 = vmatpush2.msra.mxu0 0.0
  %1078 = vmatprep.subr.mxu0 0.0
  %1079 = vmatpush2.msra.mxu0 0.0
  %1080 = vmatprep.subr.mxu0 0.0
  %1081 = vmatpush2.msra.mxu0 0.0
  %1082 = vmatprep.subr.mxu0 0.0
  %1083 = vmatpush2.msra.mxu0 0.0
  %1084 = vmatprep.subr.mxu0 0.0
  %1085 = vmatpush2.msra.mxu0 0.0
  %1086 = vmatprep.subr.mxu0 0.0
  %1087 = vmatpush2.msra.mxu0 0.0
  %1088 = vmatprep.subr.mxu0 0.0
  %1089 = vmatpush2.msra.mxu0 0.0
  %1090 = vmatprep.mubr.f32.mxu0 0.0
  %1091 = vmatmul.mubr.f32.gmra.mxu0 %v62
  %v1092 = vpop.f32.mrf.mxu0
  %v1093 = vadd.f32 0.0, %v1092
  %v1094 = vpop.f32.mrf.mxu0
  %v1095 = vadd.f32 0.0, %v1094
  %1096 = vdwg.mxu0
  %1097 = vmatprep.subr.mxu0 0.0
  %1098 = vmatpush1.msra.mxu0 0.0
  %1099 = vmatprep.subr.mxu0 0.0
  %1100 = vmatpush1.msra.mxu0 0.0
  %1101 = vmatprep.subr.mxu0 0.0
  %1102 = vmatpush1.msra.mxu0 0.0
  %1103 = vmatprep.subr.mxu0 0.0
  %1104 = vmatpush1.msra.mxu0 0.0
  %1105 = vmatprep.subr.mxu0 0.0
  %1106 = vmatpush1.msra.mxu0 0.0
  %1107 = vmatprep.subr.mxu0 0.0
  %1108 = vmatpush1.msra.mxu0 0.0
  %1109 = vmatprep.subr.mxu0 0.0
  %1110 = vmatpush1.msra.mxu0 0.0
  %1111 = vmatprep.subr.mxu0 0.0
  %1112 = vmatpush1.msra.mxu0 0.0
  %1113 = vmatprep.subr.mxu0 0.0
  %1114 = vmatpush1.msra.mxu0 0.0
  %1115 = vmatprep.subr.mxu0 0.0
  %1116 = vmatpush1.msra.mxu0 0.0
  %1117 = vmatprep.subr.mxu0 0.0
  %1118 = vmatpush1.msra.mxu0 0.0
  %1119 = vmatprep.subr.mxu0 %v944
  %1120 = vmatpush1.msra.mxu0 %v941
  %1121 = vmatprep.subr.mxu0 %v915
  %1122 = vmatpush1.msra.mxu0 %v914
  %1123 = vmatprep.subr.mxu0 %v906
  %1124 = vmatpush1.msra.mxu0 %v905
  %1125 = vmatprep.subr.mxu0 %v897
  %1126 = vmatpush1.msra.mxu0 %v896
  %1127 = vmatprep.subr.mxu0 %v888
  %1128 = vmatpush1.msra.mxu0 %v887
  %1129 = vmatprep.subr.mxu0 0.0
  %1130 = vmatpush2.msra.mxu0 0.0
  %1131 = vmatprep.subr.mxu0 0.0
  %1132 = vmatpush2.msra.mxu0 0.0
  %1133 = vmatprep.subr.mxu0 0.0
  %1134 = vmatpush2.msra.mxu0 0.0
  %1135 = vmatprep.subr.mxu0 0.0
  %1136 = vmatpush2.msra.mxu0 0.0
  %1137 = vmatprep.subr.mxu0 0.0
  %1138 = vmatpush2.msra.mxu0 0.0
  %1139 = vmatprep.subr.mxu0 0.0
  %1140 = vmatpush2.msra.mxu0 0.0
  %1141 = vmatprep.subr.mxu0 0.0
  %1142 = vmatpush2.msra.mxu0 0.0
  %1143 = vmatprep.subr.mxu0 0.0
  %1144 = vmatpush2.msra.mxu0 0.0
  %1145 = vmatprep.subr.mxu0 0.0
  %1146 = vmatpush2.msra.mxu0 0.0
  %1147 = vmatprep.subr.mxu0 0.0
  %1148 = vmatpush2.msra.mxu0 0.0
  %1149 = vmatprep.subr.mxu0 0.0
  %1150 = vmatpush2.msra.mxu0 0.0
  %1151 = vmatprep.subr.mxu0 0.0
  %1152 = vmatpush2.msra.mxu0 0.0
  %1153 = vmatprep.subr.mxu0 0.0
  %1154 = vmatpush2.msra.mxu0 0.0
  %1155 = vmatprep.subr.mxu0 0.0
  %1156 = vmatpush2.msra.mxu0 0.0
  %1157 = vmatprep.subr.mxu0 0.0
  %1158 = vmatpush2.msra.mxu0 0.0
  %1159 = vmatprep.subr.mxu0 0.0
  %1160 = vmatpush2.msra.mxu0 0.0
  %1161 = vmatprep.mubr.f32.mxu0 0.0
  %1162 = vmatmul.mubr.f32.gmra.mxu0 %v62
  %v1163 = vpop.f32.mrf.mxu0
  %v1164 = vadd.f32 0.0, %v1163
  %v1165 = vpop.f32.mrf.mxu0
  %v1166 = vadd.f32 0.0, %v1165
  %1167 = vdwg.mxu0
  %1168 = vmatprep.subr.mxu0 0.0
  %1169 = vmatpush1.msra.mxu0 0.0
  %1170 = vmatprep.subr.mxu0 0.0
  %1171 = vmatpush1.msra.mxu0 0.0
  %1172 = vmatprep.subr.mxu0 0.0
  %1173 = vmatpush1.msra.mxu0 0.0
  %1174 = vmatprep.subr.mxu0 0.0
  %1175 = vmatpush1.msra.mxu0 0.0
  %1176 = vmatprep.subr.mxu0 0.0
  %1177 = vmatpush1.msra.mxu0 0.0
  %1178 = vmatprep.subr.mxu0 0.0
  %1179 = vmatpush1.msra.mxu0 0.0
  %1180 = vmatprep.subr.mxu0 0.0
  %1181 = vmatpush1.msra.mxu0 0.0
  %1182 = vmatprep.subr.mxu0 0.0
  %1183 = vmatpush1.msra.mxu0 0.0
  %1184 = vmatprep.subr.mxu0 0.0
  %1185 = vmatpush1.msra.mxu0 0.0
  %1186 = vmatprep.subr.mxu0 0.0
  %1187 = vmatpush1.msra.mxu0 0.0
  %1188 = vmatprep.subr.mxu0 0.0
  %1189 = vmatpush1.msra.mxu0 0.0
  %1190 = vmatprep.subr.mxu0 %v950
  %1191 = vmatpush1.msra.mxu0 %v947
  %1192 = vmatprep.subr.mxu0 %v917
  %1193 = vmatpush1.msra.mxu0 %v916
  %1194 = vmatprep.subr.mxu0 %v908
  %1195 = vmatpush1.msra.mxu0 %v907
  %1196 = vmatprep.subr.mxu0 %v899
  %1197 = vmatpush1.msra.mxu0 %v898
  %1198 = vmatprep.subr.mxu0 %v890
  %1199 = vmatpush1.msra.mxu0 %v889
  %1200 = vmatprep.subr.mxu0 0.0
  %1201 = vmatpush2.msra.mxu0 0.0
  %1202 = vmatprep.subr.mxu0 0.0
  %1203 = vmatpush2.msra.mxu0 0.0
  %1204 = vmatprep.subr.mxu0 0.0
  %1205 = vmatpush2.msra.mxu0 0.0
  %1206 = vmatprep.subr.mxu0 0.0
  %1207 = vmatpush2.msra.mxu0 0.0
  %1208 = vmatprep.subr.mxu0 0.0
  %1209 = vmatpush2.msra.mxu0 0.0
  %1210 = vmatprep.subr.mxu0 0.0
  %1211 = vmatpush2.msra.mxu0 0.0
  %1212 = vmatprep.subr.mxu0 0.0
  %1213 = vmatpush2.msra.mxu0 0.0
  %1214 = vmatprep.subr.mxu0 0.0
  %1215 = vmatpush2.msra.mxu0 0.0
  %1216 = vmatprep.subr.mxu0 0.0
  %1217 = vmatpush2.msra.mxu0 0.0
  %1218 = vmatprep.subr.mxu0 0.0
  %1219 = vmatpush2.msra.mxu0 0.0
  %1220 = vmatprep.subr.mxu0 0.0
  %1221 = vmatpush2.msra.mxu0 0.0
  %1222 = vmatprep.subr.mxu0 0.0
  %1223 = vmatpush2.msra.mxu0 0.0
  %1224 = vmatprep.subr.mxu0 0.0
  %1225 = vmatpush2.msra.mxu0 0.0
  %1226 = vmatprep.subr.mxu0 0.0
  %1227 = vmatpush2.msra.mxu0 0.0
  %1228 = vmatprep.subr.mxu0 0.0
  %1229 = vmatpush2.msra.mxu0 0.0
  %1230 = vmatprep.subr.mxu0 0.0
  %1231 = vmatpush2.msra.mxu0 0.0
  %1232 = vmatprep.mubr.f32.mxu0 0.0
  %1233 = vmatmul.mubr.f32.gmra.mxu0 %v62
  %v1234 = vpop.f32.mrf.mxu0
  %v1235 = vadd.f32 0.0, %v1234
  %v1236 = vpop.f32.mrf.mxu0
  %v1237 = vadd.f32 0.0, %v1236
  %1238 = vdwg.mxu0
  %1239 = vmatprep.subr.mxu0 0.0
  %1240 = vmatpush1.msra.mxu0 0.0
  %1241 = vmatprep.subr.mxu0 0.0
  %1242 = vmatpush1.msra.mxu0 0.0
  %1243 = vmatprep.subr.mxu0 0.0
  %1244 = vmatpush1.msra.mxu0 0.0
  %1245 = vmatprep.subr.mxu0 0.0
  %1246 = vmatpush1.msra.mxu0 0.0
  %1247 = vmatprep.subr.mxu0 0.0
  %1248 = vmatpush1.msra.mxu0 0.0
  %1249 = vmatprep.subr.mxu0 0.0
  %1250 = vmatpush1.msra.mxu0 0.0
  %1251 = vmatprep.subr.mxu0 0.0
  %1252 = vmatpush1.msra.mxu0 0.0
  %1253 = vmatprep.subr.mxu0 0.0
  %1254 = vmatpush1.msra.mxu0 0.0
  %1255 = vmatprep.subr.mxu0 0.0
  %1256 = vmatpush1.msra.mxu0 0.0
  %1257 = vmatprep.subr.mxu0 0.0
  %1258 = vmatpush1.msra.mxu0 0.0
  %1259 = vmatprep.subr.mxu0 0.0
  %1260 = vmatpush1.msra.mxu0 0.0
  %1261 = vmatprep.subr.mxu0 0.0
  %1262 = vmatpush1.msra.mxu0 %v953
  %1263 = vmatprep.subr.mxu0 0.0
  %1264 = vmatpush1.msra.mxu0 %v918
  %1265 = vmatprep.subr.mxu0 0.0
  %1266 = vmatpush1.msra.mxu0 %v909
  %1267 = vmatprep.subr.mxu0 0.0
  %1268 = vmatpush1.msra.mxu0 %v900
  %1269 = vmatprep.subr.mxu0 0.0
  %1270 = vmatpush1.msra.mxu0 %v891
  %1271 = vmatprep.subr.mxu0 0.0
  %1272 = vmatpush2.msra.mxu0 0.0
  %1273 = vmatprep.subr.mxu0 0.0
  %1274 = vmatpush2.msra.mxu0 0.0
  %1275 = vmatprep.subr.mxu0 0.0
  %1276 = vmatpush2.msra.mxu0 0.0
  %1277 = vmatprep.subr.mxu0 0.0
  %1278 = vmatpush2.msra.mxu0 0.0
  %1279 = vmatprep.subr.mxu0 0.0
  %1280 = vmatpush2.msra.mxu0 0.0
  %1281 = vmatprep.subr.mxu0 0.0
  %1282 = vmatpush2.msra.mxu0 0.0
  %1283 = vmatprep.subr.mxu0 0.0
  %1284 = vmatpush2.msra.mxu0 0.0
  %1285 = vmatprep.subr.mxu0 0.0
  %1286 = vmatpush2.msra.mxu0 0.0
  %1287 = vmatprep.subr.mxu0 0.0
  %1288 = vmatpush2.msra.mxu0 0.0
  %1289 = vmatprep.subr.mxu0 0.0
  %1290 = vmatpush2.msra.mxu0 0.0
  %1291 = vmatprep.subr.mxu0 0.0
  %1292 = vmatpush2.msra.mxu0 0.0
  %1293 = vmatprep.subr.mxu0 0.0
  %1294 = vmatpush2.msra.mxu0 0.0
  %1295 = vmatprep.subr.mxu0 0.0
  %1296 = vmatpush2.msra.mxu0 0.0
  %1297 = vmatprep.subr.mxu0 0.0
  %1298 = vmatpush2.msra.mxu0 0.0
  %1299 = vmatprep.subr.mxu0 0.0
  %1300 = vmatpush2.msra.mxu0 0.0
  %1301 = vmatprep.subr.mxu0 0.0
  %1302 = vmatpush2.msra.mxu0 0.0
  %1303 = vmatprep.mubr.f32.mxu0 0.0
  %1304 = vmatmul.mubr.f32.gmra.mxu0 %v62
  %v1305 = vpop.f32.mrf.mxu0
  %v1306 = vadd.f32 0.0, %v1305
  %v1307 = vpop.f32.mrf.mxu0
  %1308 = vdwg.mxu0
  %v1309 = vmax.f32 %v873, %v1022
  %v1310 = vmax.f32 %v874, %v1024
  %v1311 = vmax.f32 %v875, %v1093
  %v1312 = vmax.f32 %v876, %v1095
  %v1313 = vmax.f32 %v877, %v1164
  %v1314 = vmax.f32 %v878, %v1166
  %v1315 = vmax.f32 %v879, %v1235
  %v1316 = vmax.f32 %v880, %v1237
  %v1317 = vmax.f32 %v881, %v1306
  %s1318 = scalar_lea.vmem %s0, 1080
  %v1319 = vld [vmem:[%s1318] sm:$0xff]
  %v1320 = vld [vmem:[%s1318 + $0x8] sm:$0xff]
  %v1321 = vld [vmem:[%s1318 + $0x10] sm:$0xff]
  %v1322 = vld [vmem:[%s1318 + $0x18] sm:$0xff]
  %v1323 = vld [vmem:[%s1318 + $0x20] sm:$0xff]
  %v1324 = vld [vmem:[%s1318 + $0x28] sm:$0xff]
  %v1325 = vld [vmem:[%s1318 + $0x30] sm:$0xff]
  %v1326 = vld [vmem:[%s1318 + $0x38] sm:$0xff]
  %v1327 = vld [vmem:[%s1318 + $0x40] sm:$0xff]
  %v1328 = vld [vmem:[%s1318 + $0x48] sm:$0xff]
  %v1329 = vld [vmem:[%s1318 + $0x50] sm:$0xff]
  %v1330 = vld [vmem:[%s1318 + $0x58] sm:$0xff]
  %v1331 = vld [vmem:[%s1318 + $0x60] sm:$0xff]
  %v1332 = vld [vmem:[%s1318 + $0x68] sm:$0xff]
  %v1333 = vld [vmem:[%s1318 + $0x70] sm:$0xff]
  %v1334 = vld [vmem:[%s1318 + $0x78] sm:$0xff]
  %v1335 = vld [vmem:[%s1318 + $0x80] sm:$0xff]
  %v1336 = vld [vmem:[%s1318 + $0x88] sm:$0xff]
  %v1337 = vld [vmem:[%s1318 + $0x90] sm:$0xff]
  %v1338 = vld [vmem:[%s1318 + $0x98] sm:$0xff]
  %v1339 = vld [vmem:[%s1318 + $0xa0] sm:$0xff]
  %v1340 = vld [vmem:[%s1318 + $0xa8] sm:$0xff]
  %v1341 = vld [vmem:[%s1318 + $0xb0] sm:$0xff]
  %v1342 = vld [vmem:[%s1318 + $0xb8] sm:$0xff]
  %v1343 = vld [vmem:[%s1318 + $0xc0] sm:$0xff]
  %v1344 = vld [vmem:[%s1318 + $0xc8] sm:$0xff]
  %v1345 = vld [vmem:[%s1318 + $0xd0] sm:$0xff]
  %v1346 = vld [vmem:[%s1318 + $0xd8] sm:$0xff]
  %v1347 = vld [vmem:[%s1318 + $0xe0] sm:$0xff]
  %v1348 = vld [vmem:[%s1318 + $0xe8] sm:$0xff]
  %v1349 = vld [vmem:[%s1318 + $0xf0] sm:$0xff]
  %v1350 = vld [vmem:[%s1318 + $0xf8] sm:$0xff]
  %v1351 = vld [vmem:[%s1318 + $0x100] sm:$0xff]
  %v1352 = vld [vmem:[%s1318 + $0x108] sm:$0xff]
  %v1353 = vld [vmem:[%s1318 + $0x110] sm:$0xff]
  %v1354 = vld [vmem:[%s1318 + $0x118] sm:$0xff]
  %v1355 = vld [vmem:[%s1318 + $0x120] sm:$0xf]
  %v1356 = vld [vmem:[%s1318 + $0x128] sm:$0xf]
  %v1357 = vld [vmem:[%s1318 + $0x130] sm:$0xf]
  %v1358 = vld [vmem:[%s1318 + $0x138] sm:$0xf]
  %v1359 = vld [vmem:[%s1318 + $0x140] sm:$0xf]
  %v1360 = vld [vmem:[%s1318 + $0x148] sm:$0xf]
  %v1361 = vld [vmem:[%s1318 + $0x150] sm:$0xf]
  %v1362 = vld [vmem:[%s1318 + $0x158] sm:$0xf]
  %v1363 = vld [vmem:[%s1318 + $0x160] sm:$0xf]
  %v1365 = vsel %vm64, %v1355, 0
  %v1368 = vsel %vm64, %v1356, 0
  %v1371 = vsel %vm64, %v1357, 0
  %v1374 = vsel %vm64, %v1358, 0
  %v1377 = vsel %vm64, %v1359, 0
  %v1380 = vsel %vm64, %v1360, 0
  %v1383 = vsel %vm64, %v1361, 0
  %v1386 = vsel %vm64, %v1362, 0
  %v1389 = vsel %vm64, %v1363, 0
  %1391 = vmatprep.subr.mxu0 0.0
  %1392 = vmatpush1.msra.mxu0 0.0
  %1393 = vmatprep.subr.mxu0 0.0
  %1394 = vmatpush1.msra.mxu0 0.0
  %1395 = vmatprep.subr.mxu0 0.0
  %1396 = vmatpush1.msra.mxu0 0.0
  %1397 = vmatprep.subr.mxu0 0.0
  %1398 = vmatpush1.msra.mxu0 0.0
  %1399 = vmatprep.subr.mxu0 0.0
  %1400 = vmatpush1.msra.mxu0 0.0
  %1401 = vmatprep.subr.mxu0 0.0
  %1402 = vmatpush1.msra.mxu0 0.0
  %1403 = vmatprep.subr.mxu0 0.0
  %1404 = vmatpush1.msra.mxu0 0.0
  %1405 = vmatprep.subr.mxu0 0.0
  %1406 = vmatpush1.msra.mxu0 0.0
  %1407 = vmatprep.subr.mxu0 0.0
  %1408 = vmatpush1.msra.mxu0 0.0
  %1409 = vmatprep.subr.mxu0 0.0
  %1410 = vmatpush1.msra.mxu0 0.0
  %1411 = vmatprep.subr.mxu0 0.0
  %1412 = vmatpush1.msra.mxu0 0.0
  %1413 = vmatprep.subr.mxu0 %v1368
  %1414 = vmatpush1.msra.mxu0 %v1365
  %1415 = vmatprep.subr.mxu0 %v1347
  %1416 = vmatpush1.msra.mxu0 %v1346
  %1417 = vmatprep.subr.mxu0 %v1338
  %1418 = vmatpush1.msra.mxu0 %v1337
  %1419 = vmatprep.subr.mxu0 %v1329
  %1420 = vmatpush1.msra.mxu0 %v1328
  %1421 = vmatprep.subr.mxu0 %v1320
  %1422 = vmatpush1.msra.mxu0 %v1319
  %1423 = vmatprep.subr.mxu0 0.0
  %1424 = vmatpush2.msra.mxu0 0.0
  %1425 = vmatprep.subr.mxu0 0.0
  %1426 = vmatpush2.msra.mxu0 0.0
  %1427 = vmatprep.subr.mxu0 0.0
  %1428 = vmatpush2.msra.mxu0 0.0
  %1429 = vmatprep.subr.mxu0 0.0
  %1430 = vmatpush2.msra.mxu0 0.0
  %1431 = vmatprep.subr.mxu0 0.0
  %1432 = vmatpush2.msra.mxu0 0.0
  %1433 = vmatprep.subr.mxu0 0.0
  %1434 = vmatpush2.msra.mxu0 0.0
  %1435 = vmatprep.subr.mxu0 0.0
  %1436 = vmatpush2.msra.mxu0 0.0
  %1437 = vmatprep.subr.mxu0 0.0
  %1438 = vmatpush2.msra.mxu0 0.0
  %1439 = vmatprep.subr.mxu0 0.0
  %1440 = vmatpush2.msra.mxu0 0.0
  %1441 = vmatprep.subr.mxu0 0.0
  %1442 = vmatpush2.msra.mxu0 0.0
  %1443 = vmatprep.subr.mxu0 0.0
  %1444 = vmatpush2.msra.mxu0 0.0
  %1445 = vmatprep.subr.mxu0 0.0
  %1446 = vmatpush2.msra.mxu0 0.0
  %1447 = vmatprep.subr.mxu0 0.0
  %1448 = vmatpush2.msra.mxu0 0.0
  %1449 = vmatprep.subr.mxu0 0.0
  %1450 = vmatpush2.msra.mxu0 0.0
  %1451 = vmatprep.subr.mxu0 0.0
  %1452 = vmatpush2.msra.mxu0 0.0
  %1453 = vmatprep.subr.mxu0 0.0
  %1454 = vmatpush2.msra.mxu0 0.0
  %1455 = vmatprep.mubr.f32.mxu0 0.0
  %1456 = vmatmul.mubr.f32.gmra.mxu0 %v62
  %v1457 = vpop.f32.mrf.mxu0
  %v1458 = vadd.f32 0.0, %v1457
  %v1459 = vpop.f32.mrf.mxu0
  %v1460 = vadd.f32 0.0, %v1459
  %1461 = vdwg.mxu0
  %1462 = vmatprep.subr.mxu0 0.0
  %1463 = vmatpush1.msra.mxu0 0.0
  %1464 = vmatprep.subr.mxu0 0.0
  %1465 = vmatpush1.msra.mxu0 0.0
  %1466 = vmatprep.subr.mxu0 0.0
  %1467 = vmatpush1.msra.mxu0 0.0
  %1468 = vmatprep.subr.mxu0 0.0
  %1469 = vmatpush1.msra.mxu0 0.0
  %1470 = vmatprep.subr.mxu0 0.0
  %1471 = vmatpush1.msra.mxu0 0.0
  %1472 = vmatprep.subr.mxu0 0.0
  %1473 = vmatpush1.msra.mxu0 0.0
  %1474 = vmatprep.subr.mxu0 0.0
  %1475 = vmatpush1.msra.mxu0 0.0
  %1476 = vmatprep.subr.mxu0 0.0
  %1477 = vmatpush1.msra.mxu0 0.0
  %1478 = vmatprep.subr.mxu0 0.0
  %1479 = vmatpush1.msra.mxu0 0.0
  %1480 = vmatprep.subr.mxu0 0.0
  %1481 = vmatpush1.msra.mxu0 0.0
  %1482 = vmatprep.subr.mxu0 0.0
  %1483 = vmatpush1.msra.mxu0 0.0
  %1484 = vmatprep.subr.mxu0 %v1374
  %1485 = vmatpush1.msra.mxu0 %v1371
  %1486 = vmatprep.subr.mxu0 %v1349
  %1487 = vmatpush1.msra.mxu0 %v1348
  %1488 = vmatprep.subr.mxu0 %v1340
  %1489 = vmatpush1.msra.mxu0 %v1339
  %1490 = vmatprep.subr.mxu0 %v1331
  %1491 = vmatpush1.msra.mxu0 %v1330
  %1492 = vmatprep.subr.mxu0 %v1322
  %1493 = vmatpush1.msra.mxu0 %v1321
  %1494 = vmatprep.subr.mxu0 0.0
  %1495 = vmatpush2.msra.mxu0 0.0
  %1496 = vmatprep.subr.mxu0 0.0
  %1497 = vmatpush2.msra.mxu0 0.0
  %1498 = vmatprep.subr.mxu0 0.0
  %1499 = vmatpush2.msra.mxu0 0.0
  %1500 = vmatprep.subr.mxu0 0.0
  %1501 = vmatpush2.msra.mxu0 0.0
  %1502 = vmatprep.subr.mxu0 0.0
  %1503 = vmatpush2.msra.mxu0 0.0
  %1504 = vmatprep.subr.mxu0 0.0
  %1505 = vmatpush2.msra.mxu0 0.0
  %1506 = vmatprep.subr.mxu0 0.0
  %1507 = vmatpush2.msra.mxu0 0.0
  %1508 = vmatprep.subr.mxu0 0.0
  %1509 = vmatpush2.msra.mxu0 0.0
  %1510 = vmatprep.subr.mxu0 0.0
  %1511 = vmatpush2.msra.mxu0 0.0
  %1512 = vmatprep.subr.mxu0 0.0
  %1513 = vmatpush2.msra.mxu0 0.0
  %1514 = vmatprep.subr.mxu0 0.0
  %1515 = vmatpush2.msra.mxu0 0.0
  %1516 = vmatprep.subr.mxu0 0.0
  %1517 = vmatpush2.msra.mxu0 0.0
  %1518 = vmatprep.subr.mxu0 0.0
  %1519 = vmatpush2.msra.mxu0 0.0
  %1520 = vmatprep.subr.mxu0 0.0
  %1521 = vmatpush2.msra.mxu0 0.0
  %1522 = vmatprep.subr.mxu0 0.0
  %1523 = vmatpush2.msra.mxu0 0.0
  %1524 = vmatprep.subr.mxu0 0.0
  %1525 = vmatpush2.msra.mxu0 0.0
  %1526 = vmatprep.mubr.f32.mxu0 0.0
  %1527 = vmatmul.mubr.f32.gmra.mxu0 %v62
  %v1528 = vpop.f32.mrf.mxu0
  %v1529 = vadd.f32 0.0, %v1528
  %v1530 = vpop.f32.mrf.mxu0
  %v1531 = vadd.f32 0.0, %v1530
  %1532 = vdwg.mxu0
  %1533 = vmatprep.subr.mxu0 0.0
  %1534 = vmatpush1.msra.mxu0 0.0
  %1535 = vmatprep.subr.mxu0 0.0
  %1536 = vmatpush1.msra.mxu0 0.0
  %1537 = vmatprep.subr.mxu0 0.0
  %1538 = vmatpush1.msra.mxu0 0.0
  %1539 = vmatprep.subr.mxu0 0.0
  %1540 = vmatpush1.msra.mxu0 0.0
  %1541 = vmatprep.subr.mxu0 0.0
  %1542 = vmatpush1.msra.mxu0 0.0
  %1543 = vmatprep.subr.mxu0 0.0
  %1544 = vmatpush1.msra.mxu0 0.0
  %1545 = vmatprep.subr.mxu0 0.0
  %1546 = vmatpush1.msra.mxu0 0.0
  %1547 = vmatprep.subr.mxu0 0.0
  %1548 = vmatpush1.msra.mxu0 0.0
  %1549 = vmatprep.subr.mxu0 0.0
  %1550 = vmatpush1.msra.mxu0 0.0
  %1551 = vmatprep.subr.mxu0 0.0
  %1552 = vmatpush1.msra.mxu0 0.0
  %1553 = vmatprep.subr.mxu0 0.0
  %1554 = vmatpush1.msra.mxu0 0.0
  %1555 = vmatprep.subr.mxu0 %v1380
  %1556 = vmatpush1.msra.mxu0 %v1377
  %1557 = vmatprep.subr.mxu0 %v1351
  %1558 = vmatpush1.msra.mxu0 %v1350
  %1559 = vmatprep.subr.mxu0 %v1342
  %1560 = vmatpush1.msra.mxu0 %v1341
  %1561 = vmatprep.subr.mxu0 %v1333
  %1562 = vmatpush1.msra.mxu0 %v1332
  %1563 = vmatprep.subr.mxu0 %v1324
  %1564 = vmatpush1.msra.mxu0 %v1323
  %1565 = vmatprep.subr.mxu0 0.0
  %1566 = vmatpush2.msra.mxu0 0.0
  %1567 = vmatprep.subr.mxu0 0.0
  %1568 = vmatpush2.msra.mxu0 0.0
  %1569 = vmatprep.subr.mxu0 0.0
  %1570 = vmatpush2.msra.mxu0 0.0
  %1571 = vmatprep.subr.mxu0 0.0
  %1572 = vmatpush2.msra.mxu0 0.0
  %1573 = vmatprep.subr.mxu0 0.0
  %1574 = vmatpush2.msra.mxu0 0.0
  %1575 = vmatprep.subr.mxu0 0.0
  %1576 = vmatpush2.msra.mxu0 0.0
  %1577 = vmatprep.subr.mxu0 0.0
  %1578 = vmatpush2.msra.mxu0 0.0
  %1579 = vmatprep.subr.mxu0 0.0
  %1580 = vmatpush2.msra.mxu0 0.0
  %1581 = vmatprep.subr.mxu0 0.0
  %1582 = vmatpush2.msra.mxu0 0.0
  %1583 = vmatprep.subr.mxu0 0.0
  %1584 = vmatpush2.msra.mxu0 0.0
  %1585 = vmatprep.subr.mxu0 0.0
  %1586 = vmatpush2.msra.mxu0 0.0
  %1587 = vmatprep.subr.mxu0 0.0
  %1588 = vmatpush2.msra.mxu0 0.0
  %1589 = vmatprep.subr.mxu0 0.0
  %1590 = vmatpush2.msra.mxu0 0.0
  %1591 = vmatprep.subr.mxu0 0.0
  %1592 = vmatpush2.msra.mxu0 0.0
  %1593 = vmatprep.subr.mxu0 0.0
  %1594 = vmatpush2.msra.mxu0 0.0
  %1595 = vmatprep.subr.mxu0 0.0
  %1596 = vmatpush2.msra.mxu0 0.0
  %1597 = vmatprep.mubr.f32.mxu0 0.0
  %1598 = vmatmul.mubr.f32.gmra.mxu0 %v62
  %v1599 = vpop.f32.mrf.mxu0
  %v1600 = vadd.f32 0.0, %v1599
  %v1601 = vpop.f32.mrf.mxu0
  %v1602 = vadd.f32 0.0, %v1601
  %1603 = vdwg.mxu0
  %1604 = vmatprep.subr.mxu0 0.0
  %1605 = vmatpush1.msra.mxu0 0.0
  %1606 = vmatprep.subr.mxu0 0.0
  %1607 = vmatpush1.msra.mxu0 0.0
  %1608 = vmatprep.subr.mxu0 0.0
  %1609 = vmatpush1.msra.mxu0 0.0
  %1610 = vmatprep.subr.mxu0 0.0
  %1611 = vmatpush1.msra.mxu0 0.0
  %1612 = vmatprep.subr.mxu0 0.0
  %1613 = vmatpush1.msra.mxu0 0.0
  %1614 = vmatprep.subr.mxu0 0.0
  %1615 = vmatpush1.msra.mxu0 0.0
  %1616 = vmatprep.subr.mxu0 0.0
  %1617 = vmatpush1.msra.mxu0 0.0
  %1618 = vmatprep.subr.mxu0 0.0
  %1619 = vmatpush1.msra.mxu0 0.0
  %1620 = vmatprep.subr.mxu0 0.0
  %1621 = vmatpush1.msra.mxu0 0.0
  %1622 = vmatprep.subr.mxu0 0.0
  %1623 = vmatpush1.msra.mxu0 0.0
  %1624 = vmatprep.subr.mxu0 0.0
  %1625 = vmatpush1.msra.mxu0 0.0
  %1626 = vmatprep.subr.mxu0 %v1386
  %1627 = vmatpush1.msra.mxu0 %v1383
  %1628 = vmatprep.subr.mxu0 %v1353
  %1629 = vmatpush1.msra.mxu0 %v1352
  %1630 = vmatprep.subr.mxu0 %v1344
  %1631 = vmatpush1.msra.mxu0 %v1343
  %1632 = vmatprep.subr.mxu0 %v1335
  %1633 = vmatpush1.msra.mxu0 %v1334
  %1634 = vmatprep.subr.mxu0 %v1326
  %1635 = vmatpush1.msra.mxu0 %v1325
  %1636 = vmatprep.subr.mxu0 0.0
  %1637 = vmatpush2.msra.mxu0 0.0
  %1638 = vmatprep.subr.mxu0 0.0
  %1639 = vmatpush2.msra.mxu0 0.0
  %1640 = vmatprep.subr.mxu0 0.0
  %1641 = vmatpush2.msra.mxu0 0.0
  %1642 = vmatprep.subr.mxu0 0.0
  %1643 = vmatpush2.msra.mxu0 0.0
  %1644 = vmatprep.subr.mxu0 0.0
  %1645 = vmatpush2.msra.mxu0 0.0
  %1646 = vmatprep.subr.mxu0 0.0
  %1647 = vmatpush2.msra.mxu0 0.0
  %1648 = vmatprep.subr.mxu0 0.0
  %1649 = vmatpush2.msra.mxu0 0.0
  %1650 = vmatprep.subr.mxu0 0.0
  %1651 = vmatpush2.msra.mxu0 0.0
  %1652 = vmatprep.subr.mxu0 0.0
  %1653 = vmatpush2.msra.mxu0 0.0
  %1654 = vmatprep.subr.mxu0 0.0
  %1655 = vmatpush2.msra.mxu0 0.0
  %1656 = vmatprep.subr.mxu0 0.0
  %1657 = vmatpush2.msra.mxu0 0.0
  %1658 = vmatprep.subr.mxu0 0.0
  %1659 = vmatpush2.msra.mxu0 0.0
  %1660 = vmatprep.subr.mxu0 0.0
  %1661 = vmatpush2.msra.mxu0 0.0
  %1662 = vmatprep.subr.mxu0 0.0
  %1663 = vmatpush2.msra.mxu0 0.0
  %1664 = vmatprep.subr.mxu0 0.0
  %1665 = vmatpush2.msra.mxu0 0.0
  %1666 = vmatprep.subr.mxu0 0.0
  %1667 = vmatpush2.msra.mxu0 0.0
  %1668 = vmatprep.mubr.f32.mxu0 0.0
  %1669 = vmatmul.mubr.f32.gmra.mxu0 %v62
  %v1670 = vpop.f32.mrf.mxu0
  %v1671 = vadd.f32 0.0, %v1670
  %v1672 = vpop.f32.mrf.mxu0
  %v1673 = vadd.f32 0.0, %v1672
  %1674 = vdwg.mxu0
  %1675 = vmatprep.subr.mxu0 0.0
  %1676 = vmatpush1.msra.mxu0 0.0
  %1677 = vmatprep.subr.mxu0 0.0
  %1678 = vmatpush1.msra.mxu0 0.0
  %1679 = vmatprep.subr.mxu0 0.0
  %1680 = vmatpush1.msra.mxu0 0.0
  %1681 = vmatprep.subr.mxu0 0.0
  %1682 = vmatpush1.msra.mxu0 0.0
  %1683 = vmatprep.subr.mxu0 0.0
  %1684 = vmatpush1.msra.mxu0 0.0
  %1685 = vmatprep.subr.mxu0 0.0
  %1686 = vmatpush1.msra.mxu0 0.0
  %1687 = vmatprep.subr.mxu0 0.0
  %1688 = vmatpush1.msra.mxu0 0.0
  %1689 = vmatprep.subr.mxu0 0.0
  %1690 = vmatpush1.msra.mxu0 0.0
  %1691 = vmatprep.subr.mxu0 0.0
  %1692 = vmatpush1.msra.mxu0 0.0
  %1693 = vmatprep.subr.mxu0 0.0
  %1694 = vmatpush1.msra.mxu0 0.0
  %1695 = vmatprep.subr.mxu0 0.0
  %1696 = vmatpush1.msra.mxu0 0.0
  %1697 = vmatprep.subr.mxu0 0.0
  %1698 = vmatpush1.msra.mxu0 %v1389
  %1699 = vmatprep.subr.mxu0 0.0
  %1700 = vmatpush1.msra.mxu0 %v1354
  %1701 = vmatprep.subr.mxu0 0.0
  %1702 = vmatpush1.msra.mxu0 %v1345
  %1703 = vmatprep.subr.mxu0 0.0
  %1704 = vmatpush1.msra.mxu0 %v1336
  %1705 = vmatprep.subr.mxu0 0.0
  %1706 = vmatpush1.msra.mxu0 %v1327
  %1707 = vmatprep.subr.mxu0 0.0
  %1708 = vmatpush2.msra.mxu0 0.0
  %1709 = vmatprep.subr.mxu0 0.0
  %1710 = vmatpush2.msra.mxu0 0.0
  %1711 = vmatprep.subr.mxu0 0.0
  %1712 = vmatpush2.msra.mxu0 0.0
  %1713 = vmatprep.subr.mxu0 0.0
  %1714 = vmatpush2.msra.mxu0 0.0
  %1715 = vmatprep.subr.mxu0 0.0
  %1716 = vmatpush2.msra.mxu0 0.0
  %1717 = vmatprep.subr.mxu0 0.0
  %1718 = vmatpush2.msra.mxu0 0.0
  %1719 = vmatprep.subr.mxu0 0.0
  %1720 = vmatpush2.msra.mxu0 0.0
  %1721 = vmatprep.subr.mxu0 0.0
  %1722 = vmatpush2.msra.mxu0 0.0
  %1723 = vmatprep.subr.mxu0 0.0
  %1724 = vmatpush2.msra.mxu0 0.0
  %1725 = vmatprep.subr.mxu0 0.0
  %1726 = vmatpush2.msra.mxu0 0.0
  %1727 = vmatprep.subr.mxu0 0.0
  %1728 = vmatpush2.msra.mxu0 0.0
  %1729 = vmatprep.subr.mxu0 0.0
  %1730 = vmatpush2.msra.mxu0 0.0
  %1731 = vmatprep.subr.mxu0 0.0
  %1732 = vmatpush2.msra.mxu0 0.0
  %1733 = vmatprep.subr.mxu0 0.0
  %1734 = vmatpush2.msra.mxu0 0.0
  %1735 = vmatprep.subr.mxu0 0.0
  %1736 = vmatpush2.msra.mxu0 0.0
  %1737 = vmatprep.subr.mxu0 0.0
  %1738 = vmatpush2.msra.mxu0 0.0
  %1739 = vmatprep.mubr.f32.mxu0 0.0
  %1740 = vmatmul.mubr.f32.gmra.mxu0 %v62
  %v1741 = vpop.f32.mrf.mxu0
  %v1742 = vadd.f32 0.0, %v1741
  %v1743 = vpop.f32.mrf.mxu0
  %1744 = vdwg.mxu0
  %v1745 = vmax.f32 %v1309, %v1458
  %v1746 = vmax.f32 %v1310, %v1460
  %v1747 = vmax.f32 %v1311, %v1529
  %v1748 = vmax.f32 %v1312, %v1531
  %v1749 = vmax.f32 %v1313, %v1600
  %v1750 = vmax.f32 %v1314, %v1602
  %v1751 = vmax.f32 %v1315, %v1671
  %v1752 = vmax.f32 %v1316, %v1673
  %v1753 = vmax.f32 %v1317, %v1742
  %v1754 = vld [vmem:[%s2] sm:$0x3f]
  %1756 = vset.pattern.permute.xlu0 0
  %1757 = vperm.xlu0 %1756, %v1754
  %v1758 = vpop.permute.xlu0 %1757
  %v1760 = vadd.f32 %v1745, %v1758
  %v1761 = vadd.f32 %v1746, %v1758
  %v1762 = vadd.f32 %v1747, %v1758
  %v1763 = vadd.f32 %v1748, %v1758
  %v1764 = vadd.f32 %v1749, %v1758
  %v1765 = vadd.f32 %v1750, %v1758
  %v1766 = vadd.f32 %v1751, %v1758
  %v1767 = vadd.f32 %v1752, %v1758
  %v1768 = vadd.f32 %v1753, %v1758
  %v1769 = vmax.f32 %v1760, 0.0
  %v1770 = vmax.f32 %v1761, 0.0
  %v1771 = vmax.f32 %v1762, 0.0
  %v1772 = vmax.f32 %v1763, 0.0
  %v1773 = vmax.f32 %v1764, 0.0
  %v1774 = vmax.f32 %v1765, 0.0
  %v1775 = vmax.f32 %v1766, 0.0
  %v1776 = vmax.f32 %v1767, 0.0
  %v1777 = vmax.f32 %v1768, 0.0
  %1778 = vst [vmem:[%s3] sm:$0x3f] %v1769
  %1779 = vst [vmem:[%s3 + $0x8] sm:$0x3f] %v1770
  %1780 = vst [vmem:[%s3 + $0x10] sm:$0x3f] %v1771
  %1781 = vst [vmem:[%s3 + $0x18] sm:$0x3f] %v1772
  %1782 = vst [vmem:[%s3 + $0x20] sm:$0x3f] %v1773
  %1783 = vst [vmem:[%s3 + $0x28] sm:$0x3f] %v1774
  %1784 = vst [vmem:[%s3 + $0x30] sm:$0x3f] %v1775
  %1785 = vst [vmem:[%s3 + $0x38] sm:$0x3f] %v1776
  %vm1786 = vcmask 275456
  %1787 = vst.msk [vmem:[%s3 + $0x40] sm:$0x3f] %vm1786, %v1777
  // Predicated region
  $region14: #{cnn_forward.2} parent=0 // pred_check
    _
  $region15: #{cnn_forward.2} parent=0 // pred_check_branch
    %1789 = sbr.rel (0) target = $region17
  $region16: #{cnn_forward.2} parent=0 // pred_region
    _
  $region17: #{cnn_forward.2} parent=0 // pred_fallthru
    _
  // Predicated region
  $region18: #{cnn_forward.2} parent=0 // pred_check
    _
  $region19: #{cnn_forward.2} parent=0 // pred_check_branch
    %1791 = sbr.rel (0) target = $region21
  $region20: #{cnn_forward.2} parent=0 // pred_region
    _
  $region21: #{cnn_forward.2} parent=0 // pred_fallthru
    _

// kernel: cnn_forward.3
$region0: #{cnn_forward.3}
  #allocation0 [shape = 'u32[]', space=smem, size = 0x4, offset = 0x4, fixed_abs, tag = 'smem constant byte address 0x4 - core index']
  #allocation1 [shape = 'u32[144,128]{1,0:T(1,128)}', space=vmem, size = 0x12000, scoped, tag = 'internal scratch']
  %s0 = inlined_call_operand.vmem [shape: f32[4,50,150], index: 0, kind: input, shape index: {}]
  %s1 = inlined_call_operand.vmem [shape: f32[150,12], index: 1, kind: input, shape index: {}]
  %s2 = inlined_call_operand.vmem [shape: f32[1,12], index: 2, kind: input, shape index: {}]
  %s3 = inlined_call_operand.vmem [shape: f32[25,12,216], index: 3, kind: input, shape index: {}]
  %s4 = inlined_call_operand.vmem [shape: f32[1,216], index: 4, kind: input, shape index: {}]
  %s5 = inlined_call_operand.vmem [shape: f32[216,108], index: 5, kind: input, shape index: {}]
  %s6 = inlined_call_operand.vmem [shape: f32[1,108], index: 6, kind: input, shape index: {}]
  %s7 = inlined_call_operand.vmem [shape: f32[108,5], index: 7, kind: input, shape index: {}]
  %s8 = inlined_call_operand.vmem [shape: f32[1,5], index: 8, kind: input, shape index: {}]
  %s9 = inlined_call_operand.hbm [shape: f32[2,5], index: 9, kind: output, shape index: {}]
  %s10 = sld [smem:[#allocation0]]
  $region46: #{cnn_forward.3} parent=0
    _
  %s12 = ssub.s32 1, %s10
  %s13 = scalar_select 0, %s12, %s10
  $region1: #{cnn_forward.3} parent=0
    #allocation2 [shape = 'u8[1024]{0}', space=vmem, size = 0x400, scoped, tag = 'output window, operand 0, single buffered']
    #allocation3 [shape = 's32[1]{0}', space=sflag, size = 0x4, scoped, tag = 'scoped memory for cnn_forward.3']
    %14 = vsyncpa [#allocation3], 0
    // Predicated region
    $region2: #{cnn_forward.3} parent=1 // pred_check
      _
    $region3: #{cnn_forward.3} parent=1 // pred_check_branch
      %16 = sbr.rel (0) target = $region5
    $region4: #{cnn_forward.3} parent=1 // pred_region
      _
    $region5: #{cnn_forward.3} parent=1 // pred_fallthru
      _
    // Predicated region
    $region6: #{cnn_forward.3} parent=1 // pred_check
      _
    $region7: #{cnn_forward.3} parent=1 // pred_check_branch
      %18 = sbr.rel (0) target = $region9
    $region8: #{cnn_forward.3} parent=1 // pred_region
      _
    $region9: #{cnn_forward.3} parent=1 // pred_fallthru
      _
    // Predicated region
    $region10: #{cnn_forward.3} parent=1 // pred_check
      _
    $region11: #{cnn_forward.3} parent=1 // pred_check_branch
      %20 = sbr.rel (0) target = $region13
    $region12: #{cnn_forward.3} parent=1 // pred_region
      _
    $region13: #{cnn_forward.3} parent=1 // pred_fallthru
      _
    // Predicated region
    $region14: #{cnn_forward.3} parent=1 // pred_check
      _
    $region15: #{cnn_forward.3} parent=1 // pred_check_branch
      %22 = sbr.rel (0) target = $region17
    $region16: #{cnn_forward.3} parent=1 // pred_region
      _
    $region17: #{cnn_forward.3} parent=1 // pred_fallthru
      _
    // Predicated region
    $region18: #{cnn_forward.3} parent=1 // pred_check
      _
    $region19: #{cnn_forward.3} parent=1 // pred_check_branch
      %24 = sbr.rel (0) target = $region21
    $region20: #{cnn_forward.3} parent=1 // pred_region
      _
    $region21: #{cnn_forward.3} parent=1 // pred_fallthru
      _
    // Predicated region
    $region22: #{cnn_forward.3} parent=1 // pred_check
      _
    $region23: #{cnn_forward.3} parent=1 // pred_check_branch
      %26 = sbr.rel (0) target = $region25
    $region24: #{cnn_forward.3} parent=1 // pred_region
      _
    $region25: #{cnn_forward.3} parent=1 // pred_fallthru
      _
    // Predicated region
    $region26: #{cnn_forward.3} parent=1 // pred_check
      _
    $region27: #{cnn_forward.3} parent=1 // pred_check_branch
      %28 = sbr.rel (0) target = $region29
    $region28: #{cnn_forward.3} parent=1 // pred_region
      _
    $region29: #{cnn_forward.3} parent=1 // pred_fallthru
      _
    // Predicated region
    $region30: #{cnn_forward.3} parent=1 // pred_check
      _
    $region31: #{cnn_forward.3} parent=1 // pred_check_branch
      %30 = sbr.rel (0) target = $region33
    $region32: #{cnn_forward.3} parent=1 // pred_region
      _
    $region33: #{cnn_forward.3} parent=1 // pred_fallthru
      _
    // Predicated region
    $region34: #{cnn_forward.3} parent=1 // pred_check
      _
    $region35: #{cnn_forward.3} parent=1 // pred_check_branch
      %32 = sbr.rel (0) target = $region37
    $region36: #{cnn_forward.3} parent=1 // pred_region
      _
    $region37: #{cnn_forward.3} parent=1 // pred_fallthru
      _
    %v33 = vld [vmem:[%s1] sm:$0xff]
    %v34 = vld [vmem:[%s1 + $0x8] sm:$0xff]
    %v35 = vld [vmem:[%s1 + $0x10] sm:$0xff]
    %v36 = vld [vmem:[%s1 + $0x18] sm:$0xff]
    %v37 = vld [vmem:[%s1 + $0x20] sm:$0xff]
    %v38 = vld [vmem:[%s1 + $0x28] sm:$0xff]
    %v39 = vld [vmem:[%s1 + $0x30] sm:$0xff]
    %v40 = vld [vmem:[%s1 + $0x38] sm:$0xff]
    %v41 = vld [vmem:[%s1 + $0x40] sm:$0xff]
    %v42 = vld [vmem:[%s1 + $0x48] sm:$0xff]
    %v43 = vld [vmem:[%s1 + $0x50] sm:$0xff]
    %v44 = vld [vmem:[%s1 + $0x58] sm:$0xff]
    %v45 = vld [vmem:[%s1 + $0x60] sm:$0xff]
    %v46 = vld [vmem:[%s1 + $0x68] sm:$0xff]
    %v47 = vld [vmem:[%s1 + $0x70] sm:$0xff]
    %v48 = vld [vmem:[%s1 + $0x78] sm:$0xff]
    %v49 = vld [vmem:[%s1 + $0x80] sm:$0xff]
    %v50 = vld [vmem:[%s1 + $0x88] sm:$0xff]
    %v51 = vld [vmem:[%s1 + $0x90] sm:$0x3f]
    %v52 = vld [vmem:[%s0] sm:$0xff]
    %v53 = vld [vmem:[%s0 + $0x8] sm:$0xff]
    %v54 = vld [vmem:[%s0 + $0x10] sm:$0xff]
    %v55 = vld [vmem:[%s0 + $0x18] sm:$0xff]
    %v56 = vld [vmem:[%s0 + $0x20] sm:$0xff]
    %v57 = vld [vmem:[%s0 + $0x28] sm:$0xff]
    %v58 = vld [vmem:[%s0 + $0x30] sm:$0xff]
    %v59 = vld [vmem:[%s0 + $0x38] sm:$0xff]
    %v60 = vld [vmem:[%s0 + $0x40] sm:$0xff]
    %v61 = vld [vmem:[%s0 + $0x48] sm:$0xff]
    %v62 = vld [vmem:[%s0 + $0x50] sm:$0xff]
    %v63 = vld [vmem:[%s0 + $0x58] sm:$0xff]
    %v64 = vld [vmem:[%s0 + $0x60] sm:$0x3]
    %v65 = vld [vmem:[%s0 + $0x68] sm:$0x3]
    %vm66 = vcmask 179200
    %v68 = vsel %vm66, %v53, 0
    %v71 = vsel %vm66, %v55, 0
    %v74 = vsel %vm66, %v57, 0
    %v77 = vsel %vm66, %v59, 0
    %v80 = vsel %vm66, %v61, 0
    %v83 = vsel %vm66, %v63, 0
    %v86 = vsel %vm66, %v65, 0
    %vm88 = vcmask 1045504
    %v90 = vsel %vm88, %v51, 0
    %92 = vmatprep.subr.mxu0 0.0
    %93 = vmatpush1.msra.mxu0 %v48
    %94 = vmatprep.subr.mxu0 0.0
    %95 = vmatpush1.msra.mxu0 %v47
    %96 = vmatprep.subr.mxu0 0.0
    %97 = vmatpush1.msra.mxu0 %v46
    %98 = vmatprep.subr.mxu0 0.0
    %99 = vmatpush1.msra.mxu0 %v45
    %100 = vmatprep.subr.mxu0 0.0
    %101 = vmatpush1.msra.mxu0 %v44
    %102 = vmatprep.subr.mxu0 0.0
    %103 = vmatpush1.msra.mxu0 %v43
    %104 = vmatprep.subr.mxu0 0.0
    %105 = vmatpush1.msra.mxu0 %v42
    %106 = vmatprep.subr.mxu0 0.0
    %107 = vmatpush1.msra.mxu0 %v41
    %108 = vmatprep.subr.mxu0 0.0
    %109 = vmatpush1.msra.mxu0 %v40
    %110 = vmatprep.subr.mxu0 0.0
    %111 = vmatpush1.msra.mxu0 %v39
    %112 = vmatprep.subr.mxu0 0.0
    %113 = vmatpush1.msra.mxu0 %v38
    %114 = vmatprep.subr.mxu0 0.0
    %115 = vmatpush1.msra.mxu0 %v37
    %116 = vmatprep.subr.mxu0 0.0
    %117 = vmatpush1.msra.mxu0 %v36
    %118 = vmatprep.subr.mxu0 0.0
    %119 = vmatpush1.msra.mxu0 %v35
    %120 = vmatprep.subr.mxu0 0.0
    %121 = vmatpush1.msra.mxu0 %v34
    %122 = vmatprep.subr.mxu0 0.0
    %123 = vmatpush1.msra.mxu0 %v33
    %124 = vmatprep.subr.mxu0 0.0
    %125 = vmatpush2.msra.mxu0 0.0
    %126 = vmatprep.subr.mxu0 0.0
    %127 = vmatpush2.msra.mxu0 0.0
    %128 = vmatprep.subr.mxu0 0.0
    %129 = vmatpush2.msra.mxu0 0.0
    %130 = vmatprep.subr.mxu0 0.0
    %131 = vmatpush2.msra.mxu0 0.0
    %132 = vmatprep.subr.mxu0 0.0
    %133 = vmatpush2.msra.mxu0 0.0
    %134 = vmatprep.subr.mxu0 0.0
    %135 = vmatpush2.msra.mxu0 0.0
    %136 = vmatprep.subr.mxu0 0.0
    %137 = vmatpush2.msra.mxu0 0.0
    %138 = vmatprep.subr.mxu0 0.0
    %139 = vmatpush2.msra.mxu0 0.0
    %140 = vmatprep.subr.mxu0 0.0
    %141 = vmatpush2.msra.mxu0 0.0
    %142 = vmatprep.subr.mxu0 0.0
    %143 = vmatpush2.msra.mxu0 0.0
    %144 = vmatprep.subr.mxu0 0.0
    %145 = vmatpush2.msra.mxu0 0.0
    %146 = vmatprep.subr.mxu0 0.0
    %147 = vmatpush2.msra.mxu0 0.0
    %148 = vmatprep.subr.mxu0 0.0
    %149 = vmatpush2.msra.mxu0 0.0
    %150 = vmatprep.subr.mxu0 0.0
    %151 = vmatpush2.msra.mxu0 %v90
    %152 = vmatprep.subr.mxu0 0.0
    %153 = vmatpush2.msra.mxu0 %v50
    %154 = vmatprep.subr.mxu0 0.0
    %155 = vmatpush2.msra.mxu0 %v49
    %156 = vmatprep.mubr.f32.mxu0 %v68
    %157 = vmatmul.mubr.f32.gmra.mxu0 %v52
    %v158 = vpop.f32.mrf.mxu0
    %v159 = vadd.f32 0.0, %v158
    %v160 = vpop.f32.mrf.mxu0
    %161 = vmatprep.mubr.f32.mxu0 %v71
    %162 = vmatmul.mubr.f32.gmra.mxu0 %v54
    %v163 = vpop.f32.mrf.mxu0
    %v164 = vadd.f32 0.0, %v163
    %v165 = vpop.f32.mrf.mxu0
    %166 = vmatprep.mubr.f32.mxu0 %v74
    %167 = vmatmul.mubr.f32.gmra.mxu0 %v56
    %v168 = vpop.f32.mrf.mxu0
    %v169 = vadd.f32 0.0, %v168
    %v170 = vpop.f32.mrf.mxu0
    %171 = vmatprep.mubr.f32.mxu0 %v77
    %172 = vmatmul.mubr.f32.gmra.mxu0 %v58
    %v173 = vpop.f32.mrf.mxu0
    %v174 = vadd.f32 0.0, %v173
    %v175 = vpop.f32.mrf.mxu0
    %176 = vmatprep.mubr.f32.mxu0 %v80
    %177 = vmatmul.mubr.f32.gmra.mxu0 %v60
    %v178 = vpop.f32.mrf.mxu0
    %v179 = vadd.f32 0.0, %v178
    %v180 = vpop.f32.mrf.mxu0
    %181 = vmatprep.mubr.f32.mxu0 %v83
    %182 = vmatmul.mubr.f32.gmra.mxu0 %v62
    %v183 = vpop.f32.mrf.mxu0
    %v184 = vadd.f32 0.0, %v183
    %v185 = vpop.f32.mrf.mxu0
    %186 = vmatprep.mubr.f32.mxu0 %v86
    %187 = vmatmul.mubr.f32.gmra.mxu0 %v64
    %v188 = vpop.f32.mrf.mxu0
    %v189 = vadd.f32 0.0, %v188
    %v190 = vpop.f32.mrf.mxu0
    %191 = vdwg.mxu0
    %s192 = scalar_lea.vmem %s0, 112
    %v193 = vld [vmem:[%s192] sm:$0xff]
    %v194 = vld [vmem:[%s192 + $0x8] sm:$0xff]
    %v195 = vld [vmem:[%s192 + $0x10] sm:$0xff]
    %v196 = vld [vmem:[%s192 + $0x18] sm:$0xff]
    %v197 = vld [vmem:[%s192 + $0x20] sm:$0xff]
    %v198 = vld [vmem:[%s192 + $0x28] sm:$0xff]
    %v199 = vld [vmem:[%s192 + $0x30] sm:$0xff]
    %v200 = vld [vmem:[%s192 + $0x38] sm:$0xff]
    %v201 = vld [vmem:[%s192 + $0x40] sm:$0xff]
    %v202 = vld [vmem:[%s192 + $0x48] sm:$0xff]
    %v203 = vld [vmem:[%s192 + $0x50] sm:$0xff]
    %v204 = vld [vmem:[%s192 + $0x58] sm:$0xff]
    %v205 = vld [vmem:[%s192 + $0x60] sm:$0x3]
    %v206 = vld [vmem:[%s192 + $0x68] sm:$0x3]
    %v208 = vsel %vm66, %v194, 0
    %v211 = vsel %vm66, %v196, 0
    %v214 = vsel %vm66, %v198, 0
    %v217 = vsel %vm66, %v200, 0
    %v220 = vsel %vm66, %v202, 0
    %v223 = vsel %vm66, %v204, 0
    %v226 = vsel %vm66, %v206, 0
    %228 = vmatprep.subr.mxu0 0.0
    %229 = vmatpush1.msra.mxu0 %v48
    %230 = vmatprep.subr.mxu0 0.0
    %231 = vmatpush1.msra.mxu0 %v47
    %232 = vmatprep.subr.mxu0 0.0
    %233 = vmatpush1.msra.mxu0 %v46
    %234 = vmatprep.subr.mxu0 0.0
    %235 = vmatpush1.msra.mxu0 %v45
    %236 = vmatprep.subr.mxu0 0.0
    %237 = vmatpush1.msra.mxu0 %v44
    %238 = vmatprep.subr.mxu0 0.0
    %239 = vmatpush1.msra.mxu0 %v43
    %240 = vmatprep.subr.mxu0 0.0
    %241 = vmatpush1.msra.mxu0 %v42
    %242 = vmatprep.subr.mxu0 0.0
    %243 = vmatpush1.msra.mxu0 %v41
    %244 = vmatprep.subr.mxu0 0.0
    %245 = vmatpush1.msra.mxu0 %v40
    %246 = vmatprep.subr.mxu0 0.0
    %247 = vmatpush1.msra.mxu0 %v39
    %248 = vmatprep.subr.mxu0 0.0
    %249 = vmatpush1.msra.mxu0 %v38
    %250 = vmatprep.subr.mxu0 0.0
    %251 = vmatpush1.msra.mxu0 %v37
    %252 = vmatprep.subr.mxu0 0.0
    %253 = vmatpush1.msra.mxu0 %v36
    %254 = vmatprep.subr.mxu0 0.0
    %255 = vmatpush1.msra.mxu0 %v35
    %256 = vmatprep.subr.mxu0 0.0
    %257 = vmatpush1.msra.mxu0 %v34
    %258 = vmatprep.subr.mxu0 0.0
    %259 = vmatpush1.msra.mxu0 %v33
    %260 = vmatprep.subr.mxu0 0.0
    %261 = vmatpush2.msra.mxu0 0.0
    %262 = vmatprep.subr.mxu0 0.0
    %263 = vmatpush2.msra.mxu0 0.0
    %264 = vmatprep.subr.mxu0 0.0
    %265 = vmatpush2.msra.mxu0 0.0
    %266 = vmatprep.subr.mxu0 0.0
    %267 = vmatpush2.msra.mxu0 0.0
    %268 = vmatprep.subr.mxu0 0.0
    %269 = vmatpush2.msra.mxu0 0.0
    %270 = vmatprep.subr.mxu0 0.0
    %271 = vmatpush2.msra.mxu0 0.0
    %272 = vmatprep.subr.mxu0 0.0
    %273 = vmatpush2.msra.mxu0 0.0
    %274 = vmatprep.subr.mxu0 0.0
    %275 = vmatpush2.msra.mxu0 0.0
    %276 = vmatprep.subr.mxu0 0.0
    %277 = vmatpush2.msra.mxu0 0.0
    %278 = vmatprep.subr.mxu0 0.0
    %279 = vmatpush2.msra.mxu0 0.0
    %280 = vmatprep.subr.mxu0 0.0
    %281 = vmatpush2.msra.mxu0 0.0
    %282 = vmatprep.subr.mxu0 0.0
    %283 = vmatpush2.msra.mxu0 0.0
    %284 = vmatprep.subr.mxu0 0.0
    %285 = vmatpush2.msra.mxu0 0.0
    %286 = vmatprep.subr.mxu0 0.0
    %287 = vmatpush2.msra.mxu0 %v90
    %288 = vmatprep.subr.mxu0 0.0
    %289 = vmatpush2.msra.mxu0 %v50
    %290 = vmatprep.subr.mxu0 0.0
    %291 = vmatpush2.msra.mxu0 %v49
    %292 = vmatprep.mubr.f32.mxu0 %v208
    %293 = vmatmul.mubr.f32.gmra.mxu0 %v193
    %v294 = vpop.f32.mrf.mxu0
    %v295 = vadd.f32 0.0, %v294
    %v296 = vpop.f32.mrf.mxu0
    %297 = vmatprep.mubr.f32.mxu0 %v211
    %298 = vmatmul.mubr.f32.gmra.mxu0 %v195
    %v299 = vpop.f32.mrf.mxu0
    %v300 = vadd.f32 0.0, %v299
    %v301 = vpop.f32.mrf.mxu0
    %302 = vmatprep.mubr.f32.mxu0 %v214
    %303 = vmatmul.mubr.f32.gmra.mxu0 %v197
    %v304 = vpop.f32.mrf.mxu0
    %v305 = vadd.f32 0.0, %v304
    %v306 = vpop.f32.mrf.mxu0
    %307 = vmatprep.mubr.f32.mxu0 %v217
    %308 = vmatmul.mubr.f32.gmra.mxu0 %v199
    %v309 = vpop.f32.mrf.mxu0
    %v310 = vadd.f32 0.0, %v309
    %v311 = vpop.f32.mrf.mxu0
    %312 = vmatprep.mubr.f32.mxu0 %v220
    %313 = vmatmul.mubr.f32.gmra.mxu0 %v201
    %v314 = vpop.f32.mrf.mxu0
    %v315 = vadd.f32 0.0, %v314
    %v316 = vpop.f32.mrf.mxu0
    %317 = vmatprep.mubr.f32.mxu0 %v223
    %318 = vmatmul.mubr.f32.gmra.mxu0 %v203
    %v319 = vpop.f32.mrf.mxu0
    %v320 = vadd.f32 0.0, %v319
    %v321 = vpop.f32.mrf.mxu0
    %322 = vmatprep.mubr.f32.mxu0 %v226
    %323 = vmatmul.mubr.f32.gmra.mxu0 %v205
    %v324 = vpop.f32.mrf.mxu0
    %v325 = vadd.f32 0.0, %v324
    %v326 = vpop.f32.mrf.mxu0
    %327 = vdwg.mxu0
    %v328 = vmax.f32 %v159, %v295
    %v329 = vmax.f32 %v164, %v300
    %v330 = vmax.f32 %v169, %v305
    %v331 = vmax.f32 %v174, %v310
    %v332 = vmax.f32 %v179, %v315
    %v333 = vmax.f32 %v184, %v320
    %v334 = vmax.f32 %v189, %v325
    %s335 = scalar_lea.vmem %s0, 224
    %v336 = vld [vmem:[%s335] sm:$0xff]
    %v337 = vld [vmem:[%s335 + $0x8] sm:$0xff]
    %v338 = vld [vmem:[%s335 + $0x10] sm:$0xff]
    %v339 = vld [vmem:[%s335 + $0x18] sm:$0xff]
    %v340 = vld [vmem:[%s335 + $0x20] sm:$0xff]
    %v341 = vld [vmem:[%s335 + $0x28] sm:$0xff]
    %v342 = vld [vmem:[%s335 + $0x30] sm:$0xff]
    %v343 = vld [vmem:[%s335 + $0x38] sm:$0xff]
    %v344 = vld [vmem:[%s335 + $0x40] sm:$0xff]
    %v345 = vld [vmem:[%s335 + $0x48] sm:$0xff]
    %v346 = vld [vmem:[%s335 + $0x50] sm:$0xff]
    %v347 = vld [vmem:[%s335 + $0x58] sm:$0xff]
    %v348 = vld [vmem:[%s335 + $0x60] sm:$0x3]
    %v349 = vld [vmem:[%s335 + $0x68] sm:$0x3]
    %v351 = vsel %vm66, %v337, 0
    %v354 = vsel %vm66, %v339, 0
    %v357 = vsel %vm66, %v341, 0
    %v360 = vsel %vm66, %v343, 0
    %v363 = vsel %vm66, %v345, 0
    %v366 = vsel %vm66, %v347, 0
    %v369 = vsel %vm66, %v349, 0
    %371 = vmatprep.subr.mxu0 0.0
    %372 = vmatpush1.msra.mxu0 %v48
    %373 = vmatprep.subr.mxu0 0.0
    %374 = vmatpush1.msra.mxu0 %v47
    %375 = vmatprep.subr.mxu0 0.0
    %376 = vmatpush1.msra.mxu0 %v46
    %377 = vmatprep.subr.mxu0 0.0
    %378 = vmatpush1.msra.mxu0 %v45
    %379 = vmatprep.subr.mxu0 0.0
    %380 = vmatpush1.msra.mxu0 %v44
    %381 = vmatprep.subr.mxu0 0.0
    %382 = vmatpush1.msra.mxu0 %v43
    %383 = vmatprep.subr.mxu0 0.0
    %384 = vmatpush1.msra.mxu0 %v42
    %385 = vmatprep.subr.mxu0 0.0
    %386 = vmatpush1.msra.mxu0 %v41
    %387 = vmatprep.subr.mxu0 0.0
    %388 = vmatpush1.msra.mxu0 %v40
    %389 = vmatprep.subr.mxu0 0.0
    %390 = vmatpush1.msra.mxu0 %v39
    %391 = vmatprep.subr.mxu0 0.0
    %392 = vmatpush1.msra.mxu0 %v38
    %393 = vmatprep.subr.mxu0 0.0
    %394 = vmatpush1.msra.mxu0 %v37
    %395 = vmatprep.subr.mxu0 0.0
    %396 = vmatpush1.msra.mxu0 %v36
    %397 = vmatprep.subr.mxu0 0.0
    %398 = vmatpush1.msra.mxu0 %v35
    %399 = vmatprep.subr.mxu0 0.0
    %400 = vmatpush1.msra.mxu0 %v34
    %401 = vmatprep.subr.mxu0 0.0
    %402 = vmatpush1.msra.mxu0 %v33
    %403 = vmatprep.subr.mxu0 0.0
    %404 = vmatpush2.msra.mxu0 0.0
    %405 = vmatprep.subr.mxu0 0.0
    %406 = vmatpush2.msra.mxu0 0.0
    %407 = vmatprep.subr.mxu0 0.0
    %408 = vmatpush2.msra.mxu0 0.0
    %409 = vmatprep.subr.mxu0 0.0
    %410 = vmatpush2.msra.mxu0 0.0
    %411 = vmatprep.subr.mxu0 0.0
    %412 = vmatpush2.msra.mxu0 0.0
    %413 = vmatprep.subr.mxu0 0.0
    %414 = vmatpush2.msra.mxu0 0.0
    %415 = vmatprep.subr.mxu0 0.0
    %416 = vmatpush2.msra.mxu0 0.0
    %417 = vmatprep.subr.mxu0 0.0
    %418 = vmatpush2.msra.mxu0 0.0
    %419 = vmatprep.subr.mxu0 0.0
    %420 = vmatpush2.msra.mxu0 0.0
    %421 = vmatprep.subr.mxu0 0.0
    %422 = vmatpush2.msra.mxu0 0.0
    %423 = vmatprep.subr.mxu0 0.0
    %424 = vmatpush2.msra.mxu0 0.0
    %425 = vmatprep.subr.mxu0 0.0
    %426 = vmatpush2.msra.mxu0 0.0
    %427 = vmatprep.subr.mxu0 0.0
    %428 = vmatpush2.msra.mxu0 0.0
    %429 = vmatprep.subr.mxu0 0.0
    %430 = vmatpush2.msra.mxu0 %v90
    %431 = vmatprep.subr.mxu0 0.0
    %432 = vmatpush2.msra.mxu0 %v50
    %433 = vmatprep.subr.mxu0 0.0
    %434 = vmatpush2.msra.mxu0 %v49
    %435 = vmatprep.mubr.f32.mxu0 %v351
    %436 = vmatmul.mubr.f32.gmra.mxu0 %v336
    %v437 = vpop.f32.mrf.mxu0
    %v438 = vadd.f32 0.0, %v437
    %v439 = vpop.f32.mrf.mxu0
    %440 = vmatprep.mubr.f32.mxu0 %v354
    %441 = vmatmul.mubr.f32.gmra.mxu0 %v338
    %v442 = vpop.f32.mrf.mxu0
    %v443 = vadd.f32 0.0, %v442
    %v444 = vpop.f32.mrf.mxu0
    %445 = vmatprep.mubr.f32.mxu0 %v357
    %446 = vmatmul.mubr.f32.gmra.mxu0 %v340
    %v447 = vpop.f32.mrf.mxu0
    %v448 = vadd.f32 0.0, %v447
    %v449 = vpop.f32.mrf.mxu0
    %450 = vmatprep.mubr.f32.mxu0 %v360
    %451 = vmatmul.mubr.f32.gmra.mxu0 %v342
    %v452 = vpop.f32.mrf.mxu0
    %v453 = vadd.f32 0.0, %v452
    %v454 = vpop.f32.mrf.mxu0
    %455 = vmatprep.mubr.f32.mxu0 %v363
    %456 = vmatmul.mubr.f32.gmra.mxu0 %v344
    %v457 = vpop.f32.mrf.mxu0
    %v458 = vadd.f32 0.0, %v457
    %v459 = vpop.f32.mrf.mxu0
    %460 = vmatprep.mubr.f32.mxu0 %v366
    %461 = vmatmul.mubr.f32.gmra.mxu0 %v346
    %v462 = vpop.f32.mrf.mxu0
    %v463 = vadd.f32 0.0, %v462
    %v464 = vpop.f32.mrf.mxu0
    %465 = vmatprep.mubr.f32.mxu0 %v369
    %466 = vmatmul.mubr.f32.gmra.mxu0 %v348
    %v467 = vpop.f32.mrf.mxu0
    %v468 = vadd.f32 0.0, %v467
    %v469 = vpop.f32.mrf.mxu0
    %470 = vdwg.mxu0
    %v471 = vmax.f32 %v328, %v438
    %v472 = vmax.f32 %v329, %v443
    %v473 = vmax.f32 %v330, %v448
    %v474 = vmax.f32 %v331, %v453
    %v475 = vmax.f32 %v332, %v458
    %v476 = vmax.f32 %v333, %v463
    %v477 = vmax.f32 %v334, %v468
    %s478 = scalar_lea.vmem %s0, 336
    %v479 = vld [vmem:[%s478] sm:$0xff]
    %v480 = vld [vmem:[%s478 + $0x8] sm:$0xff]
    %v481 = vld [vmem:[%s478 + $0x10] sm:$0xff]
    %v482 = vld [vmem:[%s478 + $0x18] sm:$0xff]
    %v483 = vld [vmem:[%s478 + $0x20] sm:$0xff]
    %v484 = vld [vmem:[%s478 + $0x28] sm:$0xff]
    %v485 = vld [vmem:[%s478 + $0x30] sm:$0xff]
    %v486 = vld [vmem:[%s478 + $0x38] sm:$0xff]
    %v487 = vld [vmem:[%s478 + $0x40] sm:$0xff]
    %v488 = vld [vmem:[%s478 + $0x48] sm:$0xff]
    %v489 = vld [vmem:[%s478 + $0x50] sm:$0xff]
    %v490 = vld [vmem:[%s478 + $0x58] sm:$0xff]
    %v491 = vld [vmem:[%s478 + $0x60] sm:$0x3]
    %v492 = vld [vmem:[%s478 + $0x68] sm:$0x3]
    %v494 = vsel %vm66, %v480, 0
    %v497 = vsel %vm66, %v482, 0
    %v500 = vsel %vm66, %v484, 0
    %v503 = vsel %vm66, %v486, 0
    %v506 = vsel %vm66, %v488, 0
    %v509 = vsel %vm66, %v490, 0
    %v512 = vsel %vm66, %v492, 0
    %514 = vmatprep.subr.mxu0 0.0
    %515 = vmatpush1.msra.mxu0 %v48
    %516 = vmatprep.subr.mxu0 0.0
    %517 = vmatpush1.msra.mxu0 %v47
    %518 = vmatprep.subr.mxu0 0.0
    %519 = vmatpush1.msra.mxu0 %v46
    %520 = vmatprep.subr.mxu0 0.0
    %521 = vmatpush1.msra.mxu0 %v45
    %522 = vmatprep.subr.mxu0 0.0
    %523 = vmatpush1.msra.mxu0 %v44
    %524 = vmatprep.subr.mxu0 0.0
    %525 = vmatpush1.msra.mxu0 %v43
    %526 = vmatprep.subr.mxu0 0.0
    %527 = vmatpush1.msra.mxu0 %v42
    %528 = vmatprep.subr.mxu0 0.0
    %529 = vmatpush1.msra.mxu0 %v41
    %530 = vmatprep.subr.mxu0 0.0
    %531 = vmatpush1.msra.mxu0 %v40
    %532 = vmatprep.subr.mxu0 0.0
    %533 = vmatpush1.msra.mxu0 %v39
    %534 = vmatprep.subr.mxu0 0.0
    %535 = vmatpush1.msra.mxu0 %v38
    %536 = vmatprep.subr.mxu0 0.0
    %537 = vmatpush1.msra.mxu0 %v37
    %538 = vmatprep.subr.mxu0 0.0
    %539 = vmatpush1.msra.mxu0 %v36
    %540 = vmatprep.subr.mxu0 0.0
    %541 = vmatpush1.msra.mxu0 %v35
    %542 = vmatprep.subr.mxu0 0.0
    %543 = vmatpush1.msra.mxu0 %v34
    %544 = vmatprep.subr.mxu0 0.0
    %545 = vmatpush1.msra.mxu0 %v33
    %546 = vmatprep.subr.mxu0 0.0
    %547 = vmatpush2.msra.mxu0 0.0
    %548 = vmatprep.subr.mxu0 0.0
    %549 = vmatpush2.msra.mxu0 0.0
    %550 = vmatprep.subr.mxu0 0.0
    %551 = vmatpush2.msra.mxu0 0.0
    %552 = vmatprep.subr.mxu0 0.0
    %553 = vmatpush2.msra.mxu0 0.0
    %554 = vmatprep.subr.mxu0 0.0
    %555 = vmatpush2.msra.mxu0 0.0
    %556 = vmatprep.subr.mxu0 0.0
    %557 = vmatpush2.msra.mxu0 0.0
    %558 = vmatprep.subr.mxu0 0.0
    %559 = vmatpush2.msra.mxu0 0.0
    %560 = vmatprep.subr.mxu0 0.0
    %561 = vmatpush2.msra.mxu0 0.0
    %562 = vmatprep.subr.mxu0 0.0
    %563 = vmatpush2.msra.mxu0 0.0
    %564 = vmatprep.subr.mxu0 0.0
    %565 = vmatpush2.msra.mxu0 0.0
    %566 = vmatprep.subr.mxu0 0.0
    %567 = vmatpush2.msra.mxu0 0.0
    %568 = vmatprep.subr.mxu0 0.0
    %569 = vmatpush2.msra.mxu0 0.0
    %570 = vmatprep.subr.mxu0 0.0
    %571 = vmatpush2.msra.mxu0 0.0
    %572 = vmatprep.subr.mxu0 0.0
    %573 = vmatpush2.msra.mxu0 %v90
    %574 = vmatprep.subr.mxu0 0.0
    %575 = vmatpush2.msra.mxu0 %v50
    %576 = vmatprep.subr.mxu0 0.0
    %577 = vmatpush2.msra.mxu0 %v49
    %578 = vmatprep.mubr.f32.mxu0 %v494
    %579 = vmatmul.mubr.f32.gmra.mxu0 %v479
    %v580 = vpop.f32.mrf.mxu0
    %v581 = vadd.f32 0.0, %v580
    %v582 = vpop.f32.mrf.mxu0
    %583 = vmatprep.mubr.f32.mxu0 %v497
    %584 = vmatmul.mubr.f32.gmra.mxu0 %v481
    %v585 = vpop.f32.mrf.mxu0
    %v586 = vadd.f32 0.0, %v585
    %v587 = vpop.f32.mrf.mxu0
    %588 = vmatprep.mubr.f32.mxu0 %v500
    %589 = vmatmul.mubr.f32.gmra.mxu0 %v483
    %v590 = vpop.f32.mrf.mxu0
    %v591 = vadd.f32 0.0, %v590
    %v592 = vpop.f32.mrf.mxu0
    %593 = vmatprep.mubr.f32.mxu0 %v503
    %594 = vmatmul.mubr.f32.gmra.mxu0 %v485
    %v595 = vpop.f32.mrf.mxu0
    %v596 = vadd.f32 0.0, %v595
    %v597 = vpop.f32.mrf.mxu0
    %598 = vmatprep.mubr.f32.mxu0 %v506
    %599 = vmatmul.mubr.f32.gmra.mxu0 %v487
    %v600 = vpop.f32.mrf.mxu0
    %v601 = vadd.f32 0.0, %v600
    %v602 = vpop.f32.mrf.mxu0
    %603 = vmatprep.mubr.f32.mxu0 %v509
    %604 = vmatmul.mubr.f32.gmra.mxu0 %v489
    %v605 = vpop.f32.mrf.mxu0
    %v606 = vadd.f32 0.0, %v605
    %v607 = vpop.f32.mrf.mxu0
    %608 = vmatprep.mubr.f32.mxu0 %v512
    %609 = vmatmul.mubr.f32.gmra.mxu0 %v491
    %v610 = vpop.f32.mrf.mxu0
    %v611 = vadd.f32 0.0, %v610
    %v612 = vpop.f32.mrf.mxu0
    %613 = vdwg.mxu0
    %v614 = vmax.f32 %v471, %v581
    %v615 = vmax.f32 %v472, %v586
    %v616 = vmax.f32 %v473, %v591
    %v617 = vmax.f32 %v474, %v596
    %v618 = vmax.f32 %v475, %v601
    %v619 = vmax.f32 %v476, %v606
    %v620 = vmax.f32 %v477, %v611
    %v621 = vld [vmem:[%s2] sm:$0x1]
    %v623 = vlaneseq
    %v624 = vshrl.u32 %v623, 7
    %v625 = vsub.s32 0, %v624
    %v626 = vrot.slane %v621, %v625
    %v628 = vadd.f32 %v614, %v626
    %v629 = vadd.f32 %v615, %v626
    %v630 = vadd.f32 %v616, %v626
    %v631 = vadd.f32 %v617, %v626
    %v632 = vadd.f32 %v618, %v626
    %v633 = vadd.f32 %v619, %v626
    %v634 = vadd.f32 %v620, %v626
    %v635 = vmax.f32 %v628, 0.0
    %v636 = vmax.f32 %v629, 0.0
    %v637 = vmax.f32 %v630, 0.0
    %v638 = vmax.f32 %v631, 0.0
    %v639 = vmax.f32 %v632, 0.0
    %v640 = vmax.f32 %v633, 0.0
    %v641 = vmax.f32 %v634, 0.0
    %v642 = vld [vmem:[%s3] sm:$0xff]
    %v643 = vld [vmem:[%s3 + $0x8] sm:$0xff]
    %v644 = vld [vmem:[%s3 + $0x10] sm:$0xf]
    %v645 = vld [vmem:[%s3 + $0x18] sm:$0xf]
    %s646 = scalar_lea.vmem %s3, 32
    %v647 = vld [vmem:[%s646] sm:$0xff]
    %v648 = vld [vmem:[%s646 + $0x8] sm:$0xff]
    %v649 = vld [vmem:[%s646 + $0x10] sm:$0xf]
    %v650 = vld [vmem:[%s646 + $0x18] sm:$0xf]
    %v652 = vrot.slane %v635, 2
    %vm653 = vcmask 97280
    %v654 = vsel %vm653, %v652, 0
    %vm656 = vcmask 1043456
    %v658 = vsel %vm656, %v649, 0
    %v661 = vsel %vm656, %v650, 0
    %663 = vmatprep.subr.mxu0 0.0
    %664 = vmatpush1.msra.mxu0 0.0
    %665 = vmatprep.subr.mxu0 0.0
    %666 = vmatpush1.msra.mxu0 0.0
    %667 = vmatprep.subr.mxu0 0.0
    %668 = vmatpush1.msra.mxu0 0.0
    %669 = vmatprep.subr.mxu0 0.0
    %670 = vmatpush1.msra.mxu0 0.0
    %671 = vmatprep.subr.mxu0 0.0
    %672 = vmatpush1.msra.mxu0 0.0
    %673 = vmatprep.subr.mxu0 0.0
    %674 = vmatpush1.msra.mxu0 0.0
    %675 = vmatprep.subr.mxu0 0.0
    %676 = vmatpush1.msra.mxu0 0.0
    %677 = vmatprep.subr.mxu0 0.0
    %678 = vmatpush1.msra.mxu0 0.0
    %679 = vmatprep.subr.mxu0 0.0
    %680 = vmatpush1.msra.mxu0 0.0
    %681 = vmatprep.subr.mxu0 0.0
    %682 = vmatpush1.msra.mxu0 0.0
    %683 = vmatprep.subr.mxu0 0.0
    %684 = vmatpush1.msra.mxu0 0.0
    %685 = vmatprep.subr.mxu0 0.0
    %686 = vmatpush1.msra.mxu0 0.0
    %687 = vmatprep.subr.mxu0 0.0
    %688 = vmatpush1.msra.mxu0 0.0
    %689 = vmatprep.subr.mxu0 0.0
    %690 = vmatpush1.msra.mxu0 0.0
    %691 = vmatprep.subr.mxu0 %v661
    %692 = vmatpush1.msra.mxu0 %v658
    %693 = vmatprep.subr.mxu0 %v648
    %694 = vmatpush1.msra.mxu0 %v647
    %695 = vmatprep.subr.mxu0 0.0
    %696 = vmatpush2.msra.mxu0 0.0
    %697 = vmatprep.subr.mxu0 0.0
    %698 = vmatpush2.msra.mxu0 0.0
    %699 = vmatprep.subr.mxu0 0.0
    %700 = vmatpush2.msra.mxu0 0.0
    %701 = vmatprep.subr.mxu0 0.0
    %702 = vmatpush2.msra.mxu0 0.0
    %703 = vmatprep.subr.mxu0 0.0
    %704 = vmatpush2.msra.mxu0 0.0
    %705 = vmatprep.subr.mxu0 0.0
    %706 = vmatpush2.msra.mxu0 0.0
    %707 = vmatprep.subr.mxu0 0.0
    %708 = vmatpush2.msra.mxu0 0.0
    %709 = vmatprep.subr.mxu0 0.0
    %710 = vmatpush2.msra.mxu0 0.0
    %711 = vmatprep.subr.mxu0 0.0
    %712 = vmatpush2.msra.mxu0 0.0
    %713 = vmatprep.subr.mxu0 0.0
    %714 = vmatpush2.msra.mxu0 0.0
    %715 = vmatprep.subr.mxu0 0.0
    %716 = vmatpush2.msra.mxu0 0.0
    %717 = vmatprep.subr.mxu0 0.0
    %718 = vmatpush2.msra.mxu0 0.0
    %719 = vmatprep.subr.mxu0 0.0
    %720 = vmatpush2.msra.mxu0 0.0
    %721 = vmatprep.subr.mxu0 0.0
    %722 = vmatpush2.msra.mxu0 0.0
    %723 = vmatprep.subr.mxu0 0.0
    %724 = vmatpush2.msra.mxu0 0.0
    %725 = vmatprep.subr.mxu0 0.0
    %726 = vmatpush2.msra.mxu0 0.0
    %727 = vmatprep.mubr.f32.mxu0 0.0
    %728 = vmatmul.mubr.f32.gmra.mxu0 %v654
    %v729 = vpop.f32.mrf.mxu0
    %v730 = vadd.f32 0.0, %v729
    %v731 = vpop.f32.mrf.mxu0
    %v732 = vadd.f32 0.0, %v731
    %733 = vdwg.mxu0
    %v734 = vsel %vm653, %v635, 0
    %v737 = vsel %vm656, %v644, 0
    %v740 = vsel %vm656, %v645, 0
    %742 = vmatprep.subr.mxu0 0.0
    %743 = vmatpush1.msra.mxu0 0.0
    %744 = vmatprep.subr.mxu0 0.0
    %745 = vmatpush1.msra.mxu0 0.0
    %746 = vmatprep.subr.mxu0 0.0
    %747 = vmatpush1.msra.mxu0 0.0
    %748 = vmatprep.subr.mxu0 0.0
    %749 = vmatpush1.msra.mxu0 0.0
    %750 = vmatprep.subr.mxu0 0.0
    %751 = vmatpush1.msra.mxu0 0.0
    %752 = vmatprep.subr.mxu0 0.0
    %753 = vmatpush1.msra.mxu0 0.0
    %754 = vmatprep.subr.mxu0 0.0
    %755 = vmatpush1.msra.mxu0 0.0
    %756 = vmatprep.subr.mxu0 0.0
    %757 = vmatpush1.msra.mxu0 0.0
    %758 = vmatprep.subr.mxu0 0.0
    %759 = vmatpush1.msra.mxu0 0.0
    %760 = vmatprep.subr.mxu0 0.0
    %761 = vmatpush1.msra.mxu0 0.0
    %762 = vmatprep.subr.mxu0 0.0
    %763 = vmatpush1.msra.mxu0 0.0
    %764 = vmatprep.subr.mxu0 0.0
    %765 = vmatpush1.msra.mxu0 0.0
    %766 = vmatprep.subr.mxu0 0.0
    %767 = vmatpush1.msra.mxu0 0.0
    %768 = vmatprep.subr.mxu0 0.0
    %769 = vmatpush1.msra.mxu0 0.0
    %770 = vmatprep.subr.mxu0 %v740
    %771 = vmatpush1.msra.mxu0 %v737
    %772 = vmatprep.subr.mxu0 %v643
    %773 = vmatpush1.msra.mxu0 %v642
    %774 = vmatprep.subr.mxu0 0.0
    %775 = vmatpush2.msra.mxu0 0.0
    %776 = vmatprep.subr.mxu0 0.0
    %777 = vmatpush2.msra.mxu0 0.0
    %778 = vmatprep.subr.mxu0 0.0
    %779 = vmatpush2.msra.mxu0 0.0
    %780 = vmatprep.subr.mxu0 0.0
    %781 = vmatpush2.msra.mxu0 0.0
    %782 = vmatprep.subr.mxu0 0.0
    %783 = vmatpush2.msra.mxu0 0.0
    %784 = vmatprep.subr.mxu0 0.0
    %785 = vmatpush2.msra.mxu0 0.0
    %786 = vmatprep.subr.mxu0 0.0
    %787 = vmatpush2.msra.mxu0 0.0
    %788 = vmatprep.subr.mxu0 0.0
    %789 = vmatpush2.msra.mxu0 0.0
    %790 = vmatprep.subr.mxu0 0.0
    %791 = vmatpush2.msra.mxu0 0.0
    %792 = vmatprep.subr.mxu0 0.0
    %793 = vmatpush2.msra.mxu0 0.0
    %794 = vmatprep.subr.mxu0 0.0
    %795 = vmatpush2.msra.mxu0 0.0
    %796 = vmatprep.subr.mxu0 0.0
    %797 = vmatpush2.msra.mxu0 0.0
    %798 = vmatprep.subr.mxu0 0.0
    %799 = vmatpush2.msra.mxu0 0.0
    %800 = vmatprep.subr.mxu0 0.0
    %801 = vmatpush2.msra.mxu0 0.0
    %802 = vmatprep.subr.mxu0 0.0
    %803 = vmatpush2.msra.mxu0 0.0
    %804 = vmatprep.subr.mxu0 0.0
    %805 = vmatpush2.msra.mxu0 0.0
    %806 = vmatprep.mubr.f32.mxu0 0.0
    %807 = vmatmul.mubr.f32.gmra.mxu0 %v734
    %v808 = vpop.f32.mrf.mxu0
    %v809 = vadd.f32 %v730, %v808
    %v810 = vpop.f32.mrf.mxu0
    %v811 = vadd.f32 %v732, %v810
    %812 = vdwg.mxu0
    %s813 = scalar_lea.vmem %s3, 64
    %v814 = vld [vmem:[%s813] sm:$0xff]
    %v815 = vld [vmem:[%s813 + $0x8] sm:$0xff]
    %v816 = vld [vmem:[%s813 + $0x10] sm:$0xf]
    %v817 = vld [vmem:[%s813 + $0x18] sm:$0xf]
    %v818 = vrot.slane %v635, 4
    %v819 = vsel %vm653, %v818, 0
    %v822 = vsel %vm656, %v816, 0
    %v825 = vsel %vm656, %v817, 0
    %827 = vmatprep.subr.mxu0 0.0
    %828 = vmatpush1.msra.mxu0 0.0
    %829 = vmatprep.subr.mxu0 0.0
    %830 = vmatpush1.msra.mxu0 0.0
    %831 = vmatprep.subr.mxu0 0.0
    %832 = vmatpush1.msra.mxu0 0.0
    %833 = vmatprep.subr.mxu0 0.0
    %834 = vmatpush1.msra.mxu0 0.0
    %835 = vmatprep.subr.mxu0 0.0
    %836 = vmatpush1.msra.mxu0 0.0
    %837 = vmatprep.subr.mxu0 0.0
    %838 = vmatpush1.msra.mxu0 0.0
    %839 = vmatprep.subr.mxu0 0.0
    %840 = vmatpush1.msra.mxu0 0.0
    %841 = vmatprep.subr.mxu0 0.0
    %842 = vmatpush1.msra.mxu0 0.0
    %843 = vmatprep.subr.mxu0 0.0
    %844 = vmatpush1.msra.mxu0 0.0
    %845 = vmatprep.subr.mxu0 0.0
    %846 = vmatpush1.msra.mxu0 0.0
    %847 = vmatprep.subr.mxu0 0.0
    %848 = vmatpush1.msra.mxu0 0.0
    %849 = vmatprep.subr.mxu0 0.0
    %850 = vmatpush1.msra.mxu0 0.0
    %851 = vmatprep.subr.mxu0 0.0
    %852 = vmatpush1.msra.mxu0 0.0
    %853 = vmatprep.subr.mxu0 0.0
    %854 = vmatpush1.msra.mxu0 0.0
    %855 = vmatprep.subr.mxu0 %v825
    %856 = vmatpush1.msra.mxu0 %v822
    %857 = vmatprep.subr.mxu0 %v815
    %858 = vmatpush1.msra.mxu0 %v814
    %859 = vmatprep.subr.mxu0 0.0
    %860 = vmatpush2.msra.mxu0 0.0
    %861 = vmatprep.subr.mxu0 0.0
    %862 = vmatpush2.msra.mxu0 0.0
    %863 = vmatprep.subr.mxu0 0.0
    %864 = vmatpush2.msra.mxu0 0.0
    %865 = vmatprep.subr.mxu0 0.0
    %866 = vmatpush2.msra.mxu0 0.0
    %867 = vmatprep.subr.mxu0 0.0
    %868 = vmatpush2.msra.mxu0 0.0
    %869 = vmatprep.subr.mxu0 0.0
    %870 = vmatpush2.msra.mxu0 0.0
    %871 = vmatprep.subr.mxu0 0.0
    %872 = vmatpush2.msra.mxu0 0.0
    %873 = vmatprep.subr.mxu0 0.0
    %874 = vmatpush2.msra.mxu0 0.0
    %875 = vmatprep.subr.mxu0 0.0
    %876 = vmatpush2.msra.mxu0 0.0
    %877 = vmatprep.subr.mxu0 0.0
    %878 = vmatpush2.msra.mxu0 0.0
    %879 = vmatprep.subr.mxu0 0.0
    %880 = vmatpush2.msra.mxu0 0.0
    %881 = vmatprep.subr.mxu0 0.0
    %882 = vmatpush2.msra.mxu0 0.0
    %883 = vmatprep.subr.mxu0 0.0
    %884 = vmatpush2.msra.mxu0 0.0
    %885 = vmatprep.subr.mxu0 0.0
    %886 = vmatpush2.msra.mxu0 0.0
    %887 = vmatprep.subr.mxu0 0.0
    %888 = vmatpush2.msra.mxu0 0.0
    %889 = vmatprep.subr.mxu0 0.0
    %890 = vmatpush2.msra.mxu0 0.0
    %891 = vmatprep.mubr.f32.mxu0 0.0
    %892 = vmatmul.mubr.f32.gmra.mxu0 %v819
    %v893 = vpop.f32.mrf.mxu0
    %v894 = vadd.f32 0.0, %v893
    %v895 = vpop.f32.mrf.mxu0
    %v896 = vadd.f32 0.0, %v895
    %897 = vdwg.mxu0
    %v898 = vadd.f32 %v809, %v894
    %v899 = vadd.f32 %v811, %v896
    %s900 = scalar_lea.vmem %s3, 96
    %v901 = vld [vmem:[%s900] sm:$0xff]
    %v902 = vld [vmem:[%s900 + $0x8] sm:$0xff]
    %v903 = vld [vmem:[%s900 + $0x10] sm:$0xf]
    %v904 = vld [vmem:[%s900 + $0x18] sm:$0xf]
    %v905 = vrot.slane %v635, 6
    %v906 = vsel %vm653, %v905, 0
    %v909 = vsel %vm656, %v903, 0
    %v912 = vsel %vm656, %v904, 0
    %914 = vmatprep.subr.mxu0 0.0
    %915 = vmatpush1.msra.mxu0 0.0
    %916 = vmatprep.subr.mxu0 0.0
    %917 = vmatpush1.msra.mxu0 0.0
    %918 = vmatprep.subr.mxu0 0.0
    %919 = vmatpush1.msra.mxu0 0.0
    %920 = vmatprep.subr.mxu0 0.0
    %921 = vmatpush1.msra.mxu0 0.0
    %922 = vmatprep.subr.mxu0 0.0
    %923 = vmatpush1.msra.mxu0 0.0
    %924 = vmatprep.subr.mxu0 0.0
    %925 = vmatpush1.msra.mxu0 0.0
    %926 = vmatprep.subr.mxu0 0.0
    %927 = vmatpush1.msra.mxu0 0.0
    %928 = vmatprep.subr.mxu0 0.0
    %929 = vmatpush1.msra.mxu0 0.0
    %930 = vmatprep.subr.mxu0 0.0
    %931 = vmatpush1.msra.mxu0 0.0
    %932 = vmatprep.subr.mxu0 0.0
    %933 = vmatpush1.msra.mxu0 0.0
    %934 = vmatprep.subr.mxu0 0.0
    %935 = vmatpush1.msra.mxu0 0.0
    %936 = vmatprep.subr.mxu0 0.0
    %937 = vmatpush1.msra.mxu0 0.0
    %938 = vmatprep.subr.mxu0 0.0
    %939 = vmatpush1.msra.mxu0 0.0
    %940 = vmatprep.subr.mxu0 0.0
    %941 = vmatpush1.msra.mxu0 0.0
    %942 = vmatprep.subr.mxu0 %v912
    %943 = vmatpush1.msra.mxu0 %v909
    %944 = vmatprep.subr.mxu0 %v902
    %945 = vmatpush1.msra.mxu0 %v901
    %946 = vmatprep.subr.mxu0 0.0
    %947 = vmatpush2.msra.mxu0 0.0
    %948 = vmatprep.subr.mxu0 0.0
    %949 = vmatpush2.msra.mxu0 0.0
    %950 = vmatprep.subr.mxu0 0.0
    %951 = vmatpush2.msra.mxu0 0.0
    %952 = vmatprep.subr.mxu0 0.0
    %953 = vmatpush2.msra.mxu0 0.0
    %954 = vmatprep.subr.mxu0 0.0
    %955 = vmatpush2.msra.mxu0 0.0
    %956 = vmatprep.subr.mxu0 0.0
    %957 = vmatpush2.msra.mxu0 0.0
    %958 = vmatprep.subr.mxu0 0.0
    %959 = vmatpush2.msra.mxu0 0.0
    %960 = vmatprep.subr.mxu0 0.0
    %961 = vmatpush2.msra.mxu0 0.0
    %962 = vmatprep.subr.mxu0 0.0
    %963 = vmatpush2.msra.mxu0 0.0
    %964 = vmatprep.subr.mxu0 0.0
    %965 = vmatpush2.msra.mxu0 0.0
    %966 = vmatprep.subr.mxu0 0.0
    %967 = vmatpush2.msra.mxu0 0.0
    %968 = vmatprep.subr.mxu0 0.0
    %969 = vmatpush2.msra.mxu0 0.0
    %970 = vmatprep.subr.mxu0 0.0
    %971 = vmatpush2.msra.mxu0 0.0
    %972 = vmatprep.subr.mxu0 0.0
    %973 = vmatpush2.msra.mxu0 0.0
    %974 = vmatprep.subr.mxu0 0.0
    %975 = vmatpush2.msra.mxu0 0.0
    %976 = vmatprep.subr.mxu0 0.0
    %977 = vmatpush2.msra.mxu0 0.0
    %978 = vmatprep.mubr.f32.mxu0 0.0
    %979 = vmatmul.mubr.f32.gmra.mxu0 %v906
    %v980 = vpop.f32.mrf.mxu0
    %v981 = vadd.f32 0.0, %v980
    %v982 = vpop.f32.mrf.mxu0
    %v983 = vadd.f32 0.0, %v982
    %984 = vdwg.mxu0
    %v985 = vadd.f32 %v898, %v981
    %v986 = vadd.f32 %v899, %v983
    %s987 = scalar_lea.vmem %s3, 128
    %v988 = vld [vmem:[%s987] sm:$0xff]
    %v989 = vld [vmem:[%s987 + $0x8] sm:$0xff]
    %v990 = vld [vmem:[%s987 + $0x10] sm:$0xf]
    %v991 = vld [vmem:[%s987 + $0x18] sm:$0xf]
    %v993 = vsel %vm653, %v636, 0
    %v996 = vsel %vm656, %v990, 0
    %v999 = vsel %vm656, %v991, 0
    %1001 = vmatprep.subr.mxu0 0.0
    %1002 = vmatpush1.msra.mxu0 0.0
    %1003 = vmatprep.subr.mxu0 0.0
    %1004 = vmatpush1.msra.mxu0 0.0
    %1005 = vmatprep.subr.mxu0 0.0
    %1006 = vmatpush1.msra.mxu0 0.0
    %1007 = vmatprep.subr.mxu0 0.0
    %1008 = vmatpush1.msra.mxu0 0.0
    %1009 = vmatprep.subr.mxu0 0.0
    %1010 = vmatpush1.msra.mxu0 0.0
    %1011 = vmatprep.subr.mxu0 0.0
    %1012 = vmatpush1.msra.mxu0 0.0
    %1013 = vmatprep.subr.mxu0 0.0
    %1014 = vmatpush1.msra.mxu0 0.0
    %1015 = vmatprep.subr.mxu0 0.0
    %1016 = vmatpush1.msra.mxu0 0.0
    %1017 = vmatprep.subr.mxu0 0.0
    %1018 = vmatpush1.msra.mxu0 0.0
    %1019 = vmatprep.subr.mxu0 0.0
    %1020 = vmatpush1.msra.mxu0 0.0
    %1021 = vmatprep.subr.mxu0 0.0
    %1022 = vmatpush1.msra.mxu0 0.0
    %1023 = vmatprep.subr.mxu0 0.0
    %1024 = vmatpush1.msra.mxu0 0.0
    %1025 = vmatprep.subr.mxu0 0.0
    %1026 = vmatpush1.msra.mxu0 0.0
    %1027 = vmatprep.subr.mxu0 0.0
    %1028 = vmatpush1.msra.mxu0 0.0
    %1029 = vmatprep.subr.mxu0 %v999
    %1030 = vmatpush1.msra.mxu0 %v996
    %1031 = vmatprep.subr.mxu0 %v989
    %1032 = vmatpush1.msra.mxu0 %v988
    %1033 = vmatprep.subr.mxu0 0.0
    %1034 = vmatpush2.msra.mxu0 0.0
    %1035 = vmatprep.subr.mxu0 0.0
    %1036 = vmatpush2.msra.mxu0 0.0
    %1037 = vmatprep.subr.mxu0 0.0
    %1038 = vmatpush2.msra.mxu0 0.0
    %1039 = vmatprep.subr.mxu0 0.0
    %1040 = vmatpush2.msra.mxu0 0.0
    %1041 = vmatprep.subr.mxu0 0.0
    %1042 = vmatpush2.msra.mxu0 0.0
    %1043 = vmatprep.subr.mxu0 0.0
    %1044 = vmatpush2.msra.mxu0 0.0
    %1045 = vmatprep.subr.mxu0 0.0
    %1046 = vmatpush2.msra.mxu0 0.0
    %1047 = vmatprep.subr.mxu0 0.0
    %1048 = vmatpush2.msra.mxu0 0.0
    %1049 = vmatprep.subr.mxu0 0.0
    %1050 = vmatpush2.msra.mxu0 0.0
    %1051 = vmatprep.subr.mxu0 0.0
    %1052 = vmatpush2.msra.mxu0 0.0
    %1053 = vmatprep.subr.mxu0 0.0
    %1054 = vmatpush2.msra.mxu0 0.0
    %1055 = vmatprep.subr.mxu0 0.0
    %1056 = vmatpush2.msra.mxu0 0.0
    %1057 = vmatprep.subr.mxu0 0.0
    %1058 = vmatpush2.msra.mxu0 0.0
    %1059 = vmatprep.subr.mxu0 0.0
    %1060 = vmatpush2.msra.mxu0 0.0
    %1061 = vmatprep.subr.mxu0 0.0
    %1062 = vmatpush2.msra.mxu0 0.0
    %1063 = vmatprep.subr.mxu0 0.0
    %1064 = vmatpush2.msra.mxu0 0.0
    %1065 = vmatprep.mubr.f32.mxu0 0.0
    %1066 = vmatmul.mubr.f32.gmra.mxu0 %v993
    %v1067 = vpop.f32.mrf.mxu0
    %v1068 = vadd.f32 0.0, %v1067
    %v1069 = vpop.f32.mrf.mxu0
    %v1070 = vadd.f32 0.0, %v1069
    %1071 = vdwg.mxu0
    %v1072 = vadd.f32 %v985, %v1068
    %v1073 = vadd.f32 %v986, %v1070
    %s1074 = scalar_lea.vmem %s3, 160
    %v1075 = vld [vmem:[%s1074] sm:$0xff]
    %v1076 = vld [vmem:[%s1074 + $0x8] sm:$0xff]
    %v1077 = vld [vmem:[%s1074 + $0x10] sm:$0xf]
    %v1078 = vld [vmem:[%s1074 + $0x18] sm:$0xf]
    %v1079 = vrot.slane %v636, 2
    %v1080 = vsel %vm653, %v1079, 0
    %v1083 = vsel %vm656, %v1077, 0
    %v1086 = vsel %vm656, %v1078, 0
    %1088 = vmatprep.subr.mxu0 0.0
    %1089 = vmatpush1.msra.mxu0 0.0
    %1090 = vmatprep.subr.mxu0 0.0
    %1091 = vmatpush1.msra.mxu0 0.0
    %1092 = vmatprep.subr.mxu0 0.0
    %1093 = vmatpush1.msra.mxu0 0.0
    %1094 = vmatprep.subr.mxu0 0.0
    %1095 = vmatpush1.msra.mxu0 0.0
    %1096 = vmatprep.subr.mxu0 0.0
    %1097 = vmatpush1.msra.mxu0 0.0
    %1098 = vmatprep.subr.mxu0 0.0
    %1099 = vmatpush1.msra.mxu0 0.0
    %1100 = vmatprep.subr.mxu0 0.0
    %1101 = vmatpush1.msra.mxu0 0.0
    %1102 = vmatprep.subr.mxu0 0.0
    %1103 = vmatpush1.msra.mxu0 0.0
    %1104 = vmatprep.subr.mxu0 0.0
    %1105 = vmatpush1.msra.mxu0 0.0
    %1106 = vmatprep.subr.mxu0 0.0
    %1107 = vmatpush1.msra.mxu0 0.0
    %1108 = vmatprep.subr.mxu0 0.0
    %1109 = vmatpush1.msra.mxu0 0.0
    %1110 = vmatprep.subr.mxu0 0.0
    %1111 = vmatpush1.msra.mxu0 0.0
    %1112 = vmatprep.subr.mxu0 0.0
    %1113 = vmatpush1.msra.mxu0 0.0
    %1114 = vmatprep.subr.mxu0 0.0
    %1115 = vmatpush1.msra.mxu0 0.0
    %1116 = vmatprep.subr.mxu0 %v1086
    %1117 = vmatpush1.msra.mxu0 %v1083
    %1118 = vmatprep.subr.mxu0 %v1076
    %1119 = vmatpush1.msra.mxu0 %v1075
    %1120 = vmatprep.subr.mxu0 0.0
    %1121 = vmatpush2.msra.mxu0 0.0
    %1122 = vmatprep.subr.mxu0 0.0
    %1123 = vmatpush2.msra.mxu0 0.0
    %1124 = vmatprep.subr.mxu0 0.0
    %1125 = vmatpush2.msra.mxu0 0.0
    %1126 = vmatprep.subr.mxu0 0.0
    %1127 = vmatpush2.msra.mxu0 0.0
    %1128 = vmatprep.subr.mxu0 0.0
    %1129 = vmatpush2.msra.mxu0 0.0
    %1130 = vmatprep.subr.mxu0 0.0
    %1131 = vmatpush2.msra.mxu0 0.0
    %1132 = vmatprep.subr.mxu0 0.0
    %1133 = vmatpush2.msra.mxu0 0.0
    %1134 = vmatprep.subr.mxu0 0.0
    %1135 = vmatpush2.msra.mxu0 0.0
    %1136 = vmatprep.subr.mxu0 0.0
    %1137 = vmatpush2.msra.mxu0 0.0
    %1138 = vmatprep.subr.mxu0 0.0
    %1139 = vmatpush2.msra.mxu0 0.0
    %1140 = vmatprep.subr.mxu0 0.0
    %1141 = vmatpush2.msra.mxu0 0.0
    %1142 = vmatprep.subr.mxu0 0.0
    %1143 = vmatpush2.msra.mxu0 0.0
    %1144 = vmatprep.subr.mxu0 0.0
    %1145 = vmatpush2.msra.mxu0 0.0
    %1146 = vmatprep.subr.mxu0 0.0
    %1147 = vmatpush2.msra.mxu0 0.0
    %1148 = vmatprep.subr.mxu0 0.0
    %1149 = vmatpush2.msra.mxu0 0.0
    %1150 = vmatprep.subr.mxu0 0.0
    %1151 = vmatpush2.msra.mxu0 0.0
    %1152 = vmatprep.mubr.f32.mxu0 0.0
    %1153 = vmatmul.mubr.f32.gmra.mxu0 %v1080
    %v1154 = vpop.f32.mrf.mxu0
    %v1155 = vadd.f32 0.0, %v1154
    %v1156 = vpop.f32.mrf.mxu0
    %v1157 = vadd.f32 0.0, %v1156
    %1158 = vdwg.mxu0
    %v1159 = vadd.f32 %v1072, %v1155
    %v1160 = vadd.f32 %v1073, %v1157
    %s1161 = scalar_lea.vmem %s3, 192
    %v1162 = vld [vmem:[%s1161] sm:$0xff]
    %v1163 = vld [vmem:[%s1161 + $0x8] sm:$0xff]
    %v1164 = vld [vmem:[%s1161 + $0x10] sm:$0xf]
    %v1165 = vld [vmem:[%s1161 + $0x18] sm:$0xf]
    %v1166 = vrot.slane %v636, 4
    %v1167 = vsel %vm653, %v1166, 0
    %v1170 = vsel %vm656, %v1164, 0
    %v1173 = vsel %vm656, %v1165, 0
    %1175 = vmatprep.subr.mxu0 0.0
    %1176 = vmatpush1.msra.mxu0 0.0
    %1177 = vmatprep.subr.mxu0 0.0
    %1178 = vmatpush1.msra.mxu0 0.0
    %1179 = vmatprep.subr.mxu0 0.0
    %1180 = vmatpush1.msra.mxu0 0.0
    %1181 = vmatprep.subr.mxu0 0.0
    %1182 = vmatpush1.msra.mxu0 0.0
    %1183 = vmatprep.subr.mxu0 0.0
    %1184 = vmatpush1.msra.mxu0 0.0
    %1185 = vmatprep.subr.mxu0 0.0
    %1186 = vmatpush1.msra.mxu0 0.0
    %1187 = vmatprep.subr.mxu0 0.0
    %1188 = vmatpush1.msra.mxu0 0.0
    %1189 = vmatprep.subr.mxu0 0.0
    %1190 = vmatpush1.msra.mxu0 0.0
    %1191 = vmatprep.subr.mxu0 0.0
    %1192 = vmatpush1.msra.mxu0 0.0
    %1193 = vmatprep.subr.mxu0 0.0
    %1194 = vmatpush1.msra.mxu0 0.0
    %1195 = vmatprep.subr.mxu0 0.0
    %1196 = vmatpush1.msra.mxu0 0.0
    %1197 = vmatprep.subr.mxu0 0.0
    %1198 = vmatpush1.msra.mxu0 0.0
    %1199 = vmatprep.subr.mxu0 0.0
    %1200 = vmatpush1.msra.mxu0 0.0
    %1201 = vmatprep.subr.mxu0 0.0
    %1202 = vmatpush1.msra.mxu0 0.0
    %1203 = vmatprep.subr.mxu0 %v1173
    %1204 = vmatpush1.msra.mxu0 %v1170
    %1205 = vmatprep.subr.mxu0 %v1163
    %1206 = vmatpush1.msra.mxu0 %v1162
    %1207 = vmatprep.subr.mxu0 0.0
    %1208 = vmatpush2.msra.mxu0 0.0
    %1209 = vmatprep.subr.mxu0 0.0
    %1210 = vmatpush2.msra.mxu0 0.0
    %1211 = vmatprep.subr.mxu0 0.0
    %1212 = vmatpush2.msra.mxu0 0.0
    %1213 = vmatprep.subr.mxu0 0.0
    %1214 = vmatpush2.msra.mxu0 0.0
    %1215 = vmatprep.subr.mxu0 0.0
    %1216 = vmatpush2.msra.mxu0 0.0
    %1217 = vmatprep.subr.mxu0 0.0
    %1218 = vmatpush2.msra.mxu0 0.0
    %1219 = vmatprep.subr.mxu0 0.0
    %1220 = vmatpush2.msra.mxu0 0.0
    %1221 = vmatprep.subr.mxu0 0.0
    %1222 = vmatpush2.msra.mxu0 0.0
    %1223 = vmatprep.subr.mxu0 0.0
    %1224 = vmatpush2.msra.mxu0 0.0
    %1225 = vmatprep.subr.mxu0 0.0
    %1226 = vmatpush2.msra.mxu0 0.0
    %1227 = vmatprep.subr.mxu0 0.0
    %1228 = vmatpush2.msra.mxu0 0.0
    %1229 = vmatprep.subr.mxu0 0.0
    %1230 = vmatpush2.msra.mxu0 0.0
    %1231 = vmatprep.subr.mxu0 0.0
    %1232 = vmatpush2.msra.mxu0 0.0
    %1233 = vmatprep.subr.mxu0 0.0
    %1234 = vmatpush2.msra.mxu0 0.0
    %1235 = vmatprep.subr.mxu0 0.0
    %1236 = vmatpush2.msra.mxu0 0.0
    %1237 = vmatprep.subr.mxu0 0.0
    %1238 = vmatpush2.msra.mxu0 0.0
    %1239 = vmatprep.mubr.f32.mxu0 0.0
    %1240 = vmatmul.mubr.f32.gmra.mxu0 %v1167
    %v1241 = vpop.f32.mrf.mxu0
    %v1242 = vadd.f32 0.0, %v1241
    %v1243 = vpop.f32.mrf.mxu0
    %v1244 = vadd.f32 0.0, %v1243
    %1245 = vdwg.mxu0
    %v1246 = vadd.f32 %v1159, %v1242
    %v1247 = vadd.f32 %v1160, %v1244
    %s1248 = scalar_lea.vmem %s3, 224
    %v1249 = vld [vmem:[%s1248] sm:$0xff]
    %v1250 = vld [vmem:[%s1248 + $0x8] sm:$0xff]
    %v1251 = vld [vmem:[%s1248 + $0x10] sm:$0xf]
    %v1252 = vld [vmem:[%s1248 + $0x18] sm:$0xf]
    %v1253 = vrot.slane %v636, 6
    %v1254 = vsel %vm653, %v1253, 0
    %v1257 = vsel %vm656, %v1251, 0
    %v1260 = vsel %vm656, %v1252, 0
    %1262 = vmatprep.subr.mxu0 0.0
    %1263 = vmatpush1.msra.mxu0 0.0
    %1264 = vmatprep.subr.mxu0 0.0
    %1265 = vmatpush1.msra.mxu0 0.0
    %1266 = vmatprep.subr.mxu0 0.0
    %1267 = vmatpush1.msra.mxu0 0.0
    %1268 = vmatprep.subr.mxu0 0.0
    %1269 = vmatpush1.msra.mxu0 0.0
    %1270 = vmatprep.subr.mxu0 0.0
    %1271 = vmatpush1.msra.mxu0 0.0
    %1272 = vmatprep.subr.mxu0 0.0
    %1273 = vmatpush1.msra.mxu0 0.0
    %1274 = vmatprep.subr.mxu0 0.0
    %1275 = vmatpush1.msra.mxu0 0.0
    %1276 = vmatprep.subr.mxu0 0.0
    %1277 = vmatpush1.msra.mxu0 0.0
    %1278 = vmatprep.subr.mxu0 0.0
    %1279 = vmatpush1.msra.mxu0 0.0
    %1280 = vmatprep.subr.mxu0 0.0
    %1281 = vmatpush1.msra.mxu0 0.0
    %1282 = vmatprep.subr.mxu0 0.0
    %1283 = vmatpush1.msra.mxu0 0.0
    %1284 = vmatprep.subr.mxu0 0.0
    %1285 = vmatpush1.msra.mxu0 0.0
    %1286 = vmatprep.subr.mxu0 0.0
    %1287 = vmatpush1.msra.mxu0 0.0
    %1288 = vmatprep.subr.mxu0 0.0
    %1289 = vmatpush1.msra.mxu0 0.0
    %1290 = vmatprep.subr.mxu0 %v1260
    %1291 = vmatpush1.msra.mxu0 %v1257
    %1292 = vmatprep.subr.mxu0 %v1250
    %1293 = vmatpush1.msra.mxu0 %v1249
    %1294 = vmatprep.subr.mxu0 0.0
    %1295 = vmatpush2.msra.mxu0 0.0
    %1296 = vmatprep.subr.mxu0 0.0
    %1297 = vmatpush2.msra.mxu0 0.0
    %1298 = vmatprep.subr.mxu0 0.0
    %1299 = vmatpush2.msra.mxu0 0.0
    %1300 = vmatprep.subr.mxu0 0.0
    %1301 = vmatpush2.msra.mxu0 0.0
    %1302 = vmatprep.subr.mxu0 0.0
    %1303 = vmatpush2.msra.mxu0 0.0
    %1304 = vmatprep.subr.mxu0 0.0
    %1305 = vmatpush2.msra.mxu0 0.0
    %1306 = vmatprep.subr.mxu0 0.0
    %1307 = vmatpush2.msra.mxu0 0.0
    %1308 = vmatprep.subr.mxu0 0.0
    %1309 = vmatpush2.msra.mxu0 0.0
    %1310 = vmatprep.subr.mxu0 0.0
    %1311 = vmatpush2.msra.mxu0 0.0
    %1312 = vmatprep.subr.mxu0 0.0
    %1313 = vmatpush2.msra.mxu0 0.0
    %1314 = vmatprep.subr.mxu0 0.0
    %1315 = vmatpush2.msra.mxu0 0.0
    %1316 = vmatprep.subr.mxu0 0.0
    %1317 = vmatpush2.msra.mxu0 0.0
    %1318 = vmatprep.subr.mxu0 0.0
    %1319 = vmatpush2.msra.mxu0 0.0
    %1320 = vmatprep.subr.mxu0 0.0
    %1321 = vmatpush2.msra.mxu0 0.0
    %1322 = vmatprep.subr.mxu0 0.0
    %1323 = vmatpush2.msra.mxu0 0.0
    %1324 = vmatprep.subr.mxu0 0.0
    %1325 = vmatpush2.msra.mxu0 0.0
    %1326 = vmatprep.mubr.f32.mxu0 0.0
    %1327 = vmatmul.mubr.f32.gmra.mxu0 %v1254
    %v1328 = vpop.f32.mrf.mxu0
    %v1329 = vadd.f32 0.0, %v1328
    %v1330 = vpop.f32.mrf.mxu0
    %v1331 = vadd.f32 0.0, %v1330
    %1332 = vdwg.mxu0
    %v1333 = vadd.f32 %v1246, %v1329
    %v1334 = vadd.f32 %v1247, %v1331
    %s1335 = scalar_lea.vmem %s3, 256
    %v1336 = vld [vmem:[%s1335] sm:$0xff]
    %v1337 = vld [vmem:[%s1335 + $0x8] sm:$0xff]
    %v1338 = vld [vmem:[%s1335 + $0x10] sm:$0xf]
    %v1339 = vld [vmem:[%s1335 + $0x18] sm:$0xf]
    %v1341 = vsel %vm653, %v637, 0
    %v1344 = vsel %vm656, %v1338, 0
    %v1347 = vsel %vm656, %v1339, 0
    %1349 = vmatprep.subr.mxu0 0.0
    %1350 = vmatpush1.msra.mxu0 0.0
    %1351 = vmatprep.subr.mxu0 0.0
    %1352 = vmatpush1.msra.mxu0 0.0
    %1353 = vmatprep.subr.mxu0 0.0
    %1354 = vmatpush1.msra.mxu0 0.0
    %1355 = vmatprep.subr.mxu0 0.0
    %1356 = vmatpush1.msra.mxu0 0.0
    %1357 = vmatprep.subr.mxu0 0.0
    %1358 = vmatpush1.msra.mxu0 0.0
    %1359 = vmatprep.subr.mxu0 0.0
    %1360 = vmatpush1.msra.mxu0 0.0
    %1361 = vmatprep.subr.mxu0 0.0
    %1362 = vmatpush1.msra.mxu0 0.0
    %1363 = vmatprep.subr.mxu0 0.0
    %1364 = vmatpush1.msra.mxu0 0.0
    %1365 = vmatprep.subr.mxu0 0.0
    %1366 = vmatpush1.msra.mxu0 0.0
    %1367 = vmatprep.subr.mxu0 0.0
    %1368 = vmatpush1.msra.mxu0 0.0
    %1369 = vmatprep.subr.mxu0 0.0
    %1370 = vmatpush1.msra.mxu0 0.0
    %1371 = vmatprep.subr.mxu0 0.0
    %1372 = vmatpush1.msra.mxu0 0.0
    %1373 = vmatprep.subr.mxu0 0.0
    %1374 = vmatpush1.msra.mxu0 0.0
    %1375 = vmatprep.subr.mxu0 0.0
    %1376 = vmatpush1.msra.mxu0 0.0
    %1377 = vmatprep.subr.mxu0 %v1347
    %1378 = vmatpush1.msra.mxu0 %v1344
    %1379 = vmatprep.subr.mxu0 %v1337
    %1380 = vmatpush1.msra.mxu0 %v1336
    %1381 = vmatprep.subr.mxu0 0.0
    %1382 = vmatpush2.msra.mxu0 0.0
    %1383 = vmatprep.subr.mxu0 0.0
    %1384 = vmatpush2.msra.mxu0 0.0
    %1385 = vmatprep.subr.mxu0 0.0
    %1386 = vmatpush2.msra.mxu0 0.0
    %1387 = vmatprep.subr.mxu0 0.0
    %1388 = vmatpush2.msra.mxu0 0.0
    %1389 = vmatprep.subr.mxu0 0.0
    %1390 = vmatpush2.msra.mxu0 0.0
    %1391 = vmatprep.subr.mxu0 0.0
    %1392 = vmatpush2.msra.mxu0 0.0
    %1393 = vmatprep.subr.mxu0 0.0
    %1394 = vmatpush2.msra.mxu0 0.0
    %1395 = vmatprep.subr.mxu0 0.0
    %1396 = vmatpush2.msra.mxu0 0.0
    %1397 = vmatprep.subr.mxu0 0.0
    %1398 = vmatpush2.msra.mxu0 0.0
    %1399 = vmatprep.subr.mxu0 0.0
    %1400 = vmatpush2.msra.mxu0 0.0
    %1401 = vmatprep.subr.mxu0 0.0
    %1402 = vmatpush2.msra.mxu0 0.0
    %1403 = vmatprep.subr.mxu0 0.0
    %1404 = vmatpush2.msra.mxu0 0.0
    %1405 = vmatprep.subr.mxu0 0.0
    %1406 = vmatpush2.msra.mxu0 0.0
    %1407 = vmatprep.subr.mxu0 0.0
    %1408 = vmatpush2.msra.mxu0 0.0
    %1409 = vmatprep.subr.mxu0 0.0
    %1410 = vmatpush2.msra.mxu0 0.0
    %1411 = vmatprep.subr.mxu0 0.0
    %1412 = vmatpush2.msra.mxu0 0.0
    %1413 = vmatprep.mubr.f32.mxu0 0.0
    %1414 = vmatmul.mubr.f32.gmra.mxu0 %v1341
    %v1415 = vpop.f32.mrf.mxu0
    %v1416 = vadd.f32 0.0, %v1415
    %v1417 = vpop.f32.mrf.mxu0
    %v1418 = vadd.f32 0.0, %v1417
    %1419 = vdwg.mxu0
    %v1420 = vadd.f32 %v1333, %v1416
    %v1421 = vadd.f32 %v1334, %v1418
    %s1422 = scalar_lea.vmem %s3, 288
    %v1423 = vld [vmem:[%s1422] sm:$0xff]
    %v1424 = vld [vmem:[%s1422 + $0x8] sm:$0xff]
    %v1425 = vld [vmem:[%s1422 + $0x10] sm:$0xf]
    %v1426 = vld [vmem:[%s1422 + $0x18] sm:$0xf]
    %v1427 = vrot.slane %v637, 2
    %v1428 = vsel %vm653, %v1427, 0
    %v1431 = vsel %vm656, %v1425, 0
    %v1434 = vsel %vm656, %v1426, 0
    %1436 = vmatprep.subr.mxu0 0.0
    %1437 = vmatpush1.msra.mxu0 0.0
    %1438 = vmatprep.subr.mxu0 0.0
    %1439 = vmatpush1.msra.mxu0 0.0
    %1440 = vmatprep.subr.mxu0 0.0
    %1441 = vmatpush1.msra.mxu0 0.0
    %1442 = vmatprep.subr.mxu0 0.0
    %1443 = vmatpush1.msra.mxu0 0.0
    %1444 = vmatprep.subr.mxu0 0.0
    %1445 = vmatpush1.msra.mxu0 0.0
    %1446 = vmatprep.subr.mxu0 0.0
    %1447 = vmatpush1.msra.mxu0 0.0
    %1448 = vmatprep.subr.mxu0 0.0
    %1449 = vmatpush1.msra.mxu0 0.0
    %1450 = vmatprep.subr.mxu0 0.0
    %1451 = vmatpush1.msra.mxu0 0.0
    %1452 = vmatprep.subr.mxu0 0.0
    %1453 = vmatpush1.msra.mxu0 0.0
    %1454 = vmatprep.subr.mxu0 0.0
    %1455 = vmatpush1.msra.mxu0 0.0
    %1456 = vmatprep.subr.mxu0 0.0
    %1457 = vmatpush1.msra.mxu0 0.0
    %1458 = vmatprep.subr.mxu0 0.0
    %1459 = vmatpush1.msra.mxu0 0.0
    %1460 = vmatprep.subr.mxu0 0.0
    %1461 = vmatpush1.msra.mxu0 0.0
    %1462 = vmatprep.subr.mxu0 0.0
    %1463 = vmatpush1.msra.mxu0 0.0
    %1464 = vmatprep.subr.mxu0 %v1434
    %1465 = vmatpush1.msra.mxu0 %v1431
    %1466 = vmatprep.subr.mxu0 %v1424
    %1467 = vmatpush1.msra.mxu0 %v1423
    %1468 = vmatprep.subr.mxu0 0.0
    %1469 = vmatpush2.msra.mxu0 0.0
    %1470 = vmatprep.subr.mxu0 0.0
    %1471 = vmatpush2.msra.mxu0 0.0
    %1472 = vmatprep.subr.mxu0 0.0
    %1473 = vmatpush2.msra.mxu0 0.0
    %1474 = vmatprep.subr.mxu0 0.0
    %1475 = vmatpush2.msra.mxu0 0.0
    %1476 = vmatprep.subr.mxu0 0.0
    %1477 = vmatpush2.msra.mxu0 0.0
    %1478 = vmatprep.subr.mxu0 0.0
    %1479 = vmatpush2.msra.mxu0 0.0
    %1480 = vmatprep.subr.mxu0 0.0
    %1481 = vmatpush2.msra.mxu0 0.0
    %1482 = vmatprep.subr.mxu0 0.0
    %1483 = vmatpush2.msra.mxu0 0.0
    %1484 = vmatprep.subr.mxu0 0.0
    %1485 = vmatpush2.msra.mxu0 0.0
    %1486 = vmatprep.subr.mxu0 0.0
    %1487 = vmatpush2.msra.mxu0 0.0
    %1488 = vmatprep.subr.mxu0 0.0
    %1489 = vmatpush2.msra.mxu0 0.0
    %1490 = vmatprep.subr.mxu0 0.0
    %1491 = vmatpush2.msra.mxu0 0.0
    %1492 = vmatprep.subr.mxu0 0.0
    %1493 = vmatpush2.msra.mxu0 0.0
    %1494 = vmatprep.subr.mxu0 0.0
    %1495 = vmatpush2.msra.mxu0 0.0
    %1496 = vmatprep.subr.mxu0 0.0
    %1497 = vmatpush2.msra.mxu0 0.0
    %1498 = vmatprep.subr.mxu0 0.0
    %1499 = vmatpush2.msra.mxu0 0.0
    %1500 = vmatprep.mubr.f32.mxu0 0.0
    %1501 = vmatmul.mubr.f32.gmra.mxu0 %v1428
    %v1502 = vpop.f32.mrf.mxu0
    %v1503 = vadd.f32 0.0, %v1502
    %v1504 = vpop.f32.mrf.mxu0
    %v1505 = vadd.f32 0.0, %v1504
    %1506 = vdwg.mxu0
    %v1507 = vadd.f32 %v1420, %v1503
    %v1508 = vadd.f32 %v1421, %v1505
    %s1509 = scalar_lea.vmem %s3, 320
    %v1510 = vld [vmem:[%s1509] sm:$0xff]
    %v1511 = vld [vmem:[%s1509 + $0x8] sm:$0xff]
    %v1512 = vld [vmem:[%s1509 + $0x10] sm:$0xf]
    %v1513 = vld [vmem:[%s1509 + $0x18] sm:$0xf]
    %v1514 = vrot.slane %v637, 4
    %v1515 = vsel %vm653, %v1514, 0
    %v1518 = vsel %vm656, %v1512, 0
    %v1521 = vsel %vm656, %v1513, 0
    %1523 = vmatprep.subr.mxu0 0.0
    %1524 = vmatpush1.msra.mxu0 0.0
    %1525 = vmatprep.subr.mxu0 0.0
    %1526 = vmatpush1.msra.mxu0 0.0
    %1527 = vmatprep.subr.mxu0 0.0
    %1528 = vmatpush1.msra.mxu0 0.0
    %1529 = vmatprep.subr.mxu0 0.0
    %1530 = vmatpush1.msra.mxu0 0.0
    %1531 = vmatprep.subr.mxu0 0.0
    %1532 = vmatpush1.msra.mxu0 0.0
    %1533 = vmatprep.subr.mxu0 0.0
    %1534 = vmatpush1.msra.mxu0 0.0
    %1535 = vmatprep.subr.mxu0 0.0
    %1536 = vmatpush1.msra.mxu0 0.0
    %1537 = vmatprep.subr.mxu0 0.0
    %1538 = vmatpush1.msra.mxu0 0.0
    %1539 = vmatprep.subr.mxu0 0.0
    %1540 = vmatpush1.msra.mxu0 0.0
    %1541 = vmatprep.subr.mxu0 0.0
    %1542 = vmatpush1.msra.mxu0 0.0
    %1543 = vmatprep.subr.mxu0 0.0
    %1544 = vmatpush1.msra.mxu0 0.0
    %1545 = vmatprep.subr.mxu0 0.0
    %1546 = vmatpush1.msra.mxu0 0.0
    %1547 = vmatprep.subr.mxu0 0.0
    %1548 = vmatpush1.msra.mxu0 0.0
    %1549 = vmatprep.subr.mxu0 0.0
    %1550 = vmatpush1.msra.mxu0 0.0
    %1551 = vmatprep.subr.mxu0 %v1521
    %1552 = vmatpush1.msra.mxu0 %v1518
    %1553 = vmatprep.subr.mxu0 %v1511
    %1554 = vmatpush1.msra.mxu0 %v1510
    %1555 = vmatprep.subr.mxu0 0.0
    %1556 = vmatpush2.msra.mxu0 0.0
    %1557 = vmatprep.subr.mxu0 0.0
    %1558 = vmatpush2.msra.mxu0 0.0
    %1559 = vmatprep.subr.mxu0 0.0
    %1560 = vmatpush2.msra.mxu0 0.0
    %1561 = vmatprep.subr.mxu0 0.0
    %1562 = vmatpush2.msra.mxu0 0.0
    %1563 = vmatprep.subr.mxu0 0.0
    %1564 = vmatpush2.msra.mxu0 0.0
    %1565 = vmatprep.subr.mxu0 0.0
    %1566 = vmatpush2.msra.mxu0 0.0
    %1567 = vmatprep.subr.mxu0 0.0
    %1568 = vmatpush2.msra.mxu0 0.0
    %1569 = vmatprep.subr.mxu0 0.0
    %1570 = vmatpush2.msra.mxu0 0.0
    %1571 = vmatprep.subr.mxu0 0.0
    %1572 = vmatpush2.msra.mxu0 0.0
    %1573 = vmatprep.subr.mxu0 0.0
    %1574 = vmatpush2.msra.mxu0 0.0
    %1575 = vmatprep.subr.mxu0 0.0
    %1576 = vmatpush2.msra.mxu0 0.0
    %1577 = vmatprep.subr.mxu0 0.0
    %1578 = vmatpush2.msra.mxu0 0.0
    %1579 = vmatprep.subr.mxu0 0.0
    %1580 = vmatpush2.msra.mxu0 0.0
    %1581 = vmatprep.subr.mxu0 0.0
    %1582 = vmatpush2.msra.mxu0 0.0
    %1583 = vmatprep.subr.mxu0 0.0
    %1584 = vmatpush2.msra.mxu0 0.0
    %1585 = vmatprep.subr.mxu0 0.0
    %1586 = vmatpush2.msra.mxu0 0.0
    %1587 = vmatprep.mubr.f32.mxu0 0.0
    %1588 = vmatmul.mubr.f32.gmra.mxu0 %v1515
    %v1589 = vpop.f32.mrf.mxu0
    %v1590 = vadd.f32 0.0, %v1589
    %v1591 = vpop.f32.mrf.mxu0
    %v1592 = vadd.f32 0.0, %v1591
    %1593 = vdwg.mxu0
    %v1594 = vadd.f32 %v1507, %v1590
    %v1595 = vadd.f32 %v1508, %v1592
    %s1596 = scalar_lea.vmem %s3, 352
    %v1597 = vld [vmem:[%s1596] sm:$0xff]
    %v1598 = vld [vmem:[%s1596 + $0x8] sm:$0xff]
    %v1599 = vld [vmem:[%s1596 + $0x10] sm:$0xf]
    %v1600 = vld [vmem:[%s1596 + $0x18] sm:$0xf]
    %v1601 = vrot.slane %v637, 6
    %v1602 = vsel %vm653, %v1601, 0
    %v1605 = vsel %vm656, %v1599, 0
    %v1608 = vsel %vm656, %v1600, 0
    %1610 = vmatprep.subr.mxu0 0.0
    %1611 = vmatpush1.msra.mxu0 0.0
    %1612 = vmatprep.subr.mxu0 0.0
    %1613 = vmatpush1.msra.mxu0 0.0
    %1614 = vmatprep.subr.mxu0 0.0
    %1615 = vmatpush1.msra.mxu0 0.0
    %1616 = vmatprep.subr.mxu0 0.0
    %1617 = vmatpush1.msra.mxu0 0.0
    %1618 = vmatprep.subr.mxu0 0.0
    %1619 = vmatpush1.msra.mxu0 0.0
    %1620 = vmatprep.subr.mxu0 0.0
    %1621 = vmatpush1.msra.mxu0 0.0
    %1622 = vmatprep.subr.mxu0 0.0
    %1623 = vmatpush1.msra.mxu0 0.0
    %1624 = vmatprep.subr.mxu0 0.0
    %1625 = vmatpush1.msra.mxu0 0.0
    %1626 = vmatprep.subr.mxu0 0.0
    %1627 = vmatpush1.msra.mxu0 0.0
    %1628 = vmatprep.subr.mxu0 0.0
    %1629 = vmatpush1.msra.mxu0 0.0
    %1630 = vmatprep.subr.mxu0 0.0
    %1631 = vmatpush1.msra.mxu0 0.0
    %1632 = vmatprep.subr.mxu0 0.0
    %1633 = vmatpush1.msra.mxu0 0.0
    %1634 = vmatprep.subr.mxu0 0.0
    %1635 = vmatpush1.msra.mxu0 0.0
    %1636 = vmatprep.subr.mxu0 0.0
    %1637 = vmatpush1.msra.mxu0 0.0
    %1638 = vmatprep.subr.mxu0 %v1608
    %1639 = vmatpush1.msra.mxu0 %v1605
    %1640 = vmatprep.subr.mxu0 %v1598
    %1641 = vmatpush1.msra.mxu0 %v1597
    %1642 = vmatprep.subr.mxu0 0.0
    %1643 = vmatpush2.msra.mxu0 0.0
    %1644 = vmatprep.subr.mxu0 0.0
    %1645 = vmatpush2.msra.mxu0 0.0
    %1646 = vmatprep.subr.mxu0 0.0
    %1647 = vmatpush2.msra.mxu0 0.0
    %1648 = vmatprep.subr.mxu0 0.0
    %1649 = vmatpush2.msra.mxu0 0.0
    %1650 = vmatprep.subr.mxu0 0.0
    %1651 = vmatpush2.msra.mxu0 0.0
    %1652 = vmatprep.subr.mxu0 0.0
    %1653 = vmatpush2.msra.mxu0 0.0
    %1654 = vmatprep.subr.mxu0 0.0
    %1655 = vmatpush2.msra.mxu0 0.0
    %1656 = vmatprep.subr.mxu0 0.0
    %1657 = vmatpush2.msra.mxu0 0.0
    %1658 = vmatprep.subr.mxu0 0.0
    %1659 = vmatpush2.msra.mxu0 0.0
    %1660 = vmatprep.subr.mxu0 0.0
    %1661 = vmatpush2.msra.mxu0 0.0
    %1662 = vmatprep.subr.mxu0 0.0
    %1663 = vmatpush2.msra.mxu0 0.0
    %1664 = vmatprep.subr.mxu0 0.0
    %1665 = vmatpush2.msra.mxu0 0.0
    %1666 = vmatprep.subr.mxu0 0.0
    %1667 = vmatpush2.msra.mxu0 0.0
    %1668 = vmatprep.subr.mxu0 0.0
    %1669 = vmatpush2.msra.mxu0 0.0
    %1670 = vmatprep.subr.mxu0 0.0
    %1671 = vmatpush2.msra.mxu0 0.0
    %1672 = vmatprep.subr.mxu0 0.0
    %1673 = vmatpush2.msra.mxu0 0.0
    %1674 = vmatprep.mubr.f32.mxu0 0.0
    %1675 = vmatmul.mubr.f32.gmra.mxu0 %v1602
    %v1676 = vpop.f32.mrf.mxu0
    %v1677 = vadd.f32 0.0, %v1676
    %v1678 = vpop.f32.mrf.mxu0
    %v1679 = vadd.f32 0.0, %v1678
    %1680 = vdwg.mxu0
    %v1681 = vadd.f32 %v1594, %v1677
    %v1682 = vadd.f32 %v1595, %v1679
    %s1683 = scalar_lea.vmem %s3, 384
    %v1684 = vld [vmem:[%s1683] sm:$0xff]
    %v1685 = vld [vmem:[%s1683 + $0x8] sm:$0xff]
    %v1686 = vld [vmem:[%s1683 + $0x10] sm:$0xf]
    %v1687 = vld [vmem:[%s1683 + $0x18] sm:$0xf]
    %v1689 = vsel %vm653, %v638, 0
    %v1692 = vsel %vm656, %v1686, 0
    %v1695 = vsel %vm656, %v1687, 0
    %1697 = vmatprep.subr.mxu0 0.0
    %1698 = vmatpush1.msra.mxu0 0.0
    %1699 = vmatprep.subr.mxu0 0.0
    %1700 = vmatpush1.msra.mxu0 0.0
    %1701 = vmatprep.subr.mxu0 0.0
    %1702 = vmatpush1.msra.mxu0 0.0
    %1703 = vmatprep.subr.mxu0 0.0
    %1704 = vmatpush1.msra.mxu0 0.0
    %1705 = vmatprep.subr.mxu0 0.0
    %1706 = vmatpush1.msra.mxu0 0.0
    %1707 = vmatprep.subr.mxu0 0.0
    %1708 = vmatpush1.msra.mxu0 0.0
    %1709 = vmatprep.subr.mxu0 0.0
    %1710 = vmatpush1.msra.mxu0 0.0
    %1711 = vmatprep.subr.mxu0 0.0
    %1712 = vmatpush1.msra.mxu0 0.0
    %1713 = vmatprep.subr.mxu0 0.0
    %1714 = vmatpush1.msra.mxu0 0.0
    %1715 = vmatprep.subr.mxu0 0.0
    %1716 = vmatpush1.msra.mxu0 0.0
    %1717 = vmatprep.subr.mxu0 0.0
    %1718 = vmatpush1.msra.mxu0 0.0
    %1719 = vmatprep.subr.mxu0 0.0
    %1720 = vmatpush1.msra.mxu0 0.0
    %1721 = vmatprep.subr.mxu0 0.0
    %1722 = vmatpush1.msra.mxu0 0.0
    %1723 = vmatprep.subr.mxu0 0.0
    %1724 = vmatpush1.msra.mxu0 0.0
    %1725 = vmatprep.subr.mxu0 %v1695
    %1726 = vmatpush1.msra.mxu0 %v1692
    %1727 = vmatprep.subr.mxu0 %v1685
    %1728 = vmatpush1.msra.mxu0 %v1684
    %1729 = vmatprep.subr.mxu0 0.0
    %1730 = vmatpush2.msra.mxu0 0.0
    %1731 = vmatprep.subr.mxu0 0.0
    %1732 = vmatpush2.msra.mxu0 0.0
    %1733 = vmatprep.subr.mxu0 0.0
    %1734 = vmatpush2.msra.mxu0 0.0
    %1735 = vmatprep.subr.mxu0 0.0
    %1736 = vmatpush2.msra.mxu0 0.0
    %1737 = vmatprep.subr.mxu0 0.0
    %1738 = vmatpush2.msra.mxu0 0.0
    %1739 = vmatprep.subr.mxu0 0.0
    %1740 = vmatpush2.msra.mxu0 0.0
    %1741 = vmatprep.subr.mxu0 0.0
    %1742 = vmatpush2.msra.mxu0 0.0
    %1743 = vmatprep.subr.mxu0 0.0
    %1744 = vmatpush2.msra.mxu0 0.0
    %1745 = vmatprep.subr.mxu0 0.0
    %1746 = vmatpush2.msra.mxu0 0.0
    %1747 = vmatprep.subr.mxu0 0.0
    %1748 = vmatpush2.msra.mxu0 0.0
    %1749 = vmatprep.subr.mxu0 0.0
    %1750 = vmatpush2.msra.mxu0 0.0
    %1751 = vmatprep.subr.mxu0 0.0
    %1752 = vmatpush2.msra.mxu0 0.0
    %1753 = vmatprep.subr.mxu0 0.0
    %1754 = vmatpush2.msra.mxu0 0.0
    %1755 = vmatprep.subr.mxu0 0.0
    %1756 = vmatpush2.msra.mxu0 0.0
    %1757 = vmatprep.subr.mxu0 0.0
    %1758 = vmatpush2.msra.mxu0 0.0
    %1759 = vmatprep.subr.mxu0 0.0
    %1760 = vmatpush2.msra.mxu0 0.0
    %1761 = vmatprep.mubr.f32.mxu0 0.0
    %1762 = vmatmul.mubr.f32.gmra.mxu0 %v1689
    %v1763 = vpop.f32.mrf.mxu0
    %v1764 = vadd.f32 0.0, %v1763
    %v1765 = vpop.f32.mrf.mxu0
    %v1766 = vadd.f32 0.0, %v1765
    %1767 = vdwg.mxu0
    %v1768 = vadd.f32 %v1681, %v1764
    %v1769 = vadd.f32 %v1682, %v1766
    %s1770 = scalar_lea.vmem %s3, 416
    %v1771 = vld [vmem:[%s1770] sm:$0xff]
    %v1772 = vld [vmem:[%s1770 + $0x8] sm:$0xff]
    %v1773 = vld [vmem:[%s1770 + $0x10] sm:$0xf]
    %v1774 = vld [vmem:[%s1770 + $0x18] sm:$0xf]
    %v1775 = vrot.slane %v638, 2
    %v1776 = vsel %vm653, %v1775, 0
    %v1779 = vsel %vm656, %v1773, 0
    %v1782 = vsel %vm656, %v1774, 0
    %1784 = vmatprep.subr.mxu0 0.0
    %1785 = vmatpush1.msra.mxu0 0.0
    %1786 = vmatprep.subr.mxu0 0.0
    %1787 = vmatpush1.msra.mxu0 0.0
    %1788 = vmatprep.subr.mxu0 0.0
    %1789 = vmatpush1.msra.mxu0 0.0
    %1790 = vmatprep.subr.mxu0 0.0
    %1791 = vmatpush1.msra.mxu0 0.0
    %1792 = vmatprep.subr.mxu0 0.0
    %1793 = vmatpush1.msra.mxu0 0.0
    %1794 = vmatprep.subr.mxu0 0.0
    %1795 = vmatpush1.msra.mxu0 0.0
    %1796 = vmatprep.subr.mxu0 0.0
    %1797 = vmatpush1.msra.mxu0 0.0
    %1798 = vmatprep.subr.mxu0 0.0
    %1799 = vmatpush1.msra.mxu0 0.0
    %1800 = vmatprep.subr.mxu0 0.0
    %1801 = vmatpush1.msra.mxu0 0.0
    %1802 = vmatprep.subr.mxu0 0.0
    %1803 = vmatpush1.msra.mxu0 0.0
    %1804 = vmatprep.subr.mxu0 0.0
    %1805 = vmatpush1.msra.mxu0 0.0
    %1806 = vmatprep.subr.mxu0 0.0
    %1807 = vmatpush1.msra.mxu0 0.0
    %1808 = vmatprep.subr.mxu0 0.0
    %1809 = vmatpush1.msra.mxu0 0.0
    %1810 = vmatprep.subr.mxu0 0.0
    %1811 = vmatpush1.msra.mxu0 0.0
    %1812 = vmatprep.subr.mxu0 %v1782
    %1813 = vmatpush1.msra.mxu0 %v1779
    %1814 = vmatprep.subr.mxu0 %v1772
    %1815 = vmatpush1.msra.mxu0 %v1771
    %1816 = vmatprep.subr.mxu0 0.0
    %1817 = vmatpush2.msra.mxu0 0.0
    %1818 = vmatprep.subr.mxu0 0.0
    %1819 = vmatpush2.msra.mxu0 0.0
    %1820 = vmatprep.subr.mxu0 0.0
    %1821 = vmatpush2.msra.mxu0 0.0
    %1822 = vmatprep.subr.mxu0 0.0
    %1823 = vmatpush2.msra.mxu0 0.0
    %1824 = vmatprep.subr.mxu0 0.0
    %1825 = vmatpush2.msra.mxu0 0.0
    %1826 = vmatprep.subr.mxu0 0.0
    %1827 = vmatpush2.msra.mxu0 0.0
    %1828 = vmatprep.subr.mxu0 0.0
    %1829 = vmatpush2.msra.mxu0 0.0
    %1830 = vmatprep.subr.mxu0 0.0
    %1831 = vmatpush2.msra.mxu0 0.0
    %1832 = vmatprep.subr.mxu0 0.0
    %1833 = vmatpush2.msra.mxu0 0.0
    %1834 = vmatprep.subr.mxu0 0.0
    %1835 = vmatpush2.msra.mxu0 0.0
    %1836 = vmatprep.subr.mxu0 0.0
    %1837 = vmatpush2.msra.mxu0 0.0
    %1838 = vmatprep.subr.mxu0 0.0
    %1839 = vmatpush2.msra.mxu0 0.0
    %1840 = vmatprep.subr.mxu0 0.0
    %1841 = vmatpush2.msra.mxu0 0.0
    %1842 = vmatprep.subr.mxu0 0.0
    %1843 = vmatpush2.msra.mxu0 0.0
    %1844 = vmatprep.subr.mxu0 0.0
    %1845 = vmatpush2.msra.mxu0 0.0
    %1846 = vmatprep.subr.mxu0 0.0
    %1847 = vmatpush2.msra.mxu0 0.0
    %1848 = vmatprep.mubr.f32.mxu0 0.0
    %1849 = vmatmul.mubr.f32.gmra.mxu0 %v1776
    %v1850 = vpop.f32.mrf.mxu0
    %v1851 = vadd.f32 0.0, %v1850
    %v1852 = vpop.f32.mrf.mxu0
    %v1853 = vadd.f32 0.0, %v1852
    %1854 = vdwg.mxu0
    %v1855 = vadd.f32 %v1768, %v1851
    %v1856 = vadd.f32 %v1769, %v1853
    %s1857 = scalar_lea.vmem %s3, 448
    %v1858 = vld [vmem:[%s1857] sm:$0xff]
    %v1859 = vld [vmem:[%s1857 + $0x8] sm:$0xff]
    %v1860 = vld [vmem:[%s1857 + $0x10] sm:$0xf]
    %v1861 = vld [vmem:[%s1857 + $0x18] sm:$0xf]
    %v1862 = vrot.slane %v638, 4
    %v1863 = vsel %vm653, %v1862, 0
    %v1866 = vsel %vm656, %v1860, 0
    %v1869 = vsel %vm656, %v1861, 0
    %1871 = vmatprep.subr.mxu0 0.0
    %1872 = vmatpush1.msra.mxu0 0.0
    %1873 = vmatprep.subr.mxu0 0.0
    %1874 = vmatpush1.msra.mxu0 0.0
    %1875 = vmatprep.subr.mxu0 0.0
    %1876 = vmatpush1.msra.mxu0 0.0
    %1877 = vmatprep.subr.mxu0 0.0
    %1878 = vmatpush1.msra.mxu0 0.0
    %1879 = vmatprep.subr.mxu0 0.0
    %1880 = vmatpush1.msra.mxu0 0.0
    %1881 = vmatprep.subr.mxu0 0.0
    %1882 = vmatpush1.msra.mxu0 0.0
    %1883 = vmatprep.subr.mxu0 0.0
    %1884 = vmatpush1.msra.mxu0 0.0
    %1885 = vmatprep.subr.mxu0 0.0
    %1886 = vmatpush1.msra.mxu0 0.0
    %1887 = vmatprep.subr.mxu0 0.0
    %1888 = vmatpush1.msra.mxu0 0.0
    %1889 = vmatprep.subr.mxu0 0.0
    %1890 = vmatpush1.msra.mxu0 0.0
    %1891 = vmatprep.subr.mxu0 0.0
    %1892 = vmatpush1.msra.mxu0 0.0
    %1893 = vmatprep.subr.mxu0 0.0
    %1894 = vmatpush1.msra.mxu0 0.0
    %1895 = vmatprep.subr.mxu0 0.0
    %1896 = vmatpush1.msra.mxu0 0.0
    %1897 = vmatprep.subr.mxu0 0.0
    %1898 = vmatpush1.msra.mxu0 0.0
    %1899 = vmatprep.subr.mxu0 %v1869
    %1900 = vmatpush1.msra.mxu0 %v1866
    %1901 = vmatprep.subr.mxu0 %v1859
    %1902 = vmatpush1.msra.mxu0 %v1858
    %1903 = vmatprep.subr.mxu0 0.0
    %1904 = vmatpush2.msra.mxu0 0.0
    %1905 = vmatprep.subr.mxu0 0.0
    %1906 = vmatpush2.msra.mxu0 0.0
    %1907 = vmatprep.subr.mxu0 0.0
    %1908 = vmatpush2.msra.mxu0 0.0
    %1909 = vmatprep.subr.mxu0 0.0
    %1910 = vmatpush2.msra.mxu0 0.0
    %1911 = vmatprep.subr.mxu0 0.0
    %1912 = vmatpush2.msra.mxu0 0.0
    %1913 = vmatprep.subr.mxu0 0.0
    %1914 = vmatpush2.msra.mxu0 0.0
    %1915 = vmatprep.subr.mxu0 0.0
    %1916 = vmatpush2.msra.mxu0 0.0
    %1917 = vmatprep.subr.mxu0 0.0
    %1918 = vmatpush2.msra.mxu0 0.0
    %1919 = vmatprep.subr.mxu0 0.0
    %1920 = vmatpush2.msra.mxu0 0.0
    %1921 = vmatprep.subr.mxu0 0.0
    %1922 = vmatpush2.msra.mxu0 0.0
    %1923 = vmatprep.subr.mxu0 0.0
    %1924 = vmatpush2.msra.mxu0 0.0
    %1925 = vmatprep.subr.mxu0 0.0
    %1926 = vmatpush2.msra.mxu0 0.0
    %1927 = vmatprep.subr.mxu0 0.0
    %1928 = vmatpush2.msra.mxu0 0.0
    %1929 = vmatprep.subr.mxu0 0.0
    %1930 = vmatpush2.msra.mxu0 0.0
    %1931 = vmatprep.subr.mxu0 0.0
    %1932 = vmatpush2.msra.mxu0 0.0
    %1933 = vmatprep.subr.mxu0 0.0
    %1934 = vmatpush2.msra.mxu0 0.0
    %1935 = vmatprep.mubr.f32.mxu0 0.0
    %1936 = vmatmul.mubr.f32.gmra.mxu0 %v1863
    %v1937 = vpop.f32.mrf.mxu0
    %v1938 = vadd.f32 0.0, %v1937
    %v1939 = vpop.f32.mrf.mxu0
    %v1940 = vadd.f32 0.0, %v1939
    %1941 = vdwg.mxu0
    %v1942 = vadd.f32 %v1855, %v1938
    %v1943 = vadd.f32 %v1856, %v1940
    %s1944 = scalar_lea.vmem %s3, 480
    %v1945 = vld [vmem:[%s1944] sm:$0xff]
    %v1946 = vld [vmem:[%s1944 + $0x8] sm:$0xff]
    %v1947 = vld [vmem:[%s1944 + $0x10] sm:$0xf]
    %v1948 = vld [vmem:[%s1944 + $0x18] sm:$0xf]
    %v1949 = vrot.slane %v638, 6
    %v1950 = vsel %vm653, %v1949, 0
    %v1953 = vsel %vm656, %v1947, 0
    %v1956 = vsel %vm656, %v1948, 0
    %1958 = vmatprep.subr.mxu0 0.0
    %1959 = vmatpush1.msra.mxu0 0.0
    %1960 = vmatprep.subr.mxu0 0.0
    %1961 = vmatpush1.msra.mxu0 0.0
    %1962 = vmatprep.subr.mxu0 0.0
    %1963 = vmatpush1.msra.mxu0 0.0
    %1964 = vmatprep.subr.mxu0 0.0
    %1965 = vmatpush1.msra.mxu0 0.0
    %1966 = vmatprep.subr.mxu0 0.0
    %1967 = vmatpush1.msra.mxu0 0.0
    %1968 = vmatprep.subr.mxu0 0.0
    %1969 = vmatpush1.msra.mxu0 0.0
    %1970 = vmatprep.subr.mxu0 0.0
    %1971 = vmatpush1.msra.mxu0 0.0
    %1972 = vmatprep.subr.mxu0 0.0
    %1973 = vmatpush1.msra.mxu0 0.0
    %1974 = vmatprep.subr.mxu0 0.0
    %1975 = vmatpush1.msra.mxu0 0.0
    %1976 = vmatprep.subr.mxu0 0.0
    %1977 = vmatpush1.msra.mxu0 0.0
    %1978 = vmatprep.subr.mxu0 0.0
    %1979 = vmatpush1.msra.mxu0 0.0
    %1980 = vmatprep.subr.mxu0 0.0
    %1981 = vmatpush1.msra.mxu0 0.0
    %1982 = vmatprep.subr.mxu0 0.0
    %1983 = vmatpush1.msra.mxu0 0.0
    %1984 = vmatprep.subr.mxu0 0.0
    %1985 = vmatpush1.msra.mxu0 0.0
    %1986 = vmatprep.subr.mxu0 %v1956
    %1987 = vmatpush1.msra.mxu0 %v1953
    %1988 = vmatprep.subr.mxu0 %v1946
    %1989 = vmatpush1.msra.mxu0 %v1945
    %1990 = vmatprep.subr.mxu0 0.0
    %1991 = vmatpush2.msra.mxu0 0.0
    %1992 = vmatprep.subr.mxu0 0.0
    %1993 = vmatpush2.msra.mxu0 0.0
    %1994 = vmatprep.subr.mxu0 0.0
    %1995 = vmatpush2.msra.mxu0 0.0
    %1996 = vmatprep.subr.mxu0 0.0
    %1997 = vmatpush2.msra.mxu0 0.0
    %1998 = vmatprep.subr.mxu0 0.0
    %1999 = vmatpush2.msra.mxu0 0.0
    %2000 = vmatprep.subr.mxu0 0.0
    %2001 = vmatpush2.msra.mxu0 0.0
    %2002 = vmatprep.subr.mxu0 0.0
    %2003 = vmatpush2.msra.mxu0 0.0
    %2004 = vmatprep.subr.mxu0 0.0
    %2005 = vmatpush2.msra.mxu0 0.0
    %2006 = vmatprep.subr.mxu0 0.0
    %2007 = vmatpush2.msra.mxu0 0.0
    %2008 = vmatprep.subr.mxu0 0.0
    %2009 = vmatpush2.msra.mxu0 0.0
    %2010 = vmatprep.subr.mxu0 0.0
    %2011 = vmatpush2.msra.mxu0 0.0
    %2012 = vmatprep.subr.mxu0 0.0
    %2013 = vmatpush2.msra.mxu0 0.0
    %2014 = vmatprep.subr.mxu0 0.0
    %2015 = vmatpush2.msra.mxu0 0.0
    %2016 = vmatprep.subr.mxu0 0.0
    %2017 = vmatpush2.msra.mxu0 0.0
    %2018 = vmatprep.subr.mxu0 0.0
    %2019 = vmatpush2.msra.mxu0 0.0
    %2020 = vmatprep.subr.mxu0 0.0
    %2021 = vmatpush2.msra.mxu0 0.0
    %2022 = vmatprep.mubr.f32.mxu0 0.0
    %2023 = vmatmul.mubr.f32.gmra.mxu0 %v1950
    %v2024 = vpop.f32.mrf.mxu0
    %v2025 = vadd.f32 0.0, %v2024
    %v2026 = vpop.f32.mrf.mxu0
    %v2027 = vadd.f32 0.0, %v2026
    %2028 = vdwg.mxu0
    %v2029 = vadd.f32 %v1942, %v2025
    %v2030 = vadd.f32 %v1943, %v2027
    %s2031 = scalar_lea.vmem %s3, 512
    %v2032 = vld [vmem:[%s2031] sm:$0xff]
    %v2033 = vld [vmem:[%s2031 + $0x8] sm:$0xff]
    %v2034 = vld [vmem:[%s2031 + $0x10] sm:$0xf]
    %v2035 = vld [vmem:[%s2031 + $0x18] sm:$0xf]
    %v2037 = vsel %vm653, %v639, 0
    %v2040 = vsel %vm656, %v2034, 0
    %v2043 = vsel %vm656, %v2035, 0
    %2045 = vmatprep.subr.mxu0 0.0
    %2046 = vmatpush1.msra.mxu0 0.0
    %2047 = vmatprep.subr.mxu0 0.0
    %2048 = vmatpush1.msra.mxu0 0.0
    %2049 = vmatprep.subr.mxu0 0.0
    %2050 = vmatpush1.msra.mxu0 0.0
    %2051 = vmatprep.subr.mxu0 0.0
    %2052 = vmatpush1.msra.mxu0 0.0
    %2053 = vmatprep.subr.mxu0 0.0
    %2054 = vmatpush1.msra.mxu0 0.0
    %2055 = vmatprep.subr.mxu0 0.0
    %2056 = vmatpush1.msra.mxu0 0.0
    %2057 = vmatprep.subr.mxu0 0.0
    %2058 = vmatpush1.msra.mxu0 0.0
    %2059 = vmatprep.subr.mxu0 0.0
    %2060 = vmatpush1.msra.mxu0 0.0
    %2061 = vmatprep.subr.mxu0 0.0
    %2062 = vmatpush1.msra.mxu0 0.0
    %2063 = vmatprep.subr.mxu0 0.0
    %2064 = vmatpush1.msra.mxu0 0.0
    %2065 = vmatprep.subr.mxu0 0.0
    %2066 = vmatpush1.msra.mxu0 0.0
    %2067 = vmatprep.subr.mxu0 0.0
    %2068 = vmatpush1.msra.mxu0 0.0
    %2069 = vmatprep.subr.mxu0 0.0
    %2070 = vmatpush1.msra.mxu0 0.0
    %2071 = vmatprep.subr.mxu0 0.0
    %2072 = vmatpush1.msra.mxu0 0.0
    %2073 = vmatprep.subr.mxu0 %v2043
    %2074 = vmatpush1.msra.mxu0 %v2040
    %2075 = vmatprep.subr.mxu0 %v2033
    %2076 = vmatpush1.msra.mxu0 %v2032
    %2077 = vmatprep.subr.mxu0 0.0
    %2078 = vmatpush2.msra.mxu0 0.0
    %2079 = vmatprep.subr.mxu0 0.0
    %2080 = vmatpush2.msra.mxu0 0.0
    %2081 = vmatprep.subr.mxu0 0.0
    %2082 = vmatpush2.msra.mxu0 0.0
    %2083 = vmatprep.subr.mxu0 0.0
    %2084 = vmatpush2.msra.mxu0 0.0
    %2085 = vmatprep.subr.mxu0 0.0
    %2086 = vmatpush2.msra.mxu0 0.0
    %2087 = vmatprep.subr.mxu0 0.0
    %2088 = vmatpush2.msra.mxu0 0.0
    %2089 = vmatprep.subr.mxu0 0.0
    %2090 = vmatpush2.msra.mxu0 0.0
    %2091 = vmatprep.subr.mxu0 0.0
    %2092 = vmatpush2.msra.mxu0 0.0
    %2093 = vmatprep.subr.mxu0 0.0
    %2094 = vmatpush2.msra.mxu0 0.0
    %2095 = vmatprep.subr.mxu0 0.0
    %2096 = vmatpush2.msra.mxu0 0.0
    %2097 = vmatprep.subr.mxu0 0.0
    %2098 = vmatpush2.msra.mxu0 0.0
    %2099 = vmatprep.subr.mxu0 0.0
    %2100 = vmatpush2.msra.mxu0 0.0
    %2101 = vmatprep.subr.mxu0 0.0
    %2102 = vmatpush2.msra.mxu0 0.0
    %2103 = vmatprep.subr.mxu0 0.0
    %2104 = vmatpush2.msra.mxu0 0.0
    %2105 = vmatprep.subr.mxu0 0.0
    %2106 = vmatpush2.msra.mxu0 0.0
    %2107 = vmatprep.subr.mxu0 0.0
    %2108 = vmatpush2.msra.mxu0 0.0
    %2109 = vmatprep.mubr.f32.mxu0 0.0
    %2110 = vmatmul.mubr.f32.gmra.mxu0 %v2037
    %v2111 = vpop.f32.mrf.mxu0
    %v2112 = vadd.f32 0.0, %v2111
    %v2113 = vpop.f32.mrf.mxu0
    %v2114 = vadd.f32 0.0, %v2113
    %2115 = vdwg.mxu0
    %v2116 = vadd.f32 %v2029, %v2112
    %v2117 = vadd.f32 %v2030, %v2114
    %s2118 = scalar_lea.vmem %s3, 544
    %v2119 = vld [vmem:[%s2118] sm:$0xff]
    %v2120 = vld [vmem:[%s2118 + $0x8] sm:$0xff]
    %v2121 = vld [vmem:[%s2118 + $0x10] sm:$0xf]
    %v2122 = vld [vmem:[%s2118 + $0x18] sm:$0xf]
    %v2123 = vrot.slane %v639, 2
    %v2124 = vsel %vm653, %v2123, 0
    %v2127 = vsel %vm656, %v2121, 0
    %v2130 = vsel %vm656, %v2122, 0
    %2132 = vmatprep.subr.mxu0 0.0
    %2133 = vmatpush1.msra.mxu0 0.0
    %2134 = vmatprep.subr.mxu0 0.0
    %2135 = vmatpush1.msra.mxu0 0.0
    %2136 = vmatprep.subr.mxu0 0.0
    %2137 = vmatpush1.msra.mxu0 0.0
    %2138 = vmatprep.subr.mxu0 0.0
    %2139 = vmatpush1.msra.mxu0 0.0
    %2140 = vmatprep.subr.mxu0 0.0
    %2141 = vmatpush1.msra.mxu0 0.0
    %2142 = vmatprep.subr.mxu0 0.0
    %2143 = vmatpush1.msra.mxu0 0.0
    %2144 = vmatprep.subr.mxu0 0.0
    %2145 = vmatpush1.msra.mxu0 0.0
    %2146 = vmatprep.subr.mxu0 0.0
    %2147 = vmatpush1.msra.mxu0 0.0
    %2148 = vmatprep.subr.mxu0 0.0
    %2149 = vmatpush1.msra.mxu0 0.0
    %2150 = vmatprep.subr.mxu0 0.0
    %2151 = vmatpush1.msra.mxu0 0.0
    %2152 = vmatprep.subr.mxu0 0.0
    %2153 = vmatpush1.msra.mxu0 0.0
    %2154 = vmatprep.subr.mxu0 0.0
    %2155 = vmatpush1.msra.mxu0 0.0
    %2156 = vmatprep.subr.mxu0 0.0
    %2157 = vmatpush1.msra.mxu0 0.0
    %2158 = vmatprep.subr.mxu0 0.0
    %2159 = vmatpush1.msra.mxu0 0.0
    %2160 = vmatprep.subr.mxu0 %v2130
    %2161 = vmatpush1.msra.mxu0 %v2127
    %2162 = vmatprep.subr.mxu0 %v2120
    %2163 = vmatpush1.msra.mxu0 %v2119
    %2164 = vmatprep.subr.mxu0 0.0
    %2165 = vmatpush2.msra.mxu0 0.0
    %2166 = vmatprep.subr.mxu0 0.0
    %2167 = vmatpush2.msra.mxu0 0.0
    %2168 = vmatprep.subr.mxu0 0.0
    %2169 = vmatpush2.msra.mxu0 0.0
    %2170 = vmatprep.subr.mxu0 0.0
    %2171 = vmatpush2.msra.mxu0 0.0
    %2172 = vmatprep.subr.mxu0 0.0
    %2173 = vmatpush2.msra.mxu0 0.0
    %2174 = vmatprep.subr.mxu0 0.0
    %2175 = vmatpush2.msra.mxu0 0.0
    %2176 = vmatprep.subr.mxu0 0.0
    %2177 = vmatpush2.msra.mxu0 0.0
    %2178 = vmatprep.subr.mxu0 0.0
    %2179 = vmatpush2.msra.mxu0 0.0
    %2180 = vmatprep.subr.mxu0 0.0
    %2181 = vmatpush2.msra.mxu0 0.0
    %2182 = vmatprep.subr.mxu0 0.0
    %2183 = vmatpush2.msra.mxu0 0.0
    %2184 = vmatprep.subr.mxu0 0.0
    %2185 = vmatpush2.msra.mxu0 0.0
    %2186 = vmatprep.subr.mxu0 0.0
    %2187 = vmatpush2.msra.mxu0 0.0
    %2188 = vmatprep.subr.mxu0 0.0
    %2189 = vmatpush2.msra.mxu0 0.0
    %2190 = vmatprep.subr.mxu0 0.0
    %2191 = vmatpush2.msra.mxu0 0.0
    %2192 = vmatprep.subr.mxu0 0.0
    %2193 = vmatpush2.msra.mxu0 0.0
    %2194 = vmatprep.subr.mxu0 0.0
    %2195 = vmatpush2.msra.mxu0 0.0
    %2196 = vmatprep.mubr.f32.mxu0 0.0
    %2197 = vmatmul.mubr.f32.gmra.mxu0 %v2124
    %v2198 = vpop.f32.mrf.mxu0
    %v2199 = vadd.f32 0.0, %v2198
    %v2200 = vpop.f32.mrf.mxu0
    %v2201 = vadd.f32 0.0, %v2200
    %2202 = vdwg.mxu0
    %v2203 = vadd.f32 %v2116, %v2199
    %v2204 = vadd.f32 %v2117, %v2201
    %s2205 = scalar_lea.vmem %s3, 576
    %v2206 = vld [vmem:[%s2205] sm:$0xff]
    %v2207 = vld [vmem:[%s2205 + $0x8] sm:$0xff]
    %v2208 = vld [vmem:[%s2205 + $0x10] sm:$0xf]
    %v2209 = vld [vmem:[%s2205 + $0x18] sm:$0xf]
    %v2210 = vrot.slane %v639, 4
    %v2211 = vsel %vm653, %v2210, 0
    %v2214 = vsel %vm656, %v2208, 0
    %v2217 = vsel %vm656, %v2209, 0
    %2219 = vmatprep.subr.mxu0 0.0
    %2220 = vmatpush1.msra.mxu0 0.0
    %2221 = vmatprep.subr.mxu0 0.0
    %2222 = vmatpush1.msra.mxu0 0.0
    %2223 = vmatprep.subr.mxu0 0.0
    %2224 = vmatpush1.msra.mxu0 0.0
    %2225 = vmatprep.subr.mxu0 0.0
    %2226 = vmatpush1.msra.mxu0 0.0
    %2227 = vmatprep.subr.mxu0 0.0
    %2228 = vmatpush1.msra.mxu0 0.0
    %2229 = vmatprep.subr.mxu0 0.0
    %2230 = vmatpush1.msra.mxu0 0.0
    %2231 = vmatprep.subr.mxu0 0.0
    %2232 = vmatpush1.msra.mxu0 0.0
    %2233 = vmatprep.subr.mxu0 0.0
    %2234 = vmatpush1.msra.mxu0 0.0
    %2235 = vmatprep.subr.mxu0 0.0
    %2236 = vmatpush1.msra.mxu0 0.0
    %2237 = vmatprep.subr.mxu0 0.0
    %2238 = vmatpush1.msra.mxu0 0.0
    %2239 = vmatprep.subr.mxu0 0.0
    %2240 = vmatpush1.msra.mxu0 0.0
    %2241 = vmatprep.subr.mxu0 0.0
    %2242 = vmatpush1.msra.mxu0 0.0
    %2243 = vmatprep.subr.mxu0 0.0
    %2244 = vmatpush1.msra.mxu0 0.0
    %2245 = vmatprep.subr.mxu0 0.0
    %2246 = vmatpush1.msra.mxu0 0.0
    %2247 = vmatprep.subr.mxu0 %v2217
    %2248 = vmatpush1.msra.mxu0 %v2214
    %2249 = vmatprep.subr.mxu0 %v2207
    %2250 = vmatpush1.msra.mxu0 %v2206
    %2251 = vmatprep.subr.mxu0 0.0
    %2252 = vmatpush2.msra.mxu0 0.0
    %2253 = vmatprep.subr.mxu0 0.0
    %2254 = vmatpush2.msra.mxu0 0.0
    %2255 = vmatprep.subr.mxu0 0.0
    %2256 = vmatpush2.msra.mxu0 0.0
    %2257 = vmatprep.subr.mxu0 0.0
    %2258 = vmatpush2.msra.mxu0 0.0
    %2259 = vmatprep.subr.mxu0 0.0
    %2260 = vmatpush2.msra.mxu0 0.0
    %2261 = vmatprep.subr.mxu0 0.0
    %2262 = vmatpush2.msra.mxu0 0.0
    %2263 = vmatprep.subr.mxu0 0.0
    %2264 = vmatpush2.msra.mxu0 0.0
    %2265 = vmatprep.subr.mxu0 0.0
    %2266 = vmatpush2.msra.mxu0 0.0
    %2267 = vmatprep.subr.mxu0 0.0
    %2268 = vmatpush2.msra.mxu0 0.0
    %2269 = vmatprep.subr.mxu0 0.0
    %2270 = vmatpush2.msra.mxu0 0.0
    %2271 = vmatprep.subr.mxu0 0.0
    %2272 = vmatpush2.msra.mxu0 0.0
    %2273 = vmatprep.subr.mxu0 0.0
    %2274 = vmatpush2.msra.mxu0 0.0
    %2275 = vmatprep.subr.mxu0 0.0
    %2276 = vmatpush2.msra.mxu0 0.0
    %2277 = vmatprep.subr.mxu0 0.0
    %2278 = vmatpush2.msra.mxu0 0.0
    %2279 = vmatprep.subr.mxu0 0.0
    %2280 = vmatpush2.msra.mxu0 0.0
    %2281 = vmatprep.subr.mxu0 0.0
    %2282 = vmatpush2.msra.mxu0 0.0
    %2283 = vmatprep.mubr.f32.mxu0 0.0
    %2284 = vmatmul.mubr.f32.gmra.mxu0 %v2211
    %v2285 = vpop.f32.mrf.mxu0
    %v2286 = vadd.f32 0.0, %v2285
    %v2287 = vpop.f32.mrf.mxu0
    %v2288 = vadd.f32 0.0, %v2287
    %2289 = vdwg.mxu0
    %v2290 = vadd.f32 %v2203, %v2286
    %v2291 = vadd.f32 %v2204, %v2288
    %s2292 = scalar_lea.vmem %s3, 608
    %v2293 = vld [vmem:[%s2292] sm:$0xff]
    %v2294 = vld [vmem:[%s2292 + $0x8] sm:$0xff]
    %v2295 = vld [vmem:[%s2292 + $0x10] sm:$0xf]
    %v2296 = vld [vmem:[%s2292 + $0x18] sm:$0xf]
    %v2297 = vrot.slane %v639, 6
    %v2298 = vsel %vm653, %v2297, 0
    %v2301 = vsel %vm656, %v2295, 0
    %v2304 = vsel %vm656, %v2296, 0
    %2306 = vmatprep.subr.mxu0 0.0
    %2307 = vmatpush1.msra.mxu0 0.0
    %2308 = vmatprep.subr.mxu0 0.0
    %2309 = vmatpush1.msra.mxu0 0.0
    %2310 = vmatprep.subr.mxu0 0.0
    %2311 = vmatpush1.msra.mxu0 0.0
    %2312 = vmatprep.subr.mxu0 0.0
    %2313 = vmatpush1.msra.mxu0 0.0
    %2314 = vmatprep.subr.mxu0 0.0
    %2315 = vmatpush1.msra.mxu0 0.0
    %2316 = vmatprep.subr.mxu0 0.0
    %2317 = vmatpush1.msra.mxu0 0.0
    %2318 = vmatprep.subr.mxu0 0.0
    %2319 = vmatpush1.msra.mxu0 0.0
    %2320 = vmatprep.subr.mxu0 0.0
    %2321 = vmatpush1.msra.mxu0 0.0
    %2322 = vmatprep.subr.mxu0 0.0
    %2323 = vmatpush1.msra.mxu0 0.0
    %2324 = vmatprep.subr.mxu0 0.0
    %2325 = vmatpush1.msra.mxu0 0.0
    %2326 = vmatprep.subr.mxu0 0.0
    %2327 = vmatpush1.msra.mxu0 0.0
    %2328 = vmatprep.subr.mxu0 0.0
    %2329 = vmatpush1.msra.mxu0 0.0
    %2330 = vmatprep.subr.mxu0 0.0
    %2331 = vmatpush1.msra.mxu0 0.0
    %2332 = vmatprep.subr.mxu0 0.0
    %2333 = vmatpush1.msra.mxu0 0.0
    %2334 = vmatprep.subr.mxu0 %v2304
    %2335 = vmatpush1.msra.mxu0 %v2301
    %2336 = vmatprep.subr.mxu0 %v2294
    %2337 = vmatpush1.msra.mxu0 %v2293
    %2338 = vmatprep.subr.mxu0 0.0
    %2339 = vmatpush2.msra.mxu0 0.0
    %2340 = vmatprep.subr.mxu0 0.0
    %2341 = vmatpush2.msra.mxu0 0.0
    %2342 = vmatprep.subr.mxu0 0.0
    %2343 = vmatpush2.msra.mxu0 0.0
    %2344 = vmatprep.subr.mxu0 0.0
    %2345 = vmatpush2.msra.mxu0 0.0
    %2346 = vmatprep.subr.mxu0 0.0
    %2347 = vmatpush2.msra.mxu0 0.0
    %2348 = vmatprep.subr.mxu0 0.0
    %2349 = vmatpush2.msra.mxu0 0.0
    %2350 = vmatprep.subr.mxu0 0.0
    %2351 = vmatpush2.msra.mxu0 0.0
    %2352 = vmatprep.subr.mxu0 0.0
    %2353 = vmatpush2.msra.mxu0 0.0
    %2354 = vmatprep.subr.mxu0 0.0
    %2355 = vmatpush2.msra.mxu0 0.0
    %2356 = vmatprep.subr.mxu0 0.0
    %2357 = vmatpush2.msra.mxu0 0.0
    %2358 = vmatprep.subr.mxu0 0.0
    %2359 = vmatpush2.msra.mxu0 0.0
    %2360 = vmatprep.subr.mxu0 0.0
    %2361 = vmatpush2.msra.mxu0 0.0
    %2362 = vmatprep.subr.mxu0 0.0
    %2363 = vmatpush2.msra.mxu0 0.0
    %2364 = vmatprep.subr.mxu0 0.0
    %2365 = vmatpush2.msra.mxu0 0.0
    %2366 = vmatprep.subr.mxu0 0.0
    %2367 = vmatpush2.msra.mxu0 0.0
    %2368 = vmatprep.subr.mxu0 0.0
    %2369 = vmatpush2.msra.mxu0 0.0
    %2370 = vmatprep.mubr.f32.mxu0 0.0
    %2371 = vmatmul.mubr.f32.gmra.mxu0 %v2298
    %v2372 = vpop.f32.mrf.mxu0
    %v2373 = vadd.f32 0.0, %v2372
    %v2374 = vpop.f32.mrf.mxu0
    %v2375 = vadd.f32 0.0, %v2374
    %2376 = vdwg.mxu0
    %v2377 = vadd.f32 %v2290, %v2373
    %v2378 = vadd.f32 %v2291, %v2375
    %s2379 = scalar_lea.vmem %s3, 640
    %v2380 = vld [vmem:[%s2379] sm:$0xff]
    %v2381 = vld [vmem:[%s2379 + $0x8] sm:$0xff]
    %v2382 = vld [vmem:[%s2379 + $0x10] sm:$0xf]
    %v2383 = vld [vmem:[%s2379 + $0x18] sm:$0xf]
    %v2385 = vsel %vm653, %v640, 0
    %v2388 = vsel %vm656, %v2382, 0
    %v2391 = vsel %vm656, %v2383, 0
    %2393 = vmatprep.subr.mxu0 0.0
    %2394 = vmatpush1.msra.mxu0 0.0
    %2395 = vmatprep.subr.mxu0 0.0
    %2396 = vmatpush1.msra.mxu0 0.0
    %2397 = vmatprep.subr.mxu0 0.0
    %2398 = vmatpush1.msra.mxu0 0.0
    %2399 = vmatprep.subr.mxu0 0.0
    %2400 = vmatpush1.msra.mxu0 0.0
    %2401 = vmatprep.subr.mxu0 0.0
    %2402 = vmatpush1.msra.mxu0 0.0
    %2403 = vmatprep.subr.mxu0 0.0
    %2404 = vmatpush1.msra.mxu0 0.0
    %2405 = vmatprep.subr.mxu0 0.0
    %2406 = vmatpush1.msra.mxu0 0.0
    %2407 = vmatprep.subr.mxu0 0.0
    %2408 = vmatpush1.msra.mxu0 0.0
    %2409 = vmatprep.subr.mxu0 0.0
    %2410 = vmatpush1.msra.mxu0 0.0
    %2411 = vmatprep.subr.mxu0 0.0
    %2412 = vmatpush1.msra.mxu0 0.0
    %2413 = vmatprep.subr.mxu0 0.0
    %2414 = vmatpush1.msra.mxu0 0.0
    %2415 = vmatprep.subr.mxu0 0.0
    %2416 = vmatpush1.msra.mxu0 0.0
    %2417 = vmatprep.subr.mxu0 0.0
    %2418 = vmatpush1.msra.mxu0 0.0
    %2419 = vmatprep.subr.mxu0 0.0
    %2420 = vmatpush1.msra.mxu0 0.0
    %2421 = vmatprep.subr.mxu0 %v2391
    %2422 = vmatpush1.msra.mxu0 %v2388
    %2423 = vmatprep.subr.mxu0 %v2381
    %2424 = vmatpush1.msra.mxu0 %v2380
    %2425 = vmatprep.subr.mxu0 0.0
    %2426 = vmatpush2.msra.mxu0 0.0
    %2427 = vmatprep.subr.mxu0 0.0
    %2428 = vmatpush2.msra.mxu0 0.0
    %2429 = vmatprep.subr.mxu0 0.0
    %2430 = vmatpush2.msra.mxu0 0.0
    %2431 = vmatprep.subr.mxu0 0.0
    %2432 = vmatpush2.msra.mxu0 0.0
    %2433 = vmatprep.subr.mxu0 0.0
    %2434 = vmatpush2.msra.mxu0 0.0
    %2435 = vmatprep.subr.mxu0 0.0
    %2436 = vmatpush2.msra.mxu0 0.0
    %2437 = vmatprep.subr.mxu0 0.0
    %2438 = vmatpush2.msra.mxu0 0.0
    %2439 = vmatprep.subr.mxu0 0.0
    %2440 = vmatpush2.msra.mxu0 0.0
    %2441 = vmatprep.subr.mxu0 0.0
    %2442 = vmatpush2.msra.mxu0 0.0
    %2443 = vmatprep.subr.mxu0 0.0
    %2444 = vmatpush2.msra.mxu0 0.0
    %2445 = vmatprep.subr.mxu0 0.0
    %2446 = vmatpush2.msra.mxu0 0.0
    %2447 = vmatprep.subr.mxu0 0.0
    %2448 = vmatpush2.msra.mxu0 0.0
    %2449 = vmatprep.subr.mxu0 0.0
    %2450 = vmatpush2.msra.mxu0 0.0
    %2451 = vmatprep.subr.mxu0 0.0
    %2452 = vmatpush2.msra.mxu0 0.0
    %2453 = vmatprep.subr.mxu0 0.0
    %2454 = vmatpush2.msra.mxu0 0.0
    %2455 = vmatprep.subr.mxu0 0.0
    %2456 = vmatpush2.msra.mxu0 0.0
    %2457 = vmatprep.mubr.f32.mxu0 0.0
    %2458 = vmatmul.mubr.f32.gmra.mxu0 %v2385
    %v2459 = vpop.f32.mrf.mxu0
    %v2460 = vadd.f32 0.0, %v2459
    %v2461 = vpop.f32.mrf.mxu0
    %v2462 = vadd.f32 0.0, %v2461
    %2463 = vdwg.mxu0
    %v2464 = vadd.f32 %v2377, %v2460
    %v2465 = vadd.f32 %v2378, %v2462
    %s2466 = scalar_lea.vmem %s3, 672
    %v2467 = vld [vmem:[%s2466] sm:$0xff]
    %v2468 = vld [vmem:[%s2466 + $0x8] sm:$0xff]
    %v2469 = vld [vmem:[%s2466 + $0x10] sm:$0xf]
    %v2470 = vld [vmem:[%s2466 + $0x18] sm:$0xf]
    %v2471 = vrot.slane %v640, 2
    %v2472 = vsel %vm653, %v2471, 0
    %v2475 = vsel %vm656, %v2469, 0
    %v2478 = vsel %vm656, %v2470, 0
    %2480 = vmatprep.subr.mxu0 0.0
    %2481 = vmatpush1.msra.mxu0 0.0
    %2482 = vmatprep.subr.mxu0 0.0
    %2483 = vmatpush1.msra.mxu0 0.0
    %2484 = vmatprep.subr.mxu0 0.0
    %2485 = vmatpush1.msra.mxu0 0.0
    %2486 = vmatprep.subr.mxu0 0.0
    %2487 = vmatpush1.msra.mxu0 0.0
    %2488 = vmatprep.subr.mxu0 0.0
    %2489 = vmatpush1.msra.mxu0 0.0
    %2490 = vmatprep.subr.mxu0 0.0
    %2491 = vmatpush1.msra.mxu0 0.0
    %2492 = vmatprep.subr.mxu0 0.0
    %2493 = vmatpush1.msra.mxu0 0.0
    %2494 = vmatprep.subr.mxu0 0.0
    %2495 = vmatpush1.msra.mxu0 0.0
    %2496 = vmatprep.subr.mxu0 0.0
    %2497 = vmatpush1.msra.mxu0 0.0
    %2498 = vmatprep.subr.mxu0 0.0
    %2499 = vmatpush1.msra.mxu0 0.0
    %2500 = vmatprep.subr.mxu0 0.0
    %2501 = vmatpush1.msra.mxu0 0.0
    %2502 = vmatprep.subr.mxu0 0.0
    %2503 = vmatpush1.msra.mxu0 0.0
    %2504 = vmatprep.subr.mxu0 0.0
    %2505 = vmatpush1.msra.mxu0 0.0
    %2506 = vmatprep.subr.mxu0 0.0
    %2507 = vmatpush1.msra.mxu0 0.0
    %2508 = vmatprep.subr.mxu0 %v2478
    %2509 = vmatpush1.msra.mxu0 %v2475
    %2510 = vmatprep.subr.mxu0 %v2468
    %2511 = vmatpush1.msra.mxu0 %v2467
    %2512 = vmatprep.subr.mxu0 0.0
    %2513 = vmatpush2.msra.mxu0 0.0
    %2514 = vmatprep.subr.mxu0 0.0
    %2515 = vmatpush2.msra.mxu0 0.0
    %2516 = vmatprep.subr.mxu0 0.0
    %2517 = vmatpush2.msra.mxu0 0.0
    %2518 = vmatprep.subr.mxu0 0.0
    %2519 = vmatpush2.msra.mxu0 0.0
    %2520 = vmatprep.subr.mxu0 0.0
    %2521 = vmatpush2.msra.mxu0 0.0
    %2522 = vmatprep.subr.mxu0 0.0
    %2523 = vmatpush2.msra.mxu0 0.0
    %2524 = vmatprep.subr.mxu0 0.0
    %2525 = vmatpush2.msra.mxu0 0.0
    %2526 = vmatprep.subr.mxu0 0.0
    %2527 = vmatpush2.msra.mxu0 0.0
    %2528 = vmatprep.subr.mxu0 0.0
    %2529 = vmatpush2.msra.mxu0 0.0
    %2530 = vmatprep.subr.mxu0 0.0
    %2531 = vmatpush2.msra.mxu0 0.0
    %2532 = vmatprep.subr.mxu0 0.0
    %2533 = vmatpush2.msra.mxu0 0.0
    %2534 = vmatprep.subr.mxu0 0.0
    %2535 = vmatpush2.msra.mxu0 0.0
    %2536 = vmatprep.subr.mxu0 0.0
    %2537 = vmatpush2.msra.mxu0 0.0
    %2538 = vmatprep.subr.mxu0 0.0
    %2539 = vmatpush2.msra.mxu0 0.0
    %2540 = vmatprep.subr.mxu0 0.0
    %2541 = vmatpush2.msra.mxu0 0.0
    %2542 = vmatprep.subr.mxu0 0.0
    %2543 = vmatpush2.msra.mxu0 0.0
    %2544 = vmatprep.mubr.f32.mxu0 0.0
    %2545 = vmatmul.mubr.f32.gmra.mxu0 %v2472
    %v2546 = vpop.f32.mrf.mxu0
    %v2547 = vadd.f32 0.0, %v2546
    %v2548 = vpop.f32.mrf.mxu0
    %v2549 = vadd.f32 0.0, %v2548
    %2550 = vdwg.mxu0
    %v2551 = vadd.f32 %v2464, %v2547
    %v2552 = vadd.f32 %v2465, %v2549
    %s2553 = scalar_lea.vmem %s3, 704
    %v2554 = vld [vmem:[%s2553] sm:$0xff]
    %v2555 = vld [vmem:[%s2553 + $0x8] sm:$0xff]
    %v2556 = vld [vmem:[%s2553 + $0x10] sm:$0xf]
    %v2557 = vld [vmem:[%s2553 + $0x18] sm:$0xf]
    %v2558 = vrot.slane %v640, 4
    %v2559 = vsel %vm653, %v2558, 0
    %v2562 = vsel %vm656, %v2556, 0
    %v2565 = vsel %vm656, %v2557, 0
    %2567 = vmatprep.subr.mxu0 0.0
    %2568 = vmatpush1.msra.mxu0 0.0
    %2569 = vmatprep.subr.mxu0 0.0
    %2570 = vmatpush1.msra.mxu0 0.0
    %2571 = vmatprep.subr.mxu0 0.0
    %2572 = vmatpush1.msra.mxu0 0.0
    %2573 = vmatprep.subr.mxu0 0.0
    %2574 = vmatpush1.msra.mxu0 0.0
    %2575 = vmatprep.subr.mxu0 0.0
    %2576 = vmatpush1.msra.mxu0 0.0
    %2577 = vmatprep.subr.mxu0 0.0
    %2578 = vmatpush1.msra.mxu0 0.0
    %2579 = vmatprep.subr.mxu0 0.0
    %2580 = vmatpush1.msra.mxu0 0.0
    %2581 = vmatprep.subr.mxu0 0.0
    %2582 = vmatpush1.msra.mxu0 0.0
    %2583 = vmatprep.subr.mxu0 0.0
    %2584 = vmatpush1.msra.mxu0 0.0
    %2585 = vmatprep.subr.mxu0 0.0
    %2586 = vmatpush1.msra.mxu0 0.0
    %2587 = vmatprep.subr.mxu0 0.0
    %2588 = vmatpush1.msra.mxu0 0.0
    %2589 = vmatprep.subr.mxu0 0.0
    %2590 = vmatpush1.msra.mxu0 0.0
    %2591 = vmatprep.subr.mxu0 0.0
    %2592 = vmatpush1.msra.mxu0 0.0
    %2593 = vmatprep.subr.mxu0 0.0
    %2594 = vmatpush1.msra.mxu0 0.0
    %2595 = vmatprep.subr.mxu0 %v2565
    %2596 = vmatpush1.msra.mxu0 %v2562
    %2597 = vmatprep.subr.mxu0 %v2555
    %2598 = vmatpush1.msra.mxu0 %v2554
    %2599 = vmatprep.subr.mxu0 0.0
    %2600 = vmatpush2.msra.mxu0 0.0
    %2601 = vmatprep.subr.mxu0 0.0
    %2602 = vmatpush2.msra.mxu0 0.0
    %2603 = vmatprep.subr.mxu0 0.0
    %2604 = vmatpush2.msra.mxu0 0.0
    %2605 = vmatprep.subr.mxu0 0.0
    %2606 = vmatpush2.msra.mxu0 0.0
    %2607 = vmatprep.subr.mxu0 0.0
    %2608 = vmatpush2.msra.mxu0 0.0
    %2609 = vmatprep.subr.mxu0 0.0
    %2610 = vmatpush2.msra.mxu0 0.0
    %2611 = vmatprep.subr.mxu0 0.0
    %2612 = vmatpush2.msra.mxu0 0.0
    %2613 = vmatprep.subr.mxu0 0.0
    %2614 = vmatpush2.msra.mxu0 0.0
    %2615 = vmatprep.subr.mxu0 0.0
    %2616 = vmatpush2.msra.mxu0 0.0
    %2617 = vmatprep.subr.mxu0 0.0
    %2618 = vmatpush2.msra.mxu0 0.0
    %2619 = vmatprep.subr.mxu0 0.0
    %2620 = vmatpush2.msra.mxu0 0.0
    %2621 = vmatprep.subr.mxu0 0.0
    %2622 = vmatpush2.msra.mxu0 0.0
    %2623 = vmatprep.subr.mxu0 0.0
    %2624 = vmatpush2.msra.mxu0 0.0
    %2625 = vmatprep.subr.mxu0 0.0
    %2626 = vmatpush2.msra.mxu0 0.0
    %2627 = vmatprep.subr.mxu0 0.0
    %2628 = vmatpush2.msra.mxu0 0.0
    %2629 = vmatprep.subr.mxu0 0.0
    %2630 = vmatpush2.msra.mxu0 0.0
    %2631 = vmatprep.mubr.f32.mxu0 0.0
    %2632 = vmatmul.mubr.f32.gmra.mxu0 %v2559
    %v2633 = vpop.f32.mrf.mxu0
    %v2634 = vadd.f32 0.0, %v2633
    %v2635 = vpop.f32.mrf.mxu0
    %v2636 = vadd.f32 0.0, %v2635
    %2637 = vdwg.mxu0
    %v2638 = vadd.f32 %v2551, %v2634
    %v2639 = vadd.f32 %v2552, %v2636
    %s2640 = scalar_lea.vmem %s3, 736
    %v2641 = vld [vmem:[%s2640] sm:$0xff]
    %v2642 = vld [vmem:[%s2640 + $0x8] sm:$0xff]
    %v2643 = vld [vmem:[%s2640 + $0x10] sm:$0xf]
    %v2644 = vld [vmem:[%s2640 + $0x18] sm:$0xf]
    %v2645 = vrot.slane %v640, 6
    %v2646 = vsel %vm653, %v2645, 0
    %v2649 = vsel %vm656, %v2643, 0
    %v2652 = vsel %vm656, %v2644, 0
    %2654 = vmatprep.subr.mxu0 0.0
    %2655 = vmatpush1.msra.mxu0 0.0
    %2656 = vmatprep.subr.mxu0 0.0
    %2657 = vmatpush1.msra.mxu0 0.0
    %2658 = vmatprep.subr.mxu0 0.0
    %2659 = vmatpush1.msra.mxu0 0.0
    %2660 = vmatprep.subr.mxu0 0.0
    %2661 = vmatpush1.msra.mxu0 0.0
    %2662 = vmatprep.subr.mxu0 0.0
    %2663 = vmatpush1.msra.mxu0 0.0
    %2664 = vmatprep.subr.mxu0 0.0
    %2665 = vmatpush1.msra.mxu0 0.0
    %2666 = vmatprep.subr.mxu0 0.0
    %2667 = vmatpush1.msra.mxu0 0.0
    %2668 = vmatprep.subr.mxu0 0.0
    %2669 = vmatpush1.msra.mxu0 0.0
    %2670 = vmatprep.subr.mxu0 0.0
    %2671 = vmatpush1.msra.mxu0 0.0
    %2672 = vmatprep.subr.mxu0 0.0
    %2673 = vmatpush1.msra.mxu0 0.0
    %2674 = vmatprep.subr.mxu0 0.0
    %2675 = vmatpush1.msra.mxu0 0.0
    %2676 = vmatprep.subr.mxu0 0.0
    %2677 = vmatpush1.msra.mxu0 0.0
    %2678 = vmatprep.subr.mxu0 0.0
    %2679 = vmatpush1.msra.mxu0 0.0
    %2680 = vmatprep.subr.mxu0 0.0
    %2681 = vmatpush1.msra.mxu0 0.0
    %2682 = vmatprep.subr.mxu0 %v2652
    %2683 = vmatpush1.msra.mxu0 %v2649
    %2684 = vmatprep.subr.mxu0 %v2642
    %2685 = vmatpush1.msra.mxu0 %v2641
    %2686 = vmatprep.subr.mxu0 0.0
    %2687 = vmatpush2.msra.mxu0 0.0
    %2688 = vmatprep.subr.mxu0 0.0
    %2689 = vmatpush2.msra.mxu0 0.0
    %2690 = vmatprep.subr.mxu0 0.0
    %2691 = vmatpush2.msra.mxu0 0.0
    %2692 = vmatprep.subr.mxu0 0.0
    %2693 = vmatpush2.msra.mxu0 0.0
    %2694 = vmatprep.subr.mxu0 0.0
    %2695 = vmatpush2.msra.mxu0 0.0
    %2696 = vmatprep.subr.mxu0 0.0
    %2697 = vmatpush2.msra.mxu0 0.0
    %2698 = vmatprep.subr.mxu0 0.0
    %2699 = vmatpush2.msra.mxu0 0.0
    %2700 = vmatprep.subr.mxu0 0.0
    %2701 = vmatpush2.msra.mxu0 0.0
    %2702 = vmatprep.subr.mxu0 0.0
    %2703 = vmatpush2.msra.mxu0 0.0
    %2704 = vmatprep.subr.mxu0 0.0
    %2705 = vmatpush2.msra.mxu0 0.0
    %2706 = vmatprep.subr.mxu0 0.0
    %2707 = vmatpush2.msra.mxu0 0.0
    %2708 = vmatprep.subr.mxu0 0.0
    %2709 = vmatpush2.msra.mxu0 0.0
    %2710 = vmatprep.subr.mxu0 0.0
    %2711 = vmatpush2.msra.mxu0 0.0
    %2712 = vmatprep.subr.mxu0 0.0
    %2713 = vmatpush2.msra.mxu0 0.0
    %2714 = vmatprep.subr.mxu0 0.0
    %2715 = vmatpush2.msra.mxu0 0.0
    %2716 = vmatprep.subr.mxu0 0.0
    %2717 = vmatpush2.msra.mxu0 0.0
    %2718 = vmatprep.mubr.f32.mxu0 0.0
    %2719 = vmatmul.mubr.f32.gmra.mxu0 %v2646
    %v2720 = vpop.f32.mrf.mxu0
    %v2721 = vadd.f32 0.0, %v2720
    %v2722 = vpop.f32.mrf.mxu0
    %v2723 = vadd.f32 0.0, %v2722
    %2724 = vdwg.mxu0
    %v2725 = vadd.f32 %v2638, %v2721
    %v2726 = vadd.f32 %v2639, %v2723
    %s2727 = scalar_lea.vmem %s3, 768
    %v2728 = vld [vmem:[%s2727] sm:$0xff]
    %v2729 = vld [vmem:[%s2727 + $0x8] sm:$0xff]
    %v2730 = vld [vmem:[%s2727 + $0x10] sm:$0xf]
    %v2731 = vld [vmem:[%s2727 + $0x18] sm:$0xf]
    %v2733 = vsel %vm653, %v641, 0
    %v2736 = vsel %vm656, %v2730, 0
    %v2739 = vsel %vm656, %v2731, 0
    %2741 = vmatprep.subr.mxu0 0.0
    %2742 = vmatpush1.msra.mxu0 0.0
    %2743 = vmatprep.subr.mxu0 0.0
    %2744 = vmatpush1.msra.mxu0 0.0
    %2745 = vmatprep.subr.mxu0 0.0
    %2746 = vmatpush1.msra.mxu0 0.0
    %2747 = vmatprep.subr.mxu0 0.0
    %2748 = vmatpush1.msra.mxu0 0.0
    %2749 = vmatprep.subr.mxu0 0.0
    %2750 = vmatpush1.msra.mxu0 0.0
    %2751 = vmatprep.subr.mxu0 0.0
    %2752 = vmatpush1.msra.mxu0 0.0
    %2753 = vmatprep.subr.mxu0 0.0
    %2754 = vmatpush1.msra.mxu0 0.0
    %2755 = vmatprep.subr.mxu0 0.0
    %2756 = vmatpush1.msra.mxu0 0.0
    %2757 = vmatprep.subr.mxu0 0.0
    %2758 = vmatpush1.msra.mxu0 0.0
    %2759 = vmatprep.subr.mxu0 0.0
    %2760 = vmatpush1.msra.mxu0 0.0
    %2761 = vmatprep.subr.mxu0 0.0
    %2762 = vmatpush1.msra.mxu0 0.0
    %2763 = vmatprep.subr.mxu0 0.0
    %2764 = vmatpush1.msra.mxu0 0.0
    %2765 = vmatprep.subr.mxu0 0.0
    %2766 = vmatpush1.msra.mxu0 0.0
    %2767 = vmatprep.subr.mxu0 0.0
    %2768 = vmatpush1.msra.mxu0 0.0
    %2769 = vmatprep.subr.mxu0 %v2739
    %2770 = vmatpush1.msra.mxu0 %v2736
    %2771 = vmatprep.subr.mxu0 %v2729
    %2772 = vmatpush1.msra.mxu0 %v2728
    %2773 = vmatprep.subr.mxu0 0.0
    %2774 = vmatpush2.msra.mxu0 0.0
    %2775 = vmatprep.subr.mxu0 0.0
    %2776 = vmatpush2.msra.mxu0 0.0
    %2777 = vmatprep.subr.mxu0 0.0
    %2778 = vmatpush2.msra.mxu0 0.0
    %2779 = vmatprep.subr.mxu0 0.0
    %2780 = vmatpush2.msra.mxu0 0.0
    %2781 = vmatprep.subr.mxu0 0.0
    %2782 = vmatpush2.msra.mxu0 0.0
    %2783 = vmatprep.subr.mxu0 0.0
    %2784 = vmatpush2.msra.mxu0 0.0
    %2785 = vmatprep.subr.mxu0 0.0
    %2786 = vmatpush2.msra.mxu0 0.0
    %2787 = vmatprep.subr.mxu0 0.0
    %2788 = vmatpush2.msra.mxu0 0.0
    %2789 = vmatprep.subr.mxu0 0.0
    %2790 = vmatpush2.msra.mxu0 0.0
    %2791 = vmatprep.subr.mxu0 0.0
    %2792 = vmatpush2.msra.mxu0 0.0
    %2793 = vmatprep.subr.mxu0 0.0
    %2794 = vmatpush2.msra.mxu0 0.0
    %2795 = vmatprep.subr.mxu0 0.0
    %2796 = vmatpush2.msra.mxu0 0.0
    %2797 = vmatprep.subr.mxu0 0.0
    %2798 = vmatpush2.msra.mxu0 0.0
    %2799 = vmatprep.subr.mxu0 0.0
    %2800 = vmatpush2.msra.mxu0 0.0
    %2801 = vmatprep.subr.mxu0 0.0
    %2802 = vmatpush2.msra.mxu0 0.0
    %2803 = vmatprep.subr.mxu0 0.0
    %2804 = vmatpush2.msra.mxu0 0.0
    %2805 = vmatprep.mubr.f32.mxu0 0.0
    %2806 = vmatmul.mubr.f32.gmra.mxu0 %v2733
    %v2807 = vpop.f32.mrf.mxu0
    %v2808 = vadd.f32 0.0, %v2807
    %v2809 = vpop.f32.mrf.mxu0
    %v2810 = vadd.f32 0.0, %v2809
    %2811 = vdwg.mxu0
    %v2812 = vadd.f32 %v2725, %v2808
    %v2813 = vadd.f32 %v2726, %v2810
    %v2814 = vld [vmem:[%s4] sm:$0x3]
    %v2816 = vlaneseq
    %v2817 = vshrl.u32 %v2816, 7
    %v2818 = vsub.s32 0, %v2817
    %v2819 = vrot.slane %v2814, %v2818
    %v2820 = vlaneseq
    %v2821 = vshrl.u32 %v2820, 7
    %v2822 = vsub.s32 1, %v2821
    %v2823 = vrot.slane %v2814, %v2822
    %v2826 = vadd.f32 %v2812, %v2819
    %v2827 = vadd.f32 %v2813, %v2823
    %v2828 = vmax.f32 %v2826, 0.0
    %v2829 = vmax.f32 %v2827, 0.0
    %v2830 = vld [vmem:[%s5] sm:$0xff]
    %v2831 = vld [vmem:[%s5 + $0x8] sm:$0xff]
    %v2832 = vld [vmem:[%s5 + $0x10] sm:$0xff]
    %v2833 = vld [vmem:[%s5 + $0x18] sm:$0xff]
    %v2834 = vld [vmem:[%s5 + $0x20] sm:$0xff]
    %v2835 = vld [vmem:[%s5 + $0x28] sm:$0xff]
    %v2836 = vld [vmem:[%s5 + $0x30] sm:$0xff]
    %v2837 = vld [vmem:[%s5 + $0x38] sm:$0xff]
    %v2838 = vld [vmem:[%s5 + $0x40] sm:$0xff]
    %v2839 = vld [vmem:[%s5 + $0x48] sm:$0xff]
    %v2840 = vld [vmem:[%s5 + $0x50] sm:$0xff]
    %v2841 = vld [vmem:[%s5 + $0x58] sm:$0xff]
    %v2842 = vld [vmem:[%s5 + $0x60] sm:$0xff]
    %v2843 = vld [vmem:[%s5 + $0x68] sm:$0xff]
    %v2844 = vld [vmem:[%s5 + $0x70] sm:$0xff]
    %v2845 = vld [vmem:[%s5 + $0x78] sm:$0xff]
    %v2846 = vld [vmem:[%s5 + $0x80] sm:$0xff]
    %v2847 = vld [vmem:[%s5 + $0x88] sm:$0xff]
    %v2848 = vld [vmem:[%s5 + $0x90] sm:$0xff]
    %v2849 = vld [vmem:[%s5 + $0x98] sm:$0xff]
    %v2850 = vld [vmem:[%s5 + $0xa0] sm:$0xff]
    %v2851 = vld [vmem:[%s5 + $0xa8] sm:$0xff]
    %v2852 = vld [vmem:[%s5 + $0xb0] sm:$0xff]
    %v2853 = vld [vmem:[%s5 + $0xb8] sm:$0xff]
    %v2854 = vld [vmem:[%s5 + $0xc0] sm:$0xff]
    %v2855 = vld [vmem:[%s5 + $0xc8] sm:$0xff]
    %v2856 = vld [vmem:[%s5 + $0xd0] sm:$0xff]
    %v2857 = vld [vmem:[%s6] sm:$0x1]
    %v2859 = vlaneseq
    %v2860 = vshrl.u32 %v2859, 7
    %v2861 = vsub.s32 0, %v2860
    %v2862 = vrot.slane %v2857, %v2861
    %vm2864 = vcmask 719872
    %v2866 = vsel %vm2864, %v2829, 0
    %2868 = vmatprep.subr.mxu0 0.0
    %2869 = vmatpush1.msra.mxu0 %v2845
    %2870 = vmatprep.subr.mxu0 0.0
    %2871 = vmatpush1.msra.mxu0 %v2844
    %2872 = vmatprep.subr.mxu0 0.0
    %2873 = vmatpush1.msra.mxu0 %v2843
    %2874 = vmatprep.subr.mxu0 0.0
    %2875 = vmatpush1.msra.mxu0 %v2842
    %2876 = vmatprep.subr.mxu0 0.0
    %2877 = vmatpush1.msra.mxu0 %v2841
    %2878 = vmatprep.subr.mxu0 0.0
    %2879 = vmatpush1.msra.mxu0 %v2840
    %2880 = vmatprep.subr.mxu0 0.0
    %2881 = vmatpush1.msra.mxu0 %v2839
    %2882 = vmatprep.subr.mxu0 0.0
    %2883 = vmatpush1.msra.mxu0 %v2838
    %2884 = vmatprep.subr.mxu0 0.0
    %2885 = vmatpush1.msra.mxu0 %v2837
    %2886 = vmatprep.subr.mxu0 0.0
    %2887 = vmatpush1.msra.mxu0 %v2836
    %2888 = vmatprep.subr.mxu0 0.0
    %2889 = vmatpush1.msra.mxu0 %v2835
    %2890 = vmatprep.subr.mxu0 0.0
    %2891 = vmatpush1.msra.mxu0 %v2834
    %2892 = vmatprep.subr.mxu0 0.0
    %2893 = vmatpush1.msra.mxu0 %v2833
    %2894 = vmatprep.subr.mxu0 0.0
    %2895 = vmatpush1.msra.mxu0 %v2832
    %2896 = vmatprep.subr.mxu0 0.0
    %2897 = vmatpush1.msra.mxu0 %v2831
    %2898 = vmatprep.subr.mxu0 0.0
    %2899 = vmatpush1.msra.mxu0 %v2830
    %2900 = vmatprep.subr.mxu0 0.0
    %2901 = vmatpush2.msra.mxu0 0.0
    %2902 = vmatprep.subr.mxu0 0.0
    %2903 = vmatpush2.msra.mxu0 0.0
    %2904 = vmatprep.subr.mxu0 0.0
    %2905 = vmatpush2.msra.mxu0 0.0
    %2906 = vmatprep.subr.mxu0 0.0
    %2907 = vmatpush2.msra.mxu0 0.0
    %2908 = vmatprep.subr.mxu0 0.0
    %2909 = vmatpush2.msra.mxu0 0.0
    %2910 = vmatprep.subr.mxu0 0.0
    %2911 = vmatpush2.msra.mxu0 %v2856
    %2912 = vmatprep.subr.mxu0 0.0
    %2913 = vmatpush2.msra.mxu0 %v2855
    %2914 = vmatprep.subr.mxu0 0.0
    %2915 = vmatpush2.msra.mxu0 %v2854
    %2916 = vmatprep.subr.mxu0 0.0
    %2917 = vmatpush2.msra.mxu0 %v2853
    %2918 = vmatprep.subr.mxu0 0.0
    %2919 = vmatpush2.msra.mxu0 %v2852
    %2920 = vmatprep.subr.mxu0 0.0
    %2921 = vmatpush2.msra.mxu0 %v2851
    %2922 = vmatprep.subr.mxu0 0.0
    %2923 = vmatpush2.msra.mxu0 %v2850
    %2924 = vmatprep.subr.mxu0 0.0
    %2925 = vmatpush2.msra.mxu0 %v2849
    %2926 = vmatprep.subr.mxu0 0.0
    %2927 = vmatpush2.msra.mxu0 %v2848
    %2928 = vmatprep.subr.mxu0 0.0
    %2929 = vmatpush2.msra.mxu0 %v2847
    %2930 = vmatprep.subr.mxu0 0.0
    %2931 = vmatpush2.msra.mxu0 %v2846
    %2932 = vmatprep.mubr.f32.mxu0 %v2866
    %2933 = vmatmul.mubr.f32.gmra.mxu0 %v2828
    %v2934 = vpop.f32.mrf.mxu0
    %v2935 = vadd.f32 %v2862, %v2934
    %v2936 = vpop.f32.mrf.mxu0
    %2937 = vdwg.mxu0
    %v2938 = vmax.f32 %v2935, 0.0
    %v2939 = vld [vmem:[%s7] sm:$0xff]
    %v2940 = vld [vmem:[%s7 + $0x8] sm:$0xff]
    %v2941 = vld [vmem:[%s7 + $0x10] sm:$0xff]
    %v2942 = vld [vmem:[%s7 + $0x18] sm:$0xff]
    %v2943 = vld [vmem:[%s7 + $0x20] sm:$0xff]
    %v2944 = vld [vmem:[%s7 + $0x28] sm:$0xff]
    %v2945 = vld [vmem:[%s7 + $0x30] sm:$0xff]
    %v2946 = vld [vmem:[%s7 + $0x38] sm:$0xff]
    %v2947 = vld [vmem:[%s7 + $0x40] sm:$0xff]
    %v2948 = vld [vmem:[%s7 + $0x48] sm:$0xff]
    %v2949 = vld [vmem:[%s7 + $0x50] sm:$0xff]
    %v2950 = vld [vmem:[%s7 + $0x58] sm:$0xff]
    %v2951 = vld [vmem:[%s7 + $0x60] sm:$0xff]
    %v2952 = vld [vmem:[%s7 + $0x68] sm:$0xf]
    %v2953 = vld [vmem:[%s8] sm:$0x1]
    %v2955 = vlaneseq
    %v2956 = vshrl.u32 %v2955, 7
    %v2957 = vsub.s32 0, %v2956
    %v2958 = vrot.slane %v2953, %v2957
    %vm2960 = vcmask 883712
    %v2962 = vsel %vm2960, %v2938, 0
    %v2965 = vsel %vm656, %v2952, 0
    %2967 = vmatprep.subr.mxu0 0.0
    %2968 = vmatpush1.msra.mxu0 0.0
    %2969 = vmatprep.subr.mxu0 0.0
    %2970 = vmatpush1.msra.mxu0 0.0
    %2971 = vmatprep.subr.mxu0 0.0
    %2972 = vmatpush1.msra.mxu0 %v2965
    %2973 = vmatprep.subr.mxu0 0.0
    %2974 = vmatpush1.msra.mxu0 %v2951
    %2975 = vmatprep.subr.mxu0 0.0
    %2976 = vmatpush1.msra.mxu0 %v2950
    %2977 = vmatprep.subr.mxu0 0.0
    %2978 = vmatpush1.msra.mxu0 %v2949
    %2979 = vmatprep.subr.mxu0 0.0
    %2980 = vmatpush1.msra.mxu0 %v2948
    %2981 = vmatprep.subr.mxu0 0.0
    %2982 = vmatpush1.msra.mxu0 %v2947
    %2983 = vmatprep.subr.mxu0 0.0
    %2984 = vmatpush1.msra.mxu0 %v2946
    %2985 = vmatprep.subr.mxu0 0.0
    %2986 = vmatpush1.msra.mxu0 %v2945
    %2987 = vmatprep.subr.mxu0 0.0
    %2988 = vmatpush1.msra.mxu0 %v2944
    %2989 = vmatprep.subr.mxu0 0.0
    %2990 = vmatpush1.msra.mxu0 %v2943
    %2991 = vmatprep.subr.mxu0 0.0
    %2992 = vmatpush1.msra.mxu0 %v2942
    %2993 = vmatprep.subr.mxu0 0.0
    %2994 = vmatpush1.msra.mxu0 %v2941
    %2995 = vmatprep.subr.mxu0 0.0
    %2996 = vmatpush1.msra.mxu0 %v2940
    %2997 = vmatprep.subr.mxu0 0.0
    %2998 = vmatpush1.msra.mxu0 %v2939
    %2999 = vmatprep.subr.mxu0 0.0
    %3000 = vmatpush2.msra.mxu0 0.0
    %3001 = vmatprep.subr.mxu0 0.0
    %3002 = vmatpush2.msra.mxu0 0.0
    %3003 = vmatprep.subr.mxu0 0.0
    %3004 = vmatpush2.msra.mxu0 0.0
    %3005 = vmatprep.subr.mxu0 0.0
    %3006 = vmatpush2.msra.mxu0 0.0
    %3007 = vmatprep.subr.mxu0 0.0
    %3008 = vmatpush2.msra.mxu0 0.0
    %3009 = vmatprep.subr.mxu0 0.0
    %3010 = vmatpush2.msra.mxu0 0.0
    %3011 = vmatprep.subr.mxu0 0.0
    %3012 = vmatpush2.msra.mxu0 0.0
    %3013 = vmatprep.subr.mxu0 0.0
    %3014 = vmatpush2.msra.mxu0 0.0
    %3015 = vmatprep.subr.mxu0 0.0
    %3016 = vmatpush2.msra.mxu0 0.0
    %3017 = vmatprep.subr.mxu0 0.0
    %3018 = vmatpush2.msra.mxu0 0.0
    %3019 = vmatprep.subr.mxu0 0.0
    %3020 = vmatpush2.msra.mxu0 0.0
    %3021 = vmatprep.subr.mxu0 0.0
    %3022 = vmatpush2.msra.mxu0 0.0
    %3023 = vmatprep.subr.mxu0 0.0
    %3024 = vmatpush2.msra.mxu0 0.0
    %3025 = vmatprep.subr.mxu0 0.0
    %3026 = vmatpush2.msra.mxu0 0.0
    %3027 = vmatprep.subr.mxu0 0.0
    %3028 = vmatpush2.msra.mxu0 0.0
    %3029 = vmatprep.subr.mxu0 0.0
    %3030 = vmatpush2.msra.mxu0 0.0
    %3031 = vmatprep.mubr.f32.mxu0 0.0
    %3032 = vmatmul.mubr.f32.gmra.mxu0 %v2962
    %v3033 = vpop.f32.mrf.mxu0
    %v3034 = vadd.f32 %v2958, %v3033
    %v3035 = vpop.f32.mrf.mxu0
    %3036 = vdwg.mxu0
    %vm3037 = vcmask 33792
    %3038 = vst.msk [vmem:[#allocation2] sm:$0x3] %vm3037, %v3034
    // Predicated region
    $region38: #{cnn_forward.3} parent=1 // pred_check
      _
    $region39: #{cnn_forward.3} parent=1 // pred_check_branch
      %3040 = sbr.rel (0) target = $region41
    $region40: #{cnn_forward.3} parent=1 // pred_region
      %s3042 = ssub.s32 32, 32
      %3043 = vsyncadd [#allocation3], %s3042
      %s3045 = sshll.u32 [#allocation2], 4
      %s3046 = int_to_ptr.vmem [resolvable:$true] %s3045
      %3048 = dma.vmem_to_hbm [thread:$0]  %s3046, 32, %s9, [#allocation3]
    $region41: #{cnn_forward.3} parent=1 // pred_fallthru
      _
    // Predicated region
    $region42: #{cnn_forward.3} parent=1 // pred_check
      _
    $region43: #{cnn_forward.3} parent=1 // pred_check_branch
      %3050 = sbr.rel (0) target = $region45
    $region44: #{cnn_forward.3} parent=1 // pred_region
      %3051 = dma.done [#allocation3], 32
    $region45: #{cnn_forward.3} parent=1 // pred_fallthru
      _
    %3052 = vsyncpa [#allocation3], 1

</llo_original>
